<compile_context>
chip_gen: v7x
topology: tpu7x:2x2x1
jax: 0.10.0
libtpu: 0.0.40
codegen_flags: <defaults>
</compile_context>

<pallas_src>
import functools

import jax
import jax.numpy as jnp
from jax.experimental import pallas as pl
from jax.experimental.pallas import tpu as pltpu


def _round_up(x, m):
    return (x + m - 1) // m * m


# ---------------------------------------------------------------------------
# Fused Pallas kernel:  Conv3x3+BN+SiLU  ->  Conv1x1+BN+SiLU   (one image/step)
# ---------------------------------------------------------------------------
def _fused_member_kernel(x_ref, w1_ref, s1_ref, w2_ref, s2_ref, o_ref,
                         y1_ref, y1c_ref, *, k1, wp, h, w_out, c_mid):
    # x_ref  : (m_rows, c_in)       bf16  padded NHWC image, rows flattened as
    #                                     r = y*wp + x (+ zero tail rows)
    # w1_ref : (k1*k1, c_in, c_mid) bf16  3x3 weights, BN1 scale folded in
    # s1_ref : (1, c_mid)           f32   BN1 shift
    # w2_ref : (c_mid, c_out)       bf16  1x1 weights, BN2 scale folded in
    # s2_ref : (1, c_out)           f32   BN2 shift
    # o_ref  : (h*w_out, c_out)     f32   dense (row- and lane-exact) output
    # y1_ref : (h*wp, c_mid)        f32   scratch: conv1 result, padded width
    # y1c_ref: (h*w_out, c_mid)     f32   scratch: conv1 result, compacted rows
    L = h * wp

    # ---- Conv 3x3: in-kernel im2col as 9 statically shifted row slabs ------
    # Each tap is an (L, c_in) @ (c_in, c_mid) MXU dot accumulated in f32
    # (Python-unrolled; the slab loads are ref-level addressing, no copies).
    acc = jnp.dot(x_ref[pl.ds(0, L), :], w1_ref[0],
                  preferred_element_type=jnp.float32)
    for t in range(1, k1 * k1):
        dy, dx = divmod(t, k1)
        base = dy * wp + dx                                   # static offset
        acc = acc + jnp.dot(x_ref[pl.ds(base, L), :], w1_ref[t],
                            preferred_element_type=jnp.float32)

    y1 = acc + s1_ref[...]                                    # BN1 shift
    y1 = y1 * jax.nn.sigmoid(y1)                              # SiLU (f32, EUP)

    # ---- Row compaction: drop the padded-width columns ---------------------
    # Ref-level loads/stores with static offsets only (no value reshapes /
    # relayouts): store the full (L, c_mid) slab once, then copy each image
    # row's first w_out positions into a dense (h*w_out, c_mid) scratch.
    y1_ref[...] = y1
    for y in range(h):
        y1c_ref[pl.ds(y * w_out, w_out), :] = y1_ref[pl.ds(y * wp, w_out), :]

    # ---- Conv 1x1 + BN + SiLU on the dense VMEM-resident intermediate ------
    y2 = jnp.dot(y1c_ref[...].astype(jnp.bfloat16), w2_ref[...],
                 preferred_element_type=jnp.float32)
    y2 = y2 + s2_ref[...]                                     # BN2 shift
    o_ref[...] = (y2 * jax.nn.sigmoid(y2)).astype(o_ref.dtype)


def fused_two_layer_forward(x_nchw, p1, p2, *, eps=1e-5):
    """Conv(3x3)+BN+SiLU -> Conv(1x1)+BN+SiLU, fused in one pallas_call.

    Input NCHW; returns YOLO-style flattened predictions (B, H*W, C_out).
    """
    B, C_in, H, W = x_nchw.shape
    C_mid = p1["w"].shape[0]
    C_out = p2["w"].shape[0]
    k1 = p1["w"].shape[-1]
    assert p2["w"].shape[-1] == 1, "second layer must be a 1x1 conv"
    pad = k1 // 2
    Hp, Wp = H + 2 * pad, W + 2 * pad
    L = H * Wp                                    # conv1 rows (padded width)

    # ---- glue: NCHW -> padded NHWC -> flat rows (cheap XLA reshapes) -------
    x_nhwc = jnp.transpose(x_nchw, (0, 2, 3, 1))
    xp = jnp.pad(x_nhwc, ((0, 0), (pad, pad), (pad, pad), (0, 0)))
    xflat = xp.reshape(B, Hp * Wp, C_in)
    # Tail rows so every tap slab [base, base+L) stays in bounds.
    m_rows = _round_up(L + (k1 - 1) * (Wp + 1), 8)
    xflat = jnp.pad(xflat, ((0, 0), (0, m_rows - Hp * Wp), (0, 0)))
    xflat = xflat.astype(jnp.bfloat16)            # bf16 MXU feed, f32 accumulate

    # ---- fold BN scale into the (static) weights ----------------------------
    s1 = p1["gamma"] / jnp.sqrt(p1["var"] + eps)
    w1 = jnp.transpose(p1["w"], (2, 3, 1, 0)).reshape(k1 * k1, C_in, C_mid)
    w1 = (w1 * s1[None, None, :]).astype(jnp.bfloat16)
    shift1 = (p1["beta"] - p1["mean"] * s1).reshape(1, C_mid).astype(jnp.float32)

    s2 = p2["gamma"] / jnp.sqrt(p2["var"] + eps)
    w2 = jnp.transpose(p2["w"], (2, 3, 1, 0)).reshape(C_mid, C_out) * s2[None, :]
    w2 = w2.astype(jnp.bfloat16)
    shift2 = (p2["beta"] - p2["mean"] * s2).reshape(1, C_out).astype(jnp.float32)

    kernel = functools.partial(_fused_member_kernel,
                               k1=k1, wp=Wp, h=H, w_out=W, c_mid=C_mid)

    out = pl.pallas_call(
        kernel,
        out_shape=jax.ShapeDtypeStruct((B, H * W, C_out), jnp.float32),
        grid_spec=pltpu.PrefetchScalarGridSpec(
            num_scalar_prefetch=0,
            grid=(B,),
            in_specs=[
                pl.BlockSpec((None, m_rows, C_in), lambda b: (b, 0, 0)),
                pl.BlockSpec((k1 * k1, C_in, C_mid), lambda b: (0, 0, 0)),
                pl.BlockSpec((1, C_mid), lambda b: (0, 0)),
                pl.BlockSpec((C_mid, C_out), lambda b: (0, 0)),
                pl.BlockSpec((1, C_out), lambda b: (0, 0)),
            ],
            out_specs=pl.BlockSpec((None, H * W, C_out), lambda b: (b, 0, 0)),
            scratch_shapes=[
                pltpu.VMEM((L, C_mid), jnp.float32),       # conv1, padded rows
                pltpu.VMEM((H * W, C_mid), jnp.float32),   # conv1, dense rows
            ],
        ),
        compiler_params=pltpu.CompilerParams(
            dimension_semantics=("parallel",)),
    )(xflat, w1, shift1, w2, shift2)

    return out                                    # already (B, H*W, C_out)


# ---------------------------------------------------------------------------
# Synthetic YOLO-style model = stack of Conv blocks; Ensemble of 1 member.
# ---------------------------------------------------------------------------
def _init_conv_params(key, c1, c2, k):
    kw_, kg_, kb_, km_, kv_ = jax.random.split(key, 5)
    fan_in = c1 * k * k
    w = jax.random.normal(kw_, (c2, c1, k, k), jnp.float32) / jnp.sqrt(fan_in)
    gamma = 1.0 + 0.1 * jax.random.normal(kg_, (c2,), jnp.float32)
    beta = 0.1 * jax.random.normal(kb_, (c2,), jnp.float32)
    mean = 0.05 * jax.random.normal(km_, (c2,), jnp.float32)
    var = jnp.abs(0.5 + 0.1 * jax.random.normal(kv_, (c2,), jnp.float32))
    return dict(w=w, gamma=gamma, beta=beta, mean=mean, var=var)


class DetectMultiBackendPallas:
    """JAX/Pallas stand-in for DetectMultiBackend with a synthetic `pt` model."""

    def __init__(self, key, c_in=4, c_mid=32, c_out=64):
        k1, k2 = jax.random.split(key)
        # Ensemble with one member: Conv(c_in->c_mid, k=3), Conv(c_mid->c_out, k=1)
        self.members = [
            (_init_conv_params(k1, c_in, c_mid, 3),
             _init_conv_params(k2, c_mid, c_out, 1))
        ]
        self.pt = True
        self.stride = 32
        self.names = [f"class{i}" for i in range(1000)]

    def _member_forward(self, params, im):
        p1, p2 = params
        pred = fused_two_layer_forward(im, p1, p2)   # (B, H*W, c_out)
        return pred, None

    def forward(self, im, augment=False, visualize=False, val=False):
        # pt branch: model is an Ensemble -> cat member preds along dim 1
        preds = [self._member_forward(p, im)[0] for p in self.members]
        y = (jnp.concatenate(preds, axis=1), None)
        return y if val else y[0]


# ---------------------------------------------------------------------------
# Pure-JAX f32 reference for verification
# ---------------------------------------------------------------------------
def _ref_conv_bn_silu(x, w, gamma, beta, mean, var, eps=1e-5):
    pad = w.shape[-1] // 2
    y = jax.lax.conv_general_dilated(
        x, w, window_strides=(1, 1), padding=[(pad, pad), (pad, pad)],
        dimension_numbers=("NCHW", "OIHW", "NCHW"),
        precision=jax.lax.Precision.HIGHEST)
    scale = (gamma / jnp.sqrt(var + eps)).reshape(1, -1, 1, 1)
    shift = (beta - mean * gamma / jnp.sqrt(var + eps)).reshape(1, -1, 1, 1)
    y = y * scale + shift
    return y * jax.nn.sigmoid(y)


if __name__ == "__main__":
    key = jax.random.PRNGKey(0)
    k_model, k_input = jax.random.split(key)

    B, C, H, W = 2, 4, 16, 16
    im = jax.random.normal(k_input, (B, C, H, W), jnp.float32)

    model = DetectMultiBackendPallas(k_model, c_in=C, c_mid=32, c_out=64)

    fwd = jax.jit(lambda x: model.forward(x, val=False))
    y = jax.block_until_ready(fwd(im))
    assert y.shape == (B, H * W, 64), y.shape
    assert bool(jnp.all(jnp.isfinite(y)))

    # sanity check against the pure-JAX f32 reference (kernel uses bf16 MXU
    # inputs with f32 accumulation, hence the loose-ish tolerance)
    xr = im
    for p in model.members[0]:
        xr = _ref_conv_bn_silu(xr, p["w"], p["gamma"], p["beta"], p["mean"], p["var"])
    y_ref = jnp.transpose(xr, (0, 2, 3, 1)).reshape(B, H * W, 64)
    max_err = float(jnp.max(jnp.abs(y - y_ref)))
    assert jnp.allclose(y, y_ref, atol=1e-1, rtol=1e-1), max_err

    print("KERNEL_OK")
</pallas_src>

<mosaic_0001>
module attributes {stable_mosaic.version = 11 : i64} {
  func.func @_fused_member_kernel(%arg0: i32, %arg1: memref<1x328x4xbf16, #tpu.memory_space<vmem>>, %arg2: memref<9x4x32xbf16, #tpu.memory_space<vmem>>, %arg3: memref<1x32xf32, #tpu.memory_space<vmem>>, %arg4: memref<32x64xbf16, #tpu.memory_space<vmem>>, %arg5: memref<1x64xf32, #tpu.memory_space<vmem>>, %arg6: memref<1x256x64xf32, #tpu.memory_space<vmem>>, %arg7: memref<288x32xf32, #tpu.memory_space<vmem>>, %arg8: memref<256x32xf32, #tpu.memory_space<vmem>>) attributes {dimension_semantics = [#tpu.dimension_semantics<parallel>], iteration_bounds = array<i64: 2>, scalar_prefetch = 0 : i64, scratch_operands = 2 : i64, tpu.core_type = #tpu.core_type<tc>, window_params = [{transform_indices = @transform_0, window_bounds = array<i64: 1, 328, 4>}, {pipeline_mode = #tpu.pipeline_mode<synchronous>, transform_indices = @transform_1, window_bounds = array<i64: 9, 4, 32>}, {pipeline_mode = #tpu.pipeline_mode<synchronous>, transform_indices = @transform_2, window_bounds = array<i64: 1, 32>}, {pipeline_mode = #tpu.pipeline_mode<synchronous>, transform_indices = @transform_3, window_bounds = array<i64: 32, 64>}, {pipeline_mode = #tpu.pipeline_mode<synchronous>, transform_indices = @transform_4, window_bounds = array<i64: 1, 64>}, {transform_indices = @transform_5, window_bounds = array<i64: 1, 256, 64>}]} {
    %c0 = arith.constant 0 : index
    %c0_0 = arith.constant 0 : index
    %c0_1 = arith.constant 0 : index
    %0 = vector.load %arg1[%c0, %c0_0, %c0_1] : memref<1x328x4xbf16, #tpu.memory_space<vmem>>, vector<1x288x4xbf16>
    %1 = vector.shape_cast %0 : vector<1x288x4xbf16> to vector<288x4xbf16>
    %c0_2 = arith.constant 0 : index
    %c0_3 = arith.constant 0 : index
    %c0_4 = arith.constant 0 : index
    %2 = vector.load %arg2[%c0_2, %c0_3, %c0_4] : memref<9x4x32xbf16, #tpu.memory_space<vmem>>, vector<1x4x32xbf16>
    %3 = vector.shape_cast %2 : vector<1x4x32xbf16> to vector<4x32xbf16>
    %cst = arith.constant dense<0.000000e+00> : vector<288x32xf32>
    %4 = tpu.matmul %1, %3, %cst {dimension_numbers = #tpu.dot_dimension_numbers<[1], [0], [0], [1], [0, 0, 1, 1], [], []>} : vector<288x4xbf16>, vector<4x32xbf16>, vector<288x32xf32> -> vector<288x32xf32>
    %c0_5 = arith.constant 0 : index
    %c1 = arith.constant 1 : index
    %c0_6 = arith.constant 0 : index
    %5 = vector.load %arg1[%c0_5, %c1, %c0_6] : memref<1x328x4xbf16, #tpu.memory_space<vmem>>, vector<1x288x4xbf16>
    %6 = vector.shape_cast %5 : vector<1x288x4xbf16> to vector<288x4xbf16>
    %c1_7 = arith.constant 1 : index
    %c0_8 = arith.constant 0 : index
    %c0_9 = arith.constant 0 : index
    %7 = vector.load %arg2[%c1_7, %c0_8, %c0_9] : memref<9x4x32xbf16, #tpu.memory_space<vmem>>, vector<1x4x32xbf16>
    %8 = vector.shape_cast %7 : vector<1x4x32xbf16> to vector<4x32xbf16>
    %cst_10 = arith.constant dense<0.000000e+00> : vector<288x32xf32>
    %9 = tpu.matmul %6, %8, %cst_10 {dimension_numbers = #tpu.dot_dimension_numbers<[1], [0], [0], [1], [0, 0, 1, 1], [], []>} : vector<288x4xbf16>, vector<4x32xbf16>, vector<288x32xf32> -> vector<288x32xf32>
    %10 = arith.addf %4, %9 : vector<288x32xf32>
    %c0_11 = arith.constant 0 : index
    %c2 = arith.constant 2 : index
    %c0_12 = arith.constant 0 : index
    %11 = vector.load %arg1[%c0_11, %c2, %c0_12] : memref<1x328x4xbf16, #tpu.memory_space<vmem>>, vector<1x288x4xbf16>
    %12 = vector.shape_cast %11 : vector<1x288x4xbf16> to vector<288x4xbf16>
    %c2_13 = arith.constant 2 : index
    %c0_14 = arith.constant 0 : index
    %c0_15 = arith.constant 0 : index
    %13 = vector.load %arg2[%c2_13, %c0_14, %c0_15] : memref<9x4x32xbf16, #tpu.memory_space<vmem>>, vector<1x4x32xbf16>
    %14 = vector.shape_cast %13 : vector<1x4x32xbf16> to vector<4x32xbf16>
    %cst_16 = arith.constant dense<0.000000e+00> : vector<288x32xf32>
    %15 = tpu.matmul %12, %14, %cst_16 {dimension_numbers = #tpu.dot_dimension_numbers<[1], [0], [0], [1], [0, 0, 1, 1], [], []>} : vector<288x4xbf16>, vector<4x32xbf16>, vector<288x32xf32> -> vector<288x32xf32>
    %16 = arith.addf %10, %15 : vector<288x32xf32>
    %c0_17 = arith.constant 0 : index
    %c18 = arith.constant 18 : index
    %c0_18 = arith.constant 0 : index
    %17 = vector.load %arg1[%c0_17, %c18, %c0_18] : memref<1x328x4xbf16, #tpu.memory_space<vmem>>, vector<1x288x4xbf16>
    %18 = vector.shape_cast %17 : vector<1x288x4xbf16> to vector<288x4xbf16>
    %c3 = arith.constant 3 : index
    %c0_19 = arith.constant 0 : index
    %c0_20 = arith.constant 0 : index
    %19 = vector.load %arg2[%c3, %c0_19, %c0_20] : memref<9x4x32xbf16, #tpu.memory_space<vmem>>, vector<1x4x32xbf16>
    %20 = vector.shape_cast %19 : vector<1x4x32xbf16> to vector<4x32xbf16>
    %cst_21 = arith.constant dense<0.000000e+00> : vector<288x32xf32>
    %21 = tpu.matmul %18, %20, %cst_21 {dimension_numbers = #tpu.dot_dimension_numbers<[1], [0], [0], [1], [0, 0, 1, 1], [], []>} : vector<288x4xbf16>, vector<4x32xbf16>, vector<288x32xf32> -> vector<288x32xf32>
    %22 = arith.addf %16, %21 : vector<288x32xf32>
    %c0_22 = arith.constant 0 : index
    %c19 = arith.constant 19 : index
    %c0_23 = arith.constant 0 : index
    %23 = vector.load %arg1[%c0_22, %c19, %c0_23] : memref<1x328x4xbf16, #tpu.memory_space<vmem>>, vector<1x288x4xbf16>
    %24 = vector.shape_cast %23 : vector<1x288x4xbf16> to vector<288x4xbf16>
    %c4 = arith.constant 4 : index
    %c0_24 = arith.constant 0 : index
    %c0_25 = arith.constant 0 : index
    %25 = vector.load %arg2[%c4, %c0_24, %c0_25] : memref<9x4x32xbf16, #tpu.memory_space<vmem>>, vector<1x4x32xbf16>
    %26 = vector.shape_cast %25 : vector<1x4x32xbf16> to vector<4x32xbf16>
    %cst_26 = arith.constant dense<0.000000e+00> : vector<288x32xf32>
    %27 = tpu.matmul %24, %26, %cst_26 {dimension_numbers = #tpu.dot_dimension_numbers<[1], [0], [0], [1], [0, 0, 1, 1], [], []>} : vector<288x4xbf16>, vector<4x32xbf16>, vector<288x32xf32> -> vector<288x32xf32>
    %28 = arith.addf %22, %27 : vector<288x32xf32>
    %c0_27 = arith.constant 0 : index
    %c20 = arith.constant 20 : index
    %c0_28 = arith.constant 0 : index
    %29 = vector.load %arg1[%c0_27, %c20, %c0_28] : memref<1x328x4xbf16, #tpu.memory_space<vmem>>, vector<1x288x4xbf16>
    %30 = vector.shape_cast %29 : vector<1x288x4xbf16> to vector<288x4xbf16>
    %c5 = arith.constant 5 : index
    %c0_29 = arith.constant 0 : index
    %c0_30 = arith.constant 0 : index
    %31 = vector.load %arg2[%c5, %c0_29, %c0_30] : memref<9x4x32xbf16, #tpu.memory_space<vmem>>, vector<1x4x32xbf16>
    %32 = vector.shape_cast %31 : vector<1x4x32xbf16> to vector<4x32xbf16>
    %cst_31 = arith.constant dense<0.000000e+00> : vector<288x32xf32>
    %33 = tpu.matmul %30, %32, %cst_31 {dimension_numbers = #tpu.dot_dimension_numbers<[1], [0], [0], [1], [0, 0, 1, 1], [], []>} : vector<288x4xbf16>, vector<4x32xbf16>, vector<288x32xf32> -> vector<288x32xf32>
    %34 = arith.addf %28, %33 : vector<288x32xf32>
    %c0_32 = arith.constant 0 : index
    %c36 = arith.constant 36 : index
    %c0_33 = arith.constant 0 : index
    %35 = vector.load %arg1[%c0_32, %c36, %c0_33] : memref<1x328x4xbf16, #tpu.memory_space<vmem>>, vector<1x288x4xbf16>
    %36 = vector.shape_cast %35 : vector<1x288x4xbf16> to vector<288x4xbf16>
    %c6 = arith.constant 6 : index
    %c0_34 = arith.constant 0 : index
    %c0_35 = arith.constant 0 : index
    %37 = vector.load %arg2[%c6, %c0_34, %c0_35] : memref<9x4x32xbf16, #tpu.memory_space<vmem>>, vector<1x4x32xbf16>
    %38 = vector.shape_cast %37 : vector<1x4x32xbf16> to vector<4x32xbf16>
    %cst_36 = arith.constant dense<0.000000e+00> : vector<288x32xf32>
    %39 = tpu.matmul %36, %38, %cst_36 {dimension_numbers = #tpu.dot_dimension_numbers<[1], [0], [0], [1], [0, 0, 1, 1], [], []>} : vector<288x4xbf16>, vector<4x32xbf16>, vector<288x32xf32> -> vector<288x32xf32>
    %40 = arith.addf %34, %39 : vector<288x32xf32>
    %c0_37 = arith.constant 0 : index
    %c37 = arith.constant 37 : index
    %c0_38 = arith.constant 0 : index
    %41 = vector.load %arg1[%c0_37, %c37, %c0_38] : memref<1x328x4xbf16, #tpu.memory_space<vmem>>, vector<1x288x4xbf16>
    %42 = vector.shape_cast %41 : vector<1x288x4xbf16> to vector<288x4xbf16>
    %c7 = arith.constant 7 : index
    %c0_39 = arith.constant 0 : index
    %c0_40 = arith.constant 0 : index
    %43 = vector.load %arg2[%c7, %c0_39, %c0_40] : memref<9x4x32xbf16, #tpu.memory_space<vmem>>, vector<1x4x32xbf16>
    %44 = vector.shape_cast %43 : vector<1x4x32xbf16> to vector<4x32xbf16>
    %cst_41 = arith.constant dense<0.000000e+00> : vector<288x32xf32>
    %45 = tpu.matmul %42, %44, %cst_41 {dimension_numbers = #tpu.dot_dimension_numbers<[1], [0], [0], [1], [0, 0, 1, 1], [], []>} : vector<288x4xbf16>, vector<4x32xbf16>, vector<288x32xf32> -> vector<288x32xf32>
    %46 = arith.addf %40, %45 : vector<288x32xf32>
    %c0_42 = arith.constant 0 : index
    %c38 = arith.constant 38 : index
    %c0_43 = arith.constant 0 : index
    %47 = vector.load %arg1[%c0_42, %c38, %c0_43] : memref<1x328x4xbf16, #tpu.memory_space<vmem>>, vector<1x288x4xbf16>
    %48 = vector.shape_cast %47 : vector<1x288x4xbf16> to vector<288x4xbf16>
    %c8 = arith.constant 8 : index
    %c0_44 = arith.constant 0 : index
    %c0_45 = arith.constant 0 : index
    %49 = vector.load %arg2[%c8, %c0_44, %c0_45] : memref<9x4x32xbf16, #tpu.memory_space<vmem>>, vector<1x4x32xbf16>
    %50 = vector.shape_cast %49 : vector<1x4x32xbf16> to vector<4x32xbf16>
    %cst_46 = arith.constant dense<0.000000e+00> : vector<288x32xf32>
    %51 = tpu.matmul %48, %50, %cst_46 {dimension_numbers = #tpu.dot_dimension_numbers<[1], [0], [0], [1], [0, 0, 1, 1], [], []>} : vector<288x4xbf16>, vector<4x32xbf16>, vector<288x32xf32> -> vector<288x32xf32>
    %52 = arith.addf %46, %51 : vector<288x32xf32>
    %c0_47 = arith.constant 0 : index
    %c0_48 = arith.constant 0 : index
    %53 = vector.load %arg3[%c0_47, %c0_48] : memref<1x32xf32, #tpu.memory_space<vmem>>, vector<1x32xf32>
    %54 = vector.broadcast %53 : vector<1x32xf32> to vector<288x32xf32>
    %55 = arith.addf %52, %54 : vector<288x32xf32>
    %56 = arith.negf %55 : vector<288x32xf32>
    %57 = math.exp %56 : vector<288x32xf32>
    %cst_49 = arith.constant 1.000000e+00 : f32
    %58 = vector.broadcast %cst_49 : f32 to vector<288x32xf32>
    %59 = arith.addf %58, %57 : vector<288x32xf32>
    %60 = arith.divf %58, %59 : vector<288x32xf32>
    %61 = arith.mulf %55, %60 : vector<288x32xf32>
    %c0_50 = arith.constant 0 : index
    %c0_51 = arith.constant 0 : index
    %62 = vector.load %arg7[%c0_50, %c0_51] : memref<288x32xf32, #tpu.memory_space<vmem>>, vector<288x32xf32>
    tpu.vector_store %arg7[%c0_50, %c0_51], %61 {strides = array<i32>} : memref<288x32xf32, #tpu.memory_space<vmem>>, vector<288x32xf32>,
    %c0_52 = arith.constant 0 : index
    %c0_53 = arith.constant 0 : index
    %63 = vector.load %arg7[%c0_52, %c0_53] : memref<288x32xf32, #tpu.memory_space<vmem>>, vector<16x32xf32>
    %c0_54 = arith.constant 0 : index
    %c0_55 = arith.constant 0 : index
    %64 = vector.load %arg8[%c0_54, %c0_55] : memref<256x32xf32, #tpu.memory_space<vmem>>, vector<16x32xf32>
    tpu.vector_store %arg8[%c0_54, %c0_55], %63 {strides = array<i32>} : memref<256x32xf32, #tpu.memory_space<vmem>>, vector<16x32xf32>,
    %c18_56 = arith.constant 18 : index
    %c0_57 = arith.constant 0 : index
    %65 = vector.load %arg7[%c18_56, %c0_57] : memref<288x32xf32, #tpu.memory_space<vmem>>, vector<16x32xf32>
    %c16 = arith.constant 16 : index
    %c0_58 = arith.constant 0 : index
    %66 = vector.load %arg8[%c16, %c0_58] : memref<256x32xf32, #tpu.memory_space<vmem>>, vector<16x32xf32>
    tpu.vector_store %arg8[%c16, %c0_58], %65 {strides = array<i32>} : memref<256x32xf32, #tpu.memory_space<vmem>>, vector<16x32xf32>,
    %c36_59 = arith.constant 36 : index
    %c0_60 = arith.constant 0 : index
    %67 = vector.load %arg7[%c36_59, %c0_60] : memref<288x32xf32, #tpu.memory_space<vmem>>, vector<16x32xf32>
    %c32 = arith.constant 32 : index
    %c0_61 = arith.constant 0 : index
    %68 = vector.load %arg8[%c32, %c0_61] : memref<256x32xf32, #tpu.memory_space<vmem>>, vector<16x32xf32>
    tpu.vector_store %arg8[%c32, %c0_61], %67 {strides = array<i32>} : memref<256x32xf32, #tpu.memory_space<vmem>>, vector<16x32xf32>,
    %c54 = arith.constant 54 : index
    %c0_62 = arith.constant 0 : index
    %69 = vector.load %arg7[%c54, %c0_62] : memref<288x32xf32, #tpu.memory_space<vmem>>, vector<16x32xf32>
    %c48 = arith.constant 48 : index
    %c0_63 = arith.constant 0 : index
    %70 = vector.load %arg8[%c48, %c0_63] : memref<256x32xf32, #tpu.memory_space<vmem>>, vector<16x32xf32>
    tpu.vector_store %arg8[%c48, %c0_63], %69 {strides = array<i32>} : memref<256x32xf32, #tpu.memory_space<vmem>>, vector<16x32xf32>,
    %c72 = arith.constant 72 : index
    %c0_64 = arith.constant 0 : index
    %71 = vector.load %arg7[%c72, %c0_64] : memref<288x32xf32, #tpu.memory_space<vmem>>, vector<16x32xf32>
    %c64 = arith.constant 64 : index
    %c0_65 = arith.constant 0 : index
    %72 = vector.load %arg8[%c64, %c0_65] : memref<256x32xf32, #tpu.memory_space<vmem>>, vector<16x32xf32>
    tpu.vector_store %arg8[%c64, %c0_65], %71 {strides = array<i32>} : memref<256x32xf32, #tpu.memory_space<vmem>>, vector<16x32xf32>,
    %c90 = arith.constant 90 : index
    %c0_66 = arith.constant 0 : index
    %73 = vector.load %arg7[%c90, %c0_66] : memref<288x32xf32, #tpu.memory_space<vmem>>, vector<16x32xf32>
    %c80 = arith.constant 80 : index
    %c0_67 = arith.constant 0 : index
    %74 = vector.load %arg8[%c80, %c0_67] : memref<256x32xf32, #tpu.memory_space<vmem>>, vector<16x32xf32>
    tpu.vector_store %arg8[%c80, %c0_67], %73 {strides = array<i32>} : memref<256x32xf32, #tpu.memory_space<vmem>>, vector<16x32xf32>,
    %c108 = arith.constant 108 : index
    %c0_68 = arith.constant 0 : index
    %75 = vector.load %arg7[%c108, %c0_68] : memref<288x32xf32, #tpu.memory_space<vmem>>, vector<16x32xf32>
    %c96 = arith.constant 96 : index
    %c0_69 = arith.constant 0 : index
    %76 = vector.load %arg8[%c96, %c0_69] : memref<256x32xf32, #tpu.memory_space<vmem>>, vector<16x32xf32>
    tpu.vector_store %arg8[%c96, %c0_69], %75 {strides = array<i32>} : memref<256x32xf32, #tpu.memory_space<vmem>>, vector<16x32xf32>,
    %c126 = arith.constant 126 : index
    %c0_70 = arith.constant 0 : index
    %77 = vector.load %arg7[%c126, %c0_70] : memref<288x32xf32, #tpu.memory_space<vmem>>, vector<16x32xf32>
    %c112 = arith.constant 112 : index
    %c0_71 = arith.constant 0 : index
    %78 = vector.load %arg8[%c112, %c0_71] : memref<256x32xf32, #tpu.memory_space<vmem>>, vector<16x32xf32>
    tpu.vector_store %arg8[%c112, %c0_71], %77 {strides = array<i32>} : memref<256x32xf32, #tpu.memory_space<vmem>>, vector<16x32xf32>,
    %c144 = arith.constant 144 : index
    %c0_72 = arith.constant 0 : index
    %79 = vector.load %arg7[%c144, %c0_72] : memref<288x32xf32, #tpu.memory_space<vmem>>, vector<16x32xf32>
    %c128 = arith.constant 128 : index
    %c0_73 = arith.constant 0 : index
    %80 = vector.load %arg8[%c128, %c0_73] : memref<256x32xf32, #tpu.memory_space<vmem>>, vector<16x32xf32>
    tpu.vector_store %arg8[%c128, %c0_73], %79 {strides = array<i32>} : memref<256x32xf32, #tpu.memory_space<vmem>>, vector<16x32xf32>,
    %c162 = arith.constant 162 : index
    %c0_74 = arith.constant 0 : index
    %81 = vector.load %arg7[%c162, %c0_74] : memref<288x32xf32, #tpu.memory_space<vmem>>, vector<16x32xf32>
    %c144_75 = arith.constant 144 : index
    %c0_76 = arith.constant 0 : index
    %82 = vector.load %arg8[%c144_75, %c0_76] : memref<256x32xf32, #tpu.memory_space<vmem>>, vector<16x32xf32>
    tpu.vector_store %arg8[%c144_75, %c0_76], %81 {strides = array<i32>} : memref<256x32xf32, #tpu.memory_space<vmem>>, vector<16x32xf32>,
    %c180 = arith.constant 180 : index
    %c0_77 = arith.constant 0 : index
    %83 = vector.load %arg7[%c180, %c0_77] : memref<288x32xf32, #tpu.memory_space<vmem>>, vector<16x32xf32>
    %c160 = arith.constant 160 : index
    %c0_78 = arith.constant 0 : index
    %84 = vector.load %arg8[%c160, %c0_78] : memref<256x32xf32, #tpu.memory_space<vmem>>, vector<16x32xf32>
    tpu.vector_store %arg8[%c160, %c0_78], %83 {strides = array<i32>} : memref<256x32xf32, #tpu.memory_space<vmem>>, vector<16x32xf32>,
    %c198 = arith.constant 198 : index
    %c0_79 = arith.constant 0 : index
    %85 = vector.load %arg7[%c198, %c0_79] : memref<288x32xf32, #tpu.memory_space<vmem>>, vector<16x32xf32>
    %c176 = arith.constant 176 : index
    %c0_80 = arith.constant 0 : index
    %86 = vector.load %arg8[%c176, %c0_80] : memref<256x32xf32, #tpu.memory_space<vmem>>, vector<16x32xf32>
    tpu.vector_store %arg8[%c176, %c0_80], %85 {strides = array<i32>} : memref<256x32xf32, #tpu.memory_space<vmem>>, vector<16x32xf32>,
    %c216 = arith.constant 216 : index
    %c0_81 = arith.constant 0 : index
    %87 = vector.load %arg7[%c216, %c0_81] : memref<288x32xf32, #tpu.memory_space<vmem>>, vector<16x32xf32>
    %c192 = arith.constant 192 : index
    %c0_82 = arith.constant 0 : index
    %88 = vector.load %arg8[%c192, %c0_82] : memref<256x32xf32, #tpu.memory_space<vmem>>, vector<16x32xf32>
    tpu.vector_store %arg8[%c192, %c0_82], %87 {strides = array<i32>} : memref<256x32xf32, #tpu.memory_space<vmem>>, vector<16x32xf32>,
    %c234 = arith.constant 234 : index
    %c0_83 = arith.constant 0 : index
    %89 = vector.load %arg7[%c234, %c0_83] : memref<288x32xf32, #tpu.memory_space<vmem>>, vector<16x32xf32>
    %c208 = arith.constant 208 : index
    %c0_84 = arith.constant 0 : index
    %90 = vector.load %arg8[%c208, %c0_84] : memref<256x32xf32, #tpu.memory_space<vmem>>, vector<16x32xf32>
    tpu.vector_store %arg8[%c208, %c0_84], %89 {strides = array<i32>} : memref<256x32xf32, #tpu.memory_space<vmem>>, vector<16x32xf32>,
    %c252 = arith.constant 252 : index
    %c0_85 = arith.constant 0 : index
    %91 = vector.load %arg7[%c252, %c0_85] : memref<288x32xf32, #tpu.memory_space<vmem>>, vector<16x32xf32>
    %c224 = arith.constant 224 : index
    %c0_86 = arith.constant 0 : index
    %92 = vector.load %arg8[%c224, %c0_86] : memref<256x32xf32, #tpu.memory_space<vmem>>, vector<16x32xf32>
    tpu.vector_store %arg8[%c224, %c0_86], %91 {strides = array<i32>} : memref<256x32xf32, #tpu.memory_space<vmem>>, vector<16x32xf32>,
    %c270 = arith.constant 270 : index
    %c0_87 = arith.constant 0 : index
    %93 = vector.load %arg7[%c270, %c0_87] : memref<288x32xf32, #tpu.memory_space<vmem>>, vector<16x32xf32>
    %c240 = arith.constant 240 : index
    %c0_88 = arith.constant 0 : index
    %94 = vector.load %arg8[%c240, %c0_88] : memref<256x32xf32, #tpu.memory_space<vmem>>, vector<16x32xf32>
    tpu.vector_store %arg8[%c240, %c0_88], %93 {strides = array<i32>} : memref<256x32xf32, #tpu.memory_space<vmem>>, vector<16x32xf32>,
    %c0_89 = arith.constant 0 : index
    %c0_90 = arith.constant 0 : index
    %95 = vector.load %arg8[%c0_89, %c0_90] : memref<256x32xf32, #tpu.memory_space<vmem>>, vector<256x32xf32>
    %96 = arith.truncf %95 : vector<256x32xf32> to vector<256x32xbf16>
    %c0_91 = arith.constant 0 : index
    %c0_92 = arith.constant 0 : index
    %97 = vector.load %arg4[%c0_91, %c0_92] : memref<32x64xbf16, #tpu.memory_space<vmem>>, vector<32x64xbf16>
    %cst_93 = arith.constant dense<0.000000e+00> : vector<256x64xf32>
    %98 = tpu.matmul %96, %97, %cst_93 {dimension_numbers = #tpu.dot_dimension_numbers<[1], [0], [0], [1], [0, 0, 1, 1], [], []>} : vector<256x32xbf16>, vector<32x64xbf16>, vector<256x64xf32> -> vector<256x64xf32>
    %c0_94 = arith.constant 0 : index
    %c0_95 = arith.constant 0 : index
    %99 = vector.load %arg5[%c0_94, %c0_95] : memref<1x64xf32, #tpu.memory_space<vmem>>, vector<1x64xf32>
    %100 = vector.broadcast %99 : vector<1x64xf32> to vector<256x64xf32>
    %101 = arith.addf %98, %100 : vector<256x64xf32>
    %102 = arith.negf %101 : vector<256x64xf32>
    %103 = math.exp %102 : vector<256x64xf32>
    %cst_96 = arith.constant 1.000000e+00 : f32
    %104 = vector.broadcast %cst_96 : f32 to vector<256x64xf32>
    %105 = arith.addf %104, %103 : vector<256x64xf32>
    %106 = arith.divf %104, %105 : vector<256x64xf32>
    %107 = arith.mulf %101, %106 : vector<256x64xf32>
    %c0_97 = arith.constant 0 : index
    %c0_98 = arith.constant 0 : index
    %c0_99 = arith.constant 0 : index
    %108 = vector.load %arg6[%c0_97, %c0_98, %c0_99] : memref<1x256x64xf32, #tpu.memory_space<vmem>>, vector<1x256x64xf32>
    %109 = vector.shape_cast %108 : vector<1x256x64xf32> to vector<256x64xf32>
    %110 = vector.shape_cast %107 : vector<256x64xf32> to vector<1x256x64xf32>
    tpu.vector_store %arg6[%c0_97, %c0_98, %c0_99], %110 {strides = array<i32>} : memref<1x256x64xf32, #tpu.memory_space<vmem>>, vector<1x256x64xf32>,
    return
  }
  func.func @transform_0(%arg0: i32) -> (i32, i32, i32) {
    %c0_i32 = arith.constant 0 : i32
    %c0_i32_0 = arith.constant 0 : i32
    %c0_i32_1 = arith.constant 0 : i32
    return %arg0, %c0_i32, %c0_i32_0 : i32, i32, i32
  }
  func.func @transform_1(%arg0: i32) -> (i32, i32, i32) {
    %c0_i32 = arith.constant 0 : i32
    %c0_i32_0 = arith.constant 0 : i32
    %c0_i32_1 = arith.constant 0 : i32
    %c0_i32_2 = arith.constant 0 : i32
    return %c0_i32, %c0_i32_0, %c0_i32_1 : i32, i32, i32
  }
  func.func @transform_2(%arg0: i32) -> (i32, i32) {
    %c0_i32 = arith.constant 0 : i32
    %c0_i32_0 = arith.constant 0 : i32
    %c0_i32_1 = arith.constant 0 : i32
    return %c0_i32, %c0_i32_0 : i32, i32
  }
  func.func @transform_3(%arg0: i32) -> (i32, i32) {
    %c0_i32 = arith.constant 0 : i32
    %c0_i32_0 = arith.constant 0 : i32
    %c0_i32_1 = arith.constant 0 : i32
    return %c0_i32, %c0_i32_0 : i32, i32
  }
  func.func @transform_4(%arg0: i32) -> (i32, i32) {
    %c0_i32 = arith.constant 0 : i32
    %c0_i32_0 = arith.constant 0 : i32
    %c0_i32_1 = arith.constant 0 : i32
    return %c0_i32, %c0_i32_0 : i32, i32
  }
  func.func @transform_5(%arg0: i32) -> (i32, i32, i32) {
    %c0_i32 = arith.constant 0 : i32
    %c0_i32_0 = arith.constant 0 : i32
    %c0_i32_1 = arith.constant 0 : i32
    return %arg0, %c0_i32, %c0_i32_0 : i32, i32, i32
  }
}

</mosaic_0001>

<llo_original>
// kernel: _lambda_.1
$region0: #{_lambda_.1}
  #allocation0 [shape = 'u32[]', space=smem, size = 0x4, offset = 0x4, fixed_abs, tag = 'smem constant byte address 0x4 - core index']
  #allocation1 [shape = 'u32[144,128]{1,0:T(1,128)}', space=vmem, size = 0x12000, scoped, tag = 'internal scratch']
  #allocation2 [shape = 'f32[288,32]{1,0:T(8,128)}', space=vmem, size = 0x24000, scoped, tag = 'scratch operand']
  #allocation3 [shape = 'f32[256,32]{1,0:T(8,128)}', space=vmem, size = 0x20000, scoped, tag = 'scratch operand']
  %s0 = inlined_call_operand.vmem [shape: bf16[2,328,4], index: 0, kind: input, shape index: {}]
  %s1 = inlined_call_operand.vmem [shape: bf16[9,4,32], index: 1, kind: input, shape index: {}]
  %s2 = inlined_call_operand.vmem [shape: f32[1,32], index: 2, kind: input, shape index: {}]
  %s3 = inlined_call_operand.vmem [shape: bf16[32,64], index: 3, kind: input, shape index: {}]
  %s4 = inlined_call_operand.vmem [shape: f32[1,64], index: 4, kind: input, shape index: {}]
  %s5 = inlined_call_operand.vmem [shape: f32[2,256,64], index: 5, kind: output, shape index: {}]
  %s6 = sld [smem:[#allocation0]]
  $region53: #{_lambda_.1} parent=0
    _
  %s8 = ssub.s32 1, %s6
  %s9 = scalar_select 0, %s8, %s6
  loop: start=0, step=1, limit=4
  $region2: #{_lambda_.1} parent=0 // loop_pre_header
    _
  $region3: #{_lambda_.1} parent=0 // loop_header
    %s11 = sphi 0, %s15
    %p12 = scmp.ge.s32.totalorder %s11, 4
    %s21 = sphi 0, %s23
    %s24 = sphi 0, %s21
    %s25 = sphi 0, %s24
    %s41 = sphi 0, %s25
    %s45 = sphi 0, %s45
    %s47 = sphi 0, %s45
    %s48 = sphi 0, %s47
    %s62 = sphi 0, %s48
    %s66 = sphi 0, %s66
    %s68 = sphi 0, %s66
    %s69 = sphi 0, %s68
    %s83 = sphi 0, %s69
    %s87 = sphi 0, %s87
    %s89 = sphi 0, %s87
    %s90 = sphi 0, %s89
    %s104 = sphi 0, %s90
    %s108 = sphi 0, %s108
    %s110 = sphi 0, %s108
    %s111 = sphi 0, %s110
    %s125 = sphi 0, %s111
    %s131 = sphi 0, %s133
    %s134 = sphi 0, %s131
    %s135 = sphi 0, %s134
    %s151 = sphi 0, %s135
  $region4: #{_lambda_.1} parent=0 // loop_header_branch
    %14 = sbr.rel (%p12) target = $region8
  $region5: #{_lambda_.1} parent=0 // loop_body
    %s16 = ssub.s32 %s11, 1
    %s17 = ssub.s32 %s11, 2
    %s18 = sadd.s32 %s11, 1
    %s19 = ssub.s32 %s11, %s18
    %p20 = scmp.eq.s32.totalorder %s19, 0
    %s22 = sadd.s32 %s21, 1
    %s23 = scalar_select %p20, %s21, %s22
    %p26 = pneg %p20
    %p27 = scmp.eq.s32.totalorder %s11, 1
    %p28 = por %p26, %p27
    %p29 = scmp.ne.s32.totalorder %s21, %s24
    %p30 = scmp.eq.s32.totalorder %s11, 0
    %p31 = por %p29, %p30
    %p32 = scmp.ne.s32.totalorder %s21, %s24
    %p33 = scmp.eq.s32.totalorder %s16, 1
    %p34 = por %p32, %p33
    %p35 = scmp.ne.s32.totalorder %s24, %s25
    %p36 = scmp.eq.s32.totalorder %s16, 0
    %p37 = por %p35, %p36
    %p38 = scmp.ne.s32.totalorder %s24, %s25
    %p39 = scmp.eq.s32.totalorder %s17, 1
    %p40 = por %p38, %p39
    %p42 = scmp.ne.s32.totalorder %s25, %s41
    %p43 = scmp.eq.s32.totalorder %s17, 0
    %p44 = por %p42, %p43
    %s46 = sadd.s32 %s45, 1
    %p49 = scmp.eq.s32.totalorder %s11, 1
    %p50 = scmp.ne.s32.totalorder %s45, %s47
    %p51 = scmp.eq.s32.totalorder %s11, 0
    %p52 = por %p50, %p51
    %p53 = scmp.ne.s32.totalorder %s45, %s47
    %p54 = scmp.eq.s32.totalorder %s16, 1
    %p55 = por %p53, %p54
    %p56 = scmp.ne.s32.totalorder %s47, %s48
    %p57 = scmp.eq.s32.totalorder %s16, 0
    %p58 = por %p56, %p57
    %p59 = scmp.ne.s32.totalorder %s47, %s48
    %p60 = scmp.eq.s32.totalorder %s17, 1
    %p61 = por %p59, %p60
    %p63 = scmp.ne.s32.totalorder %s48, %s62
    %p64 = scmp.eq.s32.totalorder %s17, 0
    %p65 = por %p63, %p64
    %s67 = sadd.s32 %s66, 1
    %p70 = scmp.eq.s32.totalorder %s11, 1
    %p71 = scmp.ne.s32.totalorder %s66, %s68
    %p72 = scmp.eq.s32.totalorder %s11, 0
    %p73 = por %p71, %p72
    %p74 = scmp.ne.s32.totalorder %s66, %s68
    %p75 = scmp.eq.s32.totalorder %s16, 1
    %p76 = por %p74, %p75
    %p77 = scmp.ne.s32.totalorder %s68, %s69
    %p78 = scmp.eq.s32.totalorder %s16, 0
    %p79 = por %p77, %p78
    %p80 = scmp.ne.s32.totalorder %s68, %s69
    %p81 = scmp.eq.s32.totalorder %s17, 1
    %p82 = por %p80, %p81
    %p84 = scmp.ne.s32.totalorder %s69, %s83
    %p85 = scmp.eq.s32.totalorder %s17, 0
    %p86 = por %p84, %p85
    %s88 = sadd.s32 %s87, 1
    %p91 = scmp.eq.s32.totalorder %s11, 1
    %p92 = scmp.ne.s32.totalorder %s87, %s89
    %p93 = scmp.eq.s32.totalorder %s11, 0
    %p94 = por %p92, %p93
    %p95 = scmp.ne.s32.totalorder %s87, %s89
    %p96 = scmp.eq.s32.totalorder %s16, 1
    %p97 = por %p95, %p96
    %p98 = scmp.ne.s32.totalorder %s89, %s90
    %p99 = scmp.eq.s32.totalorder %s16, 0
    %p100 = por %p98, %p99
    %p101 = scmp.ne.s32.totalorder %s89, %s90
    %p102 = scmp.eq.s32.totalorder %s17, 1
    %p103 = por %p101, %p102
    %p105 = scmp.ne.s32.totalorder %s90, %s104
    %p106 = scmp.eq.s32.totalorder %s17, 0
    %p107 = por %p105, %p106
    %s109 = sadd.s32 %s108, 1
    %p112 = scmp.eq.s32.totalorder %s11, 1
    %p113 = scmp.ne.s32.totalorder %s108, %s110
    %p114 = scmp.eq.s32.totalorder %s11, 0
    %p115 = por %p113, %p114
    %p116 = scmp.ne.s32.totalorder %s108, %s110
    %p117 = scmp.eq.s32.totalorder %s16, 1
    %p118 = por %p116, %p117
    %p119 = scmp.ne.s32.totalorder %s110, %s111
    %p120 = scmp.eq.s32.totalorder %s16, 0
    %p121 = por %p119, %p120
    %p122 = scmp.ne.s32.totalorder %s110, %s111
    %p123 = scmp.eq.s32.totalorder %s17, 1
    %p124 = por %p122, %p123
    %p126 = scmp.ne.s32.totalorder %s111, %s125
    %p127 = scmp.eq.s32.totalorder %s17, 0
    %p128 = por %p126, %p127
    %s129 = ssub.s32 %s11, %s18
    %p130 = scmp.eq.s32.totalorder %s129, 0
    %s132 = sadd.s32 %s131, 1
    %s133 = scalar_select %p130, %s131, %s132
    %p136 = pneg %p130
    %p137 = scmp.eq.s32.totalorder %s11, 1
    %p138 = por %p136, %p137
    %p139 = scmp.ne.s32.totalorder %s131, %s134
    %p140 = scmp.eq.s32.totalorder %s11, 0
    %p141 = por %p139, %p140
    %p142 = scmp.ne.s32.totalorder %s131, %s134
    %p143 = scmp.eq.s32.totalorder %s16, 1
    %p144 = por %p142, %p143
    %p145 = scmp.ne.s32.totalorder %s134, %s135
    %p146 = scmp.eq.s32.totalorder %s16, 0
    %p147 = por %p145, %p146
    %p148 = scmp.ne.s32.totalorder %s134, %s135
    %p149 = scmp.eq.s32.totalorder %s17, 1
    %p150 = por %p148, %p149
    %p152 = scmp.ne.s32.totalorder %s135, %s151
    %p153 = scmp.eq.s32.totalorder %s17, 0
    %p154 = por %p152, %p153
    %p155 = scmp.le.s32.totalorder 1, %s11
    %p156 = scmp.lt.s32.totalorder %s11, 3
    %p157 = pnand %p155, %p156
    %p158 = pneg %p157
    // Predicated region
    $region9: #{_lambda_.1} parent=5 // pred_check
      _
    $region10: #{_lambda_.1} parent=5 // pred_check_branch
      %160 = sbr.rel (%p157) target = $region12
    $region11: #{_lambda_.1} parent=5 // pred_region
      %s161 = ssub.s32 %s11, 1
      // Predicated region
      $region13: #{_lambda_.1} parent=11 // pred_check
        %p162 = pneg %p58
      $region14: #{_lambda_.1} parent=11 // pred_check_branch
        %164 = sbr.rel (%p162) target = $region16
      $region15: #{_lambda_.1} parent=11 // pred_region
        _
      $region16: #{_lambda_.1} parent=11 // pred_fallthru
        _
      // Predicated region
      $region17: #{_lambda_.1} parent=11 // pred_check
        %p165 = pneg %p79
      $region18: #{_lambda_.1} parent=11 // pred_check_branch
        %167 = sbr.rel (%p165) target = $region20
      $region19: #{_lambda_.1} parent=11 // pred_region
        _
      $region20: #{_lambda_.1} parent=11 // pred_fallthru
        _
      // Predicated region
      $region21: #{_lambda_.1} parent=11 // pred_check
        %p168 = pneg %p100
      $region22: #{_lambda_.1} parent=11 // pred_check_branch
        %170 = sbr.rel (%p168) target = $region24
      $region23: #{_lambda_.1} parent=11 // pred_region
        _
      $region24: #{_lambda_.1} parent=11 // pred_fallthru
        _
      // Predicated region
      $region25: #{_lambda_.1} parent=11 // pred_check
        %p171 = pneg %p121
      $region26: #{_lambda_.1} parent=11 // pred_check_branch
        %173 = sbr.rel (%p171) target = $region28
      $region27: #{_lambda_.1} parent=11 // pred_region
        _
      $region28: #{_lambda_.1} parent=11 // pred_fallthru
        _
    $region12: #{_lambda_.1} parent=5 // pred_fallthru
      _
    %p174 = scmp.lt.s32.totalorder %s11, 2
    // Predicated region
    $region29: #{_lambda_.1} parent=5 // pred_check
      %p175 = pneg %p174
    $region30: #{_lambda_.1} parent=5 // pred_check_branch
      %177 = sbr.rel (%p175) target = $region32
    $region31: #{_lambda_.1} parent=5 // pred_region
      // Predicated region
      $region33: #{_lambda_.1} parent=31 // pred_check
        %p178 = pneg %p31
      $region34: #{_lambda_.1} parent=31 // pred_check_branch
        %180 = sbr.rel (%p178) target = $region36
      $region35: #{_lambda_.1} parent=31 // pred_region
        %p181 = scmp.lt.s32.totalorder %s11, 1
        %s182 = scalar_select %p181, %s11, 1
        %s183 = smul.addr %s182, 41
        %s184 = smul.addr %s183, 4
        %s185 = scalar_lea.vmem %s0, %s184
      $region36: #{_lambda_.1} parent=31 // pred_fallthru
        _
    $region32: #{_lambda_.1} parent=5 // pred_fallthru
      _
    %p186 = scmp.le.s32.totalorder 1, %s11
    %p187 = scmp.lt.s32.totalorder %s11, 3
    %p188 = pnand %p186, %p187
    %p189 = pneg %p188
    // Predicated region
    $region37: #{_lambda_.1} parent=5 // pred_check
      _
    $region38: #{_lambda_.1} parent=5 // pred_check_branch
      %191 = sbr.rel (%p188) target = $region40
    $region39: #{_lambda_.1} parent=5 // pred_region
      %s192 = ssub.s32 %s11, 1
      %p193 = scmp.lt.s32.totalorder %s16, 1
      %s194 = scalar_select %p193, %s16, 1
      %s195 = smul.addr %s194, 41
      %s196 = smul.addr %s195, 4
      %s197 = scalar_lea.vmem %s0, %s196
      %p198 = pneg %p37
      %p199 = pneg %p34
      %p200 = pneg %p58
      %p201 = pneg %p55
      %p202 = pneg %p79
      %p203 = pneg %p76
      %p204 = pneg %p100
      %p205 = pneg %p97
      %p206 = pneg %p121
      %p207 = pneg %p118
      %p208 = pneg %p147
      %p209 = pneg %p144
      %p210 = scmp.lt.s32.totalorder %s16, 1
      %s211 = scalar_select %p210, %s16, 1
      %s212 = smul.addr %s211, 32
      %s213 = smul.addr %s212, 8
      %s214 = scalar_lea.vmem %s5, %s213
      %p215 = scmp.lt.s32.totalorder %s16, 1
      %s216 = scalar_select %p215, %s16, 1
      %s217 = smul.addr %s216, 41
      %s218 = smul.addr %s217, 4
      %s219 = scalar_lea.vmem %s0, %s218
      %p220 = scmp.lt.s32.totalorder %s16, 1
      %s221 = scalar_select %p220, %s16, 1
      %s222 = smul.addr %s221, 32
      %s223 = smul.addr %s222, 8
      %s224 = scalar_lea.vmem %s5, %s223
      %v226 = vld [vmem:[%s219] sm:$0xf]
      %v227 = vld [vmem:[%s219 + $0x4] sm:$0xf]
      %v228 = vld [vmem:[%s219 + $0x8] sm:$0xf]
      %v229 = vld [vmem:[%s219 + $0xc] sm:$0xf]
      %v230 = vld [vmem:[%s219 + $0x10] sm:$0xf]
      %v231 = vld [vmem:[%s219 + $0x14] sm:$0xf]
      %v232 = vld [vmem:[%s219 + $0x18] sm:$0xf]
      %v233 = vld [vmem:[%s219 + $0x1c] sm:$0xf]
      %v234 = vld [vmem:[%s219 + $0x20] sm:$0xf]
      %v235 = vld [vmem:[%s219 + $0x24] sm:$0xf]
      %v236 = vld [vmem:[%s219 + $0x28] sm:$0xf]
      %v237 = vld [vmem:[%s219 + $0x2c] sm:$0xf]
      %v238 = vld [vmem:[%s219 + $0x30] sm:$0xf]
      %v239 = vld [vmem:[%s219 + $0x34] sm:$0xf]
      %v240 = vld [vmem:[%s219 + $0x38] sm:$0xf]
      %v241 = vld [vmem:[%s219 + $0x3c] sm:$0xf]
      %v242 = vld [vmem:[%s219 + $0x40] sm:$0xf]
      %v243 = vld [vmem:[%s219 + $0x44] sm:$0xf]
      %v244 = vld [vmem:[%s219 + $0x48] sm:$0xf]
      %v245 = vld [vmem:[%s219 + $0x4c] sm:$0xf]
      %v246 = vld [vmem:[%s219 + $0x50] sm:$0xf]
      %v247 = vld [vmem:[%s219 + $0x54] sm:$0xf]
      %v248 = vld [vmem:[%s219 + $0x58] sm:$0xf]
      %v249 = vld [vmem:[%s219 + $0x5c] sm:$0xf]
      %v250 = vld [vmem:[%s219 + $0x60] sm:$0xf]
      %v251 = vld [vmem:[%s219 + $0x64] sm:$0xf]
      %v252 = vld [vmem:[%s219 + $0x68] sm:$0xf]
      %v253 = vld [vmem:[%s219 + $0x6c] sm:$0xf]
      %v254 = vld [vmem:[%s219 + $0x70] sm:$0xf]
      %v255 = vld [vmem:[%s219 + $0x74] sm:$0xf]
      %v256 = vld [vmem:[%s219 + $0x78] sm:$0xf]
      %v257 = vld [vmem:[%s219 + $0x7c] sm:$0xf]
      %v258 = vld [vmem:[%s219 + $0x80] sm:$0xf]
      %v259 = vld [vmem:[%s219 + $0x84] sm:$0xf]
      %v260 = vld [vmem:[%s219 + $0x88] sm:$0xf]
      %v261 = vld [vmem:[%s219 + $0x8c] sm:$0xf]
      %v262 = vld [vmem:[%s1] sm:$0x3]
      %v263 = vld [vmem:[%s219 + $0x90] sm:$0x1]
      %s264 = scalar_lea.vmem %s1, 2
      %v265 = vld [vmem:[%s264] sm:$0x3]
      %v303 = vunpack.c.l.b16 %v226
      %v304 = vunpack.c.l.b16 %v227
      %v305 = vunpack.c.l.b16 %v228
      %v306 = vunpack.c.l.b16 %v229
      %v307 = vunpack.c.l.b16 %v230
      %v308 = vunpack.c.l.b16 %v231
      %v309 = vunpack.c.l.b16 %v232
      %v310 = vunpack.c.l.b16 %v233
      %v311 = vunpack.c.l.b16 %v234
      %v312 = vunpack.c.l.b16 %v235
      %v313 = vunpack.c.l.b16 %v236
      %v314 = vunpack.c.l.b16 %v237
      %v315 = vunpack.c.l.b16 %v238
      %v316 = vunpack.c.l.b16 %v239
      %v317 = vunpack.c.l.b16 %v240
      %v318 = vunpack.c.l.b16 %v241
      %v319 = vunpack.c.l.b16 %v242
      %v320 = vunpack.c.l.b16 %v243
      %v321 = vunpack.c.l.b16 %v244
      %v322 = vunpack.c.l.b16 %v245
      %v323 = vunpack.c.l.b16 %v246
      %v324 = vunpack.c.l.b16 %v247
      %v325 = vunpack.c.l.b16 %v248
      %v326 = vunpack.c.l.b16 %v249
      %v327 = vunpack.c.l.b16 %v250
      %v328 = vunpack.c.l.b16 %v251
      %v329 = vunpack.c.l.b16 %v252
      %v330 = vunpack.c.l.b16 %v253
      %v331 = vunpack.c.l.b16 %v254
      %v332 = vunpack.c.l.b16 %v255
      %v333 = vunpack.c.l.b16 %v256
      %v334 = vunpack.c.l.b16 %v257
      %v335 = vunpack.c.l.b16 %v258
      %v336 = vunpack.c.l.b16 %v259
      %v337 = vunpack.c.l.b16 %v260
      %v338 = vunpack.c.l.b16 %v261
      %v339 = vunpack.c.l.b16 %v263
      %v340 = vpack.c.b16 %v304, %v303
      %v341 = vpack.c.b16 %v306, %v305
      %v342 = vpack.c.b16 %v308, %v307
      %v343 = vpack.c.b16 %v310, %v309
      %v344 = vpack.c.b16 %v312, %v311
      %v345 = vpack.c.b16 %v314, %v313
      %v346 = vpack.c.b16 %v316, %v315
      %v347 = vpack.c.b16 %v318, %v317
      %v348 = vpack.c.b16 %v320, %v319
      %v349 = vpack.c.b16 %v322, %v321
      %v350 = vpack.c.b16 %v324, %v323
      %v351 = vpack.c.b16 %v326, %v325
      %v352 = vpack.c.b16 %v328, %v327
      %v353 = vpack.c.b16 %v330, %v329
      %v354 = vpack.c.b16 %v332, %v331
      %v355 = vpack.c.b16 %v334, %v333
      %v356 = vpack.c.b16 %v336, %v335
      %v357 = vpack.c.b16 %v338, %v337
      %v358 = vpack.c.b16 %v339, %v339
      %vm359 = vsmask.f32 7424
      %v361 = vshrl.u32 %v340, 16
      %v363 = vshll.u32 %v340, 16
      %v365 = vrot.slane %v363, 1
      %v366 = vor.u32 %v361, %v365
      %v368 = vshll.u32 %v341, 16
      %v370 = vrot.slane %v368, 1
      %v371 = vsel %vm359, %v366, %v370
      %v372 = vshrl.u32 %v341, 16
      %v374 = vor.u32 %v372, %v370
      %v376 = vshll.u32 %v342, 16
      %v378 = vrot.slane %v376, 1
      %v379 = vsel %vm359, %v374, %v378
      %v380 = vshrl.u32 %v342, 16
      %v382 = vor.u32 %v380, %v378
      %v384 = vshll.u32 %v343, 16
      %v386 = vrot.slane %v384, 1
      %v387 = vsel %vm359, %v382, %v386
      %v388 = vshrl.u32 %v343, 16
      %v390 = vor.u32 %v388, %v386
      %v392 = vshll.u32 %v344, 16
      %v394 = vrot.slane %v392, 1
      %v395 = vsel %vm359, %v390, %v394
      %v396 = vshrl.u32 %v344, 16
      %v398 = vor.u32 %v396, %v394
      %v400 = vshll.u32 %v345, 16
      %v402 = vrot.slane %v400, 1
      %v403 = vsel %vm359, %v398, %v402
      %v404 = vshrl.u32 %v345, 16
      %v406 = vor.u32 %v404, %v402
      %v408 = vshll.u32 %v346, 16
      %v410 = vrot.slane %v408, 1
      %v411 = vsel %vm359, %v406, %v410
      %v412 = vshrl.u32 %v346, 16
      %v414 = vor.u32 %v412, %v410
      %v416 = vshll.u32 %v347, 16
      %v418 = vrot.slane %v416, 1
      %v419 = vsel %vm359, %v414, %v418
      %v420 = vshrl.u32 %v347, 16
      %v422 = vor.u32 %v420, %v418
      %v424 = vshll.u32 %v348, 16
      %v426 = vrot.slane %v424, 1
      %v427 = vsel %vm359, %v422, %v426
      %v428 = vshrl.u32 %v348, 16
      %v430 = vor.u32 %v428, %v426
      %v432 = vshll.u32 %v349, 16
      %v434 = vrot.slane %v432, 1
      %v435 = vsel %vm359, %v430, %v434
      %v436 = vshrl.u32 %v349, 16
      %v438 = vor.u32 %v436, %v434
      %v440 = vshll.u32 %v350, 16
      %v442 = vrot.slane %v440, 1
      %v443 = vsel %vm359, %v438, %v442
      %v444 = vshrl.u32 %v350, 16
      %v446 = vor.u32 %v444, %v442
      %v448 = vshll.u32 %v351, 16
      %v450 = vrot.slane %v448, 1
      %v451 = vsel %vm359, %v446, %v450
      %v452 = vshrl.u32 %v351, 16
      %v454 = vor.u32 %v452, %v450
      %v456 = vshll.u32 %v352, 16
      %v458 = vrot.slane %v456, 1
      %v459 = vsel %vm359, %v454, %v458
      %v460 = vshrl.u32 %v352, 16
      %v462 = vor.u32 %v460, %v458
      %v464 = vshll.u32 %v353, 16
      %v466 = vrot.slane %v464, 1
      %v467 = vsel %vm359, %v462, %v466
      %v468 = vshrl.u32 %v353, 16
      %v470 = vor.u32 %v468, %v466
      %v472 = vshll.u32 %v354, 16
      %v474 = vrot.slane %v472, 1
      %v475 = vsel %vm359, %v470, %v474
      %v476 = vshrl.u32 %v354, 16
      %v478 = vor.u32 %v476, %v474
      %v480 = vshll.u32 %v355, 16
      %v482 = vrot.slane %v480, 1
      %v483 = vsel %vm359, %v478, %v482
      %v484 = vshrl.u32 %v355, 16
      %v486 = vor.u32 %v484, %v482
      %v488 = vshll.u32 %v356, 16
      %v490 = vrot.slane %v488, 1
      %v491 = vsel %vm359, %v486, %v490
      %v492 = vshrl.u32 %v356, 16
      %v494 = vor.u32 %v492, %v490
      %v496 = vshll.u32 %v357, 16
      %v498 = vrot.slane %v496, 1
      %v499 = vsel %vm359, %v494, %v498
      %v500 = vshrl.u32 %v357, 16
      %v502 = vor.u32 %v500, %v498
      %v504 = vshll.u32 %v358, 16
      %v506 = vrot.slane %v504, 1
      %v507 = vsel %vm359, %v502, %v506
      %vm508 = vcmask 31744
      %v510 = vsel %vm508, %v371, 0
      %v513 = vsel %vm508, %v379, 0
      %v516 = vsel %vm508, %v387, 0
      %v519 = vsel %vm508, %v395, 0
      %v522 = vsel %vm508, %v403, 0
      %v525 = vsel %vm508, %v411, 0
      %v528 = vsel %vm508, %v419, 0
      %v531 = vsel %vm508, %v427, 0
      %v534 = vsel %vm508, %v435, 0
      %v537 = vsel %vm508, %v443, 0
      %v540 = vsel %vm508, %v451, 0
      %v543 = vsel %vm508, %v459, 0
      %v546 = vsel %vm508, %v467, 0
      %v549 = vsel %vm508, %v475, 0
      %v552 = vsel %vm508, %v483, 0
      %v555 = vsel %vm508, %v491, 0
      %v558 = vsel %vm508, %v499, 0
      %v561 = vsel %vm508, %v507, 0
      %vm563 = vcmask 1041408
      %v565 = vsel %vm563, %v265, 0
      %567 = vmatprep.subr.bf16.mxu0 0
      %568 = vmatpush1.bf16.msra.mxu0 %v565
      %569 = vmatprep.subr.bf16.mxu0 0
      %570 = vmatpush1.bf16.msra.mxu0 0
      %571 = vmatprep.subr.bf16.mxu0 0
      %572 = vmatpush1.bf16.msra.mxu0 0
      %573 = vmatprep.subr.bf16.mxu0 0
      %574 = vmatpush1.bf16.msra.mxu0 0
      %575 = vmatprep.subr.bf16.mxu0 0
      %576 = vmatpush1.bf16.msra.mxu0 0
      %577 = vmatprep.subr.bf16.mxu0 0
      %578 = vmatpush1.bf16.msra.mxu0 0
      %579 = vmatprep.subr.bf16.mxu0 0
      %580 = vmatpush1.bf16.msra.mxu0 0
      %581 = vmatprep.subr.bf16.mxu0 0
      %582 = vmatpush1.bf16.msra.mxu0 0
      %583 = vmatprep.subr.bf16.mxu0 0
      %584 = vmatpush1.bf16.msra.mxu0 0
      %585 = vmatprep.subr.bf16.mxu0 0
      %586 = vmatpush1.bf16.msra.mxu0 0
      %587 = vmatprep.subr.bf16.mxu0 0
      %588 = vmatpush1.bf16.msra.mxu0 0
      %589 = vmatprep.subr.bf16.mxu0 0
      %590 = vmatpush1.bf16.msra.mxu0 0
      %591 = vmatprep.subr.bf16.mxu0 0
      %592 = vmatpush1.bf16.msra.mxu0 0
      %593 = vmatprep.subr.bf16.mxu0 0
      %594 = vmatpush1.bf16.msra.mxu0 0
      %595 = vmatprep.subr.bf16.mxu0 0
      %596 = vmatpush1.bf16.msra.mxu0 0
      %597 = vmatprep.subr.bf16.mxu0 0
      %598 = vmatpush1.bf16.msra.mxu0 0
      %599 = vmatprep.mubr.bf16.mxu0 0
      %600 = vmatmul.mubr.bf16.gmra.mrb[0].mxu0 %v510
      %v601 = vpop.f32.mrb[0].mxu0
      %v602 = vadd.f32 0.0, %v601
      %v603 = vpop.f32.mrb[0].mxu0
      %v604 = vpop.f32.mrb[0].mxu0
      %v605 = vadd.f32 0.0, %v604
      %v606 = vpop.f32.mrb[0].mxu0
      %607 = vmatprep.mubr.bf16.mxu0 0
      %608 = vmatmul.mubr.bf16.gmra.mrb[0].mxu0 %v513
      %v609 = vpop.f32.mrb[0].mxu0
      %v610 = vadd.f32 0.0, %v609
      %v611 = vpop.f32.mrb[0].mxu0
      %v612 = vpop.f32.mrb[0].mxu0
      %v613 = vadd.f32 0.0, %v612
      %v614 = vpop.f32.mrb[0].mxu0
      %615 = vmatprep.mubr.bf16.mxu0 0
      %616 = vmatmul.mubr.bf16.gmra.mrb[0].mxu0 %v516
      %v617 = vpop.f32.mrb[0].mxu0
      %v618 = vadd.f32 0.0, %v617
      %v619 = vpop.f32.mrb[0].mxu0
      %v620 = vpop.f32.mrb[0].mxu0
      %v621 = vadd.f32 0.0, %v620
      %v622 = vpop.f32.mrb[0].mxu0
      %623 = vmatprep.mubr.bf16.mxu0 0
      %624 = vmatmul.mubr.bf16.gmra.mrb[0].mxu0 %v519
      %v625 = vpop.f32.mrb[0].mxu0
      %v626 = vadd.f32 0.0, %v625
      %v627 = vpop.f32.mrb[0].mxu0
      %v628 = vpop.f32.mrb[0].mxu0
      %v629 = vadd.f32 0.0, %v628
      %v630 = vpop.f32.mrb[0].mxu0
      %631 = vmatprep.mubr.bf16.mxu0 0
      %632 = vmatmul.mubr.bf16.gmra.mrb[0].mxu0 %v522
      %v633 = vpop.f32.mrb[0].mxu0
      %v634 = vadd.f32 0.0, %v633
      %v635 = vpop.f32.mrb[0].mxu0
      %v636 = vpop.f32.mrb[0].mxu0
      %v637 = vadd.f32 0.0, %v636
      %v638 = vpop.f32.mrb[0].mxu0
      %639 = vmatprep.mubr.bf16.mxu0 0
      %640 = vmatmul.mubr.bf16.gmra.mrb[0].mxu0 %v525
      %v641 = vpop.f32.mrb[0].mxu0
      %v642 = vadd.f32 0.0, %v641
      %v643 = vpop.f32.mrb[0].mxu0
      %v644 = vpop.f32.mrb[0].mxu0
      %v645 = vadd.f32 0.0, %v644
      %v646 = vpop.f32.mrb[0].mxu0
      %647 = vmatprep.mubr.bf16.mxu0 0
      %648 = vmatmul.mubr.bf16.gmra.mrb[0].mxu0 %v528
      %v649 = vpop.f32.mrb[0].mxu0
      %v650 = vadd.f32 0.0, %v649
      %v651 = vpop.f32.mrb[0].mxu0
      %v652 = vpop.f32.mrb[0].mxu0
      %v653 = vadd.f32 0.0, %v652
      %v654 = vpop.f32.mrb[0].mxu0
      %655 = vmatprep.mubr.bf16.mxu0 0
      %656 = vmatmul.mubr.bf16.gmra.mrb[0].mxu0 %v531
      %v657 = vpop.f32.mrb[0].mxu0
      %v658 = vadd.f32 0.0, %v657
      %v659 = vpop.f32.mrb[0].mxu0
      %v660 = vpop.f32.mrb[0].mxu0
      %v661 = vadd.f32 0.0, %v660
      %v662 = vpop.f32.mrb[0].mxu0
      %663 = vmatprep.mubr.bf16.mxu0 0
      %664 = vmatmul.mubr.bf16.gmra.mrb[0].mxu0 %v534
      %v665 = vpop.f32.mrb[0].mxu0
      %v666 = vadd.f32 0.0, %v665
      %v667 = vpop.f32.mrb[0].mxu0
      %v668 = vpop.f32.mrb[0].mxu0
      %v669 = vadd.f32 0.0, %v668
      %v670 = vpop.f32.mrb[0].mxu0
      %671 = vmatprep.mubr.bf16.mxu0 0
      %672 = vmatmul.mubr.bf16.gmra.mrb[0].mxu0 %v537
      %v673 = vpop.f32.mrb[0].mxu0
      %v674 = vadd.f32 0.0, %v673
      %v675 = vpop.f32.mrb[0].mxu0
      %v676 = vpop.f32.mrb[0].mxu0
      %v677 = vadd.f32 0.0, %v676
      %v678 = vpop.f32.mrb[0].mxu0
      %679 = vmatprep.mubr.bf16.mxu0 0
      %680 = vmatmul.mubr.bf16.gmra.mrb[0].mxu0 %v540
      %v681 = vpop.f32.mrb[0].mxu0
      %v682 = vadd.f32 0.0, %v681
      %v683 = vpop.f32.mrb[0].mxu0
      %v684 = vpop.f32.mrb[0].mxu0
      %v685 = vadd.f32 0.0, %v684
      %v686 = vpop.f32.mrb[0].mxu0
      %687 = vmatprep.mubr.bf16.mxu0 0
      %688 = vmatmul.mubr.bf16.gmra.mrb[0].mxu0 %v543
      %v689 = vpop.f32.mrb[0].mxu0
      %v690 = vadd.f32 0.0, %v689
      %v691 = vpop.f32.mrb[0].mxu0
      %v692 = vpop.f32.mrb[0].mxu0
      %v693 = vadd.f32 0.0, %v692
      %v694 = vpop.f32.mrb[0].mxu0
      %695 = vmatprep.mubr.bf16.mxu0 0
      %696 = vmatmul.mubr.bf16.gmra.mrb[0].mxu0 %v546
      %v697 = vpop.f32.mrb[0].mxu0
      %v698 = vadd.f32 0.0, %v697
      %v699 = vpop.f32.mrb[0].mxu0
      %v700 = vpop.f32.mrb[0].mxu0
      %v701 = vadd.f32 0.0, %v700
      %v702 = vpop.f32.mrb[0].mxu0
      %703 = vmatprep.mubr.bf16.mxu0 0
      %704 = vmatmul.mubr.bf16.gmra.mrb[0].mxu0 %v549
      %v705 = vpop.f32.mrb[0].mxu0
      %v706 = vadd.f32 0.0, %v705
      %v707 = vpop.f32.mrb[0].mxu0
      %v708 = vpop.f32.mrb[0].mxu0
      %v709 = vadd.f32 0.0, %v708
      %v710 = vpop.f32.mrb[0].mxu0
      %711 = vmatprep.mubr.bf16.mxu0 0
      %712 = vmatmul.mubr.bf16.gmra.mrb[0].mxu0 %v552
      %v713 = vpop.f32.mrb[0].mxu0
      %v714 = vadd.f32 0.0, %v713
      %v715 = vpop.f32.mrb[0].mxu0
      %v716 = vpop.f32.mrb[0].mxu0
      %v717 = vadd.f32 0.0, %v716
      %v718 = vpop.f32.mrb[0].mxu0
      %719 = vmatprep.mubr.bf16.mxu0 0
      %720 = vmatmul.mubr.bf16.gmra.mrb[0].mxu0 %v555
      %v721 = vpop.f32.mrb[0].mxu0
      %v722 = vadd.f32 0.0, %v721
      %v723 = vpop.f32.mrb[0].mxu0
      %v724 = vpop.f32.mrb[0].mxu0
      %v725 = vadd.f32 0.0, %v724
      %v726 = vpop.f32.mrb[0].mxu0
      %727 = vmatprep.mubr.bf16.mxu0 0
      %728 = vmatmul.mubr.bf16.gmra.mrb[0].mxu0 %v558
      %v729 = vpop.f32.mrb[0].mxu0
      %v730 = vadd.f32 0.0, %v729
      %v731 = vpop.f32.mrb[0].mxu0
      %v732 = vpop.f32.mrb[0].mxu0
      %v733 = vadd.f32 0.0, %v732
      %v734 = vpop.f32.mrb[0].mxu0
      %735 = vmatprep.mubr.bf16.mxu0 0
      %736 = vmatmul.mubr.bf16.gmra.mrb[0].mxu0 %v561
      %v737 = vpop.f32.mrb[0].mxu0
      %v738 = vadd.f32 0.0, %v737
      %v739 = vpop.f32.mrb[0].mxu0
      %v740 = vpop.f32.mrb[0].mxu0
      %v741 = vadd.f32 0.0, %v740
      %v742 = vpop.f32.mrb[0].mxu0
      %743 = vdwg.mxu0
      %v744 = vsel %vm508, %v340, 0
      %v746 = vsel %vm508, %v341, 0
      %v748 = vsel %vm508, %v342, 0
      %v750 = vsel %vm508, %v343, 0
      %v752 = vsel %vm508, %v344, 0
      %v754 = vsel %vm508, %v345, 0
      %v756 = vsel %vm508, %v346, 0
      %v758 = vsel %vm508, %v347, 0
      %v760 = vsel %vm508, %v348, 0
      %v762 = vsel %vm508, %v349, 0
      %v764 = vsel %vm508, %v350, 0
      %v766 = vsel %vm508, %v351, 0
      %v768 = vsel %vm508, %v352, 0
      %v770 = vsel %vm508, %v353, 0
      %v772 = vsel %vm508, %v354, 0
      %v774 = vsel %vm508, %v355, 0
      %v776 = vsel %vm508, %v356, 0
      %v778 = vsel %vm508, %v357, 0
      %v781 = vsel %vm563, %v262, 0
      %783 = vmatprep.subr.bf16.mxu0 0
      %784 = vmatpush1.bf16.msra.mxu0 %v781
      %785 = vmatprep.subr.bf16.mxu0 0
      %786 = vmatpush1.bf16.msra.mxu0 0
      %787 = vmatprep.subr.bf16.mxu0 0
      %788 = vmatpush1.bf16.msra.mxu0 0
      %789 = vmatprep.subr.bf16.mxu0 0
      %790 = vmatpush1.bf16.msra.mxu0 0
      %791 = vmatprep.subr.bf16.mxu0 0
      %792 = vmatpush1.bf16.msra.mxu0 0
      %793 = vmatprep.subr.bf16.mxu0 0
      %794 = vmatpush1.bf16.msra.mxu0 0
      %795 = vmatprep.subr.bf16.mxu0 0
      %796 = vmatpush1.bf16.msra.mxu0 0
      %797 = vmatprep.subr.bf16.mxu0 0
      %798 = vmatpush1.bf16.msra.mxu0 0
      %799 = vmatprep.subr.bf16.mxu0 0
      %800 = vmatpush1.bf16.msra.mxu0 0
      %801 = vmatprep.subr.bf16.mxu0 0
      %802 = vmatpush1.bf16.msra.mxu0 0
      %803 = vmatprep.subr.bf16.mxu0 0
      %804 = vmatpush1.bf16.msra.mxu0 0
      %805 = vmatprep.subr.bf16.mxu0 0
      %806 = vmatpush1.bf16.msra.mxu0 0
      %807 = vmatprep.subr.bf16.mxu0 0
      %808 = vmatpush1.bf16.msra.mxu0 0
      %809 = vmatprep.subr.bf16.mxu0 0
      %810 = vmatpush1.bf16.msra.mxu0 0
      %811 = vmatprep.subr.bf16.mxu0 0
      %812 = vmatpush1.bf16.msra.mxu0 0
      %813 = vmatprep.subr.bf16.mxu0 0
      %814 = vmatpush1.bf16.msra.mxu0 0
      %815 = vmatprep.mubr.bf16.mxu0 0
      %816 = vmatmul.mubr.bf16.gmra.mrb[0].mxu0 %v744
      %v817 = vpop.f32.mrb[0].mxu0
      %v818 = vadd.f32 %v602, %v817
      %v819 = vpop.f32.mrb[0].mxu0
      %v820 = vpop.f32.mrb[0].mxu0
      %v821 = vadd.f32 %v605, %v820
      %v822 = vpop.f32.mrb[0].mxu0
      %823 = vmatprep.mubr.bf16.mxu0 0
      %824 = vmatmul.mubr.bf16.gmra.mrb[0].mxu0 %v746
      %v825 = vpop.f32.mrb[0].mxu0
      %v826 = vadd.f32 %v610, %v825
      %v827 = vpop.f32.mrb[0].mxu0
      %v828 = vpop.f32.mrb[0].mxu0
      %v829 = vadd.f32 %v613, %v828
      %v830 = vpop.f32.mrb[0].mxu0
      %831 = vmatprep.mubr.bf16.mxu0 0
      %832 = vmatmul.mubr.bf16.gmra.mrb[0].mxu0 %v748
      %v833 = vpop.f32.mrb[0].mxu0
      %v834 = vadd.f32 %v618, %v833
      %v835 = vpop.f32.mrb[0].mxu0
      %v836 = vpop.f32.mrb[0].mxu0
      %v837 = vadd.f32 %v621, %v836
      %v838 = vpop.f32.mrb[0].mxu0
      %839 = vmatprep.mubr.bf16.mxu0 0
      %840 = vmatmul.mubr.bf16.gmra.mrb[0].mxu0 %v750
      %v841 = vpop.f32.mrb[0].mxu0
      %v842 = vadd.f32 %v626, %v841
      %v843 = vpop.f32.mrb[0].mxu0
      %v844 = vpop.f32.mrb[0].mxu0
      %v845 = vadd.f32 %v629, %v844
      %v846 = vpop.f32.mrb[0].mxu0
      %847 = vmatprep.mubr.bf16.mxu0 0
      %848 = vmatmul.mubr.bf16.gmra.mrb[0].mxu0 %v752
      %v849 = vpop.f32.mrb[0].mxu0
      %v850 = vadd.f32 %v634, %v849
      %v851 = vpop.f32.mrb[0].mxu0
      %v852 = vpop.f32.mrb[0].mxu0
      %v853 = vadd.f32 %v637, %v852
      %v854 = vpop.f32.mrb[0].mxu0
      %855 = vmatprep.mubr.bf16.mxu0 0
      %856 = vmatmul.mubr.bf16.gmra.mrb[0].mxu0 %v754
      %v857 = vpop.f32.mrb[0].mxu0
      %v858 = vadd.f32 %v642, %v857
      %v859 = vpop.f32.mrb[0].mxu0
      %v860 = vpop.f32.mrb[0].mxu0
      %v861 = vadd.f32 %v645, %v860
      %v862 = vpop.f32.mrb[0].mxu0
      %863 = vmatprep.mubr.bf16.mxu0 0
      %864 = vmatmul.mubr.bf16.gmra.mrb[0].mxu0 %v756
      %v865 = vpop.f32.mrb[0].mxu0
      %v866 = vadd.f32 %v650, %v865
      %v867 = vpop.f32.mrb[0].mxu0
      %v868 = vpop.f32.mrb[0].mxu0
      %v869 = vadd.f32 %v653, %v868
      %v870 = vpop.f32.mrb[0].mxu0
      %871 = vmatprep.mubr.bf16.mxu0 0
      %872 = vmatmul.mubr.bf16.gmra.mrb[0].mxu0 %v758
      %v873 = vpop.f32.mrb[0].mxu0
      %v874 = vadd.f32 %v658, %v873
      %v875 = vpop.f32.mrb[0].mxu0
      %v876 = vpop.f32.mrb[0].mxu0
      %v877 = vadd.f32 %v661, %v876
      %v878 = vpop.f32.mrb[0].mxu0
      %879 = vmatprep.mubr.bf16.mxu0 0
      %880 = vmatmul.mubr.bf16.gmra.mrb[0].mxu0 %v760
      %v881 = vpop.f32.mrb[0].mxu0
      %v882 = vadd.f32 %v666, %v881
      %v883 = vpop.f32.mrb[0].mxu0
      %v884 = vpop.f32.mrb[0].mxu0
      %v885 = vadd.f32 %v669, %v884
      %v886 = vpop.f32.mrb[0].mxu0
      %887 = vmatprep.mubr.bf16.mxu0 0
      %888 = vmatmul.mubr.bf16.gmra.mrb[0].mxu0 %v762
      %v889 = vpop.f32.mrb[0].mxu0
      %v890 = vadd.f32 %v674, %v889
      %v891 = vpop.f32.mrb[0].mxu0
      %v892 = vpop.f32.mrb[0].mxu0
      %v893 = vadd.f32 %v677, %v892
      %v894 = vpop.f32.mrb[0].mxu0
      %895 = vmatprep.mubr.bf16.mxu0 0
      %896 = vmatmul.mubr.bf16.gmra.mrb[0].mxu0 %v764
      %v897 = vpop.f32.mrb[0].mxu0
      %v898 = vadd.f32 %v682, %v897
      %v899 = vpop.f32.mrb[0].mxu0
      %v900 = vpop.f32.mrb[0].mxu0
      %v901 = vadd.f32 %v685, %v900
      %v902 = vpop.f32.mrb[0].mxu0
      %903 = vmatprep.mubr.bf16.mxu0 0
      %904 = vmatmul.mubr.bf16.gmra.mrb[0].mxu0 %v766
      %v905 = vpop.f32.mrb[0].mxu0
      %v906 = vadd.f32 %v690, %v905
      %v907 = vpop.f32.mrb[0].mxu0
      %v908 = vpop.f32.mrb[0].mxu0
      %v909 = vadd.f32 %v693, %v908
      %v910 = vpop.f32.mrb[0].mxu0
      %911 = vmatprep.mubr.bf16.mxu0 0
      %912 = vmatmul.mubr.bf16.gmra.mrb[0].mxu0 %v768
      %v913 = vpop.f32.mrb[0].mxu0
      %v914 = vadd.f32 %v698, %v913
      %v915 = vpop.f32.mrb[0].mxu0
      %v916 = vpop.f32.mrb[0].mxu0
      %v917 = vadd.f32 %v701, %v916
      %v918 = vpop.f32.mrb[0].mxu0
      %919 = vmatprep.mubr.bf16.mxu0 0
      %920 = vmatmul.mubr.bf16.gmra.mrb[0].mxu0 %v770
      %v921 = vpop.f32.mrb[0].mxu0
      %v922 = vadd.f32 %v706, %v921
      %v923 = vpop.f32.mrb[0].mxu0
      %v924 = vpop.f32.mrb[0].mxu0
      %v925 = vadd.f32 %v709, %v924
      %v926 = vpop.f32.mrb[0].mxu0
      %927 = vmatprep.mubr.bf16.mxu0 0
      %928 = vmatmul.mubr.bf16.gmra.mrb[0].mxu0 %v772
      %v929 = vpop.f32.mrb[0].mxu0
      %v930 = vadd.f32 %v714, %v929
      %v931 = vpop.f32.mrb[0].mxu0
      %v932 = vpop.f32.mrb[0].mxu0
      %v933 = vadd.f32 %v717, %v932
      %v934 = vpop.f32.mrb[0].mxu0
      %935 = vmatprep.mubr.bf16.mxu0 0
      %936 = vmatmul.mubr.bf16.gmra.mrb[0].mxu0 %v774
      %v937 = vpop.f32.mrb[0].mxu0
      %v938 = vadd.f32 %v722, %v937
      %v939 = vpop.f32.mrb[0].mxu0
      %v940 = vpop.f32.mrb[0].mxu0
      %v941 = vadd.f32 %v725, %v940
      %v942 = vpop.f32.mrb[0].mxu0
      %943 = vmatprep.mubr.bf16.mxu0 0
      %944 = vmatmul.mubr.bf16.gmra.mrb[0].mxu0 %v776
      %v945 = vpop.f32.mrb[0].mxu0
      %v946 = vadd.f32 %v730, %v945
      %v947 = vpop.f32.mrb[0].mxu0
      %v948 = vpop.f32.mrb[0].mxu0
      %v949 = vadd.f32 %v733, %v948
      %v950 = vpop.f32.mrb[0].mxu0
      %951 = vmatprep.mubr.bf16.mxu0 0
      %952 = vmatmul.mubr.bf16.gmra.mrb[0].mxu0 %v778
      %v953 = vpop.f32.mrb[0].mxu0
      %v954 = vadd.f32 %v738, %v953
      %v955 = vpop.f32.mrb[0].mxu0
      %v956 = vpop.f32.mrb[0].mxu0
      %v957 = vadd.f32 %v741, %v956
      %v958 = vpop.f32.mrb[0].mxu0
      %959 = vdwg.mxu0
      %v960 = vld [vmem:[%s219] sm:$0xe]
      %s961 = scalar_lea.vmem %s1, 4
      %v962 = vld [vmem:[%s961] sm:$0x3]
      %v964 = vunpack.c.l.b16 %v960
      %v965 = vpack.c.b16 %v304, %v964
      %vm966 = vcmask 1046528
      %v967 = vrot.slane %v965, 1
      %v968 = vrot.slane %v341, 1
      %v969 = vsel %vm966, %v967, %v968
      %v970 = vrot.slane %v342, 1
      %v971 = vsel %vm966, %v968, %v970
      %v972 = vrot.slane %v343, 1
      %v973 = vsel %vm966, %v970, %v972
      %v974 = vrot.slane %v344, 1
      %v975 = vsel %vm966, %v972, %v974
      %v976 = vrot.slane %v345, 1
      %v977 = vsel %vm966, %v974, %v976
      %v978 = vrot.slane %v346, 1
      %v979 = vsel %vm966, %v976, %v978
      %v980 = vrot.slane %v347, 1
      %v981 = vsel %vm966, %v978, %v980
      %v982 = vrot.slane %v348, 1
      %v983 = vsel %vm966, %v980, %v982
      %v984 = vrot.slane %v349, 1
      %v985 = vsel %vm966, %v982, %v984
      %v986 = vrot.slane %v350, 1
      %v987 = vsel %vm966, %v984, %v986
      %v988 = vrot.slane %v351, 1
      %v989 = vsel %vm966, %v986, %v988
      %v990 = vrot.slane %v352, 1
      %v991 = vsel %vm966, %v988, %v990
      %v992 = vrot.slane %v353, 1
      %v993 = vsel %vm966, %v990, %v992
      %v994 = vrot.slane %v354, 1
      %v995 = vsel %vm966, %v992, %v994
      %v996 = vrot.slane %v355, 1
      %v997 = vsel %vm966, %v994, %v996
      %v998 = vrot.slane %v356, 1
      %v999 = vsel %vm966, %v996, %v998
      %v1000 = vrot.slane %v357, 1
      %v1001 = vsel %vm966, %v998, %v1000
      %v1002 = vrot.slane %v358, 1
      %v1003 = vsel %vm966, %v1000, %v1002
      %v1005 = vsel %vm508, %v969, 0
      %v1008 = vsel %vm508, %v971, 0
      %v1011 = vsel %vm508, %v973, 0
      %v1014 = vsel %vm508, %v975, 0
      %v1017 = vsel %vm508, %v977, 0
      %v1020 = vsel %vm508, %v979, 0
      %v1023 = vsel %vm508, %v981, 0
      %v1026 = vsel %vm508, %v983, 0
      %v1029 = vsel %vm508, %v985, 0
      %v1032 = vsel %vm508, %v987, 0
      %v1035 = vsel %vm508, %v989, 0
      %v1038 = vsel %vm508, %v991, 0
      %v1041 = vsel %vm508, %v993, 0
      %v1044 = vsel %vm508, %v995, 0
      %v1047 = vsel %vm508, %v997, 0
      %v1050 = vsel %vm508, %v999, 0
      %v1053 = vsel %vm508, %v1001, 0
      %v1056 = vsel %vm508, %v1003, 0
      %v1059 = vsel %vm563, %v962, 0
      %1061 = vmatprep.subr.bf16.mxu0 0
      %1062 = vmatpush1.bf16.msra.mxu0 %v1059
      %1063 = vmatprep.subr.bf16.mxu0 0
      %1064 = vmatpush1.bf16.msra.mxu0 0
      %1065 = vmatprep.subr.bf16.mxu0 0
      %1066 = vmatpush1.bf16.msra.mxu0 0
      %1067 = vmatprep.subr.bf16.mxu0 0
      %1068 = vmatpush1.bf16.msra.mxu0 0
      %1069 = vmatprep.subr.bf16.mxu0 0
      %1070 = vmatpush1.bf16.msra.mxu0 0
      %1071 = vmatprep.subr.bf16.mxu0 0
      %1072 = vmatpush1.bf16.msra.mxu0 0
      %1073 = vmatprep.subr.bf16.mxu0 0
      %1074 = vmatpush1.bf16.msra.mxu0 0
      %1075 = vmatprep.subr.bf16.mxu0 0
      %1076 = vmatpush1.bf16.msra.mxu0 0
      %1077 = vmatprep.subr.bf16.mxu0 0
      %1078 = vmatpush1.bf16.msra.mxu0 0
      %1079 = vmatprep.subr.bf16.mxu0 0
      %1080 = vmatpush1.bf16.msra.mxu0 0
      %1081 = vmatprep.subr.bf16.mxu0 0
      %1082 = vmatpush1.bf16.msra.mxu0 0
      %1083 = vmatprep.subr.bf16.mxu0 0
      %1084 = vmatpush1.bf16.msra.mxu0 0
      %1085 = vmatprep.subr.bf16.mxu0 0
      %1086 = vmatpush1.bf16.msra.mxu0 0
      %1087 = vmatprep.subr.bf16.mxu0 0
      %1088 = vmatpush1.bf16.msra.mxu0 0
      %1089 = vmatprep.subr.bf16.mxu0 0
      %1090 = vmatpush1.bf16.msra.mxu0 0
      %1091 = vmatprep.subr.bf16.mxu0 0
      %1092 = vmatpush1.bf16.msra.mxu0 0
      %1093 = vmatprep.mubr.bf16.mxu0 0
      %1094 = vmatmul.mubr.bf16.gmra.mrb[0].mxu0 %v1005
      %v1095 = vpop.f32.mrb[0].mxu0
      %v1096 = vadd.f32 0.0, %v1095
      %v1097 = vpop.f32.mrb[0].mxu0
      %v1098 = vpop.f32.mrb[0].mxu0
      %v1099 = vadd.f32 0.0, %v1098
      %v1100 = vpop.f32.mrb[0].mxu0
      %1101 = vmatprep.mubr.bf16.mxu0 0
      %1102 = vmatmul.mubr.bf16.gmra.mrb[0].mxu0 %v1008
      %v1103 = vpop.f32.mrb[0].mxu0
      %v1104 = vadd.f32 0.0, %v1103
      %v1105 = vpop.f32.mrb[0].mxu0
      %v1106 = vpop.f32.mrb[0].mxu0
      %v1107 = vadd.f32 0.0, %v1106
      %v1108 = vpop.f32.mrb[0].mxu0
      %1109 = vmatprep.mubr.bf16.mxu0 0
      %1110 = vmatmul.mubr.bf16.gmra.mrb[0].mxu0 %v1011
      %v1111 = vpop.f32.mrb[0].mxu0
      %v1112 = vadd.f32 0.0, %v1111
      %v1113 = vpop.f32.mrb[0].mxu0
      %v1114 = vpop.f32.mrb[0].mxu0
      %v1115 = vadd.f32 0.0, %v1114
      %v1116 = vpop.f32.mrb[0].mxu0
      %1117 = vmatprep.mubr.bf16.mxu0 0
      %1118 = vmatmul.mubr.bf16.gmra.mrb[0].mxu0 %v1014
      %v1119 = vpop.f32.mrb[0].mxu0
      %v1120 = vadd.f32 0.0, %v1119
      %v1121 = vpop.f32.mrb[0].mxu0
      %v1122 = vpop.f32.mrb[0].mxu0
      %v1123 = vadd.f32 0.0, %v1122
      %v1124 = vpop.f32.mrb[0].mxu0
      %1125 = vmatprep.mubr.bf16.mxu0 0
      %1126 = vmatmul.mubr.bf16.gmra.mrb[0].mxu0 %v1017
      %v1127 = vpop.f32.mrb[0].mxu0
      %v1128 = vadd.f32 0.0, %v1127
      %v1129 = vpop.f32.mrb[0].mxu0
      %v1130 = vpop.f32.mrb[0].mxu0
      %v1131 = vadd.f32 0.0, %v1130
      %v1132 = vpop.f32.mrb[0].mxu0
      %1133 = vmatprep.mubr.bf16.mxu0 0
      %1134 = vmatmul.mubr.bf16.gmra.mrb[0].mxu0 %v1020
      %v1135 = vpop.f32.mrb[0].mxu0
      %v1136 = vadd.f32 0.0, %v1135
      %v1137 = vpop.f32.mrb[0].mxu0
      %v1138 = vpop.f32.mrb[0].mxu0
      %v1139 = vadd.f32 0.0, %v1138
      %v1140 = vpop.f32.mrb[0].mxu0
      %1141 = vmatprep.mubr.bf16.mxu0 0
      %1142 = vmatmul.mubr.bf16.gmra.mrb[0].mxu0 %v1023
      %v1143 = vpop.f32.mrb[0].mxu0
      %v1144 = vadd.f32 0.0, %v1143
      %v1145 = vpop.f32.mrb[0].mxu0
      %v1146 = vpop.f32.mrb[0].mxu0
      %v1147 = vadd.f32 0.0, %v1146
      %v1148 = vpop.f32.mrb[0].mxu0
      %1149 = vmatprep.mubr.bf16.mxu0 0
      %1150 = vmatmul.mubr.bf16.gmra.mrb[0].mxu0 %v1026
      %v1151 = vpop.f32.mrb[0].mxu0
      %v1152 = vadd.f32 0.0, %v1151
      %v1153 = vpop.f32.mrb[0].mxu0
      %v1154 = vpop.f32.mrb[0].mxu0
      %v1155 = vadd.f32 0.0, %v1154
      %v1156 = vpop.f32.mrb[0].mxu0
      %1157 = vmatprep.mubr.bf16.mxu0 0
      %1158 = vmatmul.mubr.bf16.gmra.mrb[0].mxu0 %v1029
      %v1159 = vpop.f32.mrb[0].mxu0
      %v1160 = vadd.f32 0.0, %v1159
      %v1161 = vpop.f32.mrb[0].mxu0
      %v1162 = vpop.f32.mrb[0].mxu0
      %v1163 = vadd.f32 0.0, %v1162
      %v1164 = vpop.f32.mrb[0].mxu0
      %1165 = vmatprep.mubr.bf16.mxu0 0
      %1166 = vmatmul.mubr.bf16.gmra.mrb[0].mxu0 %v1032
      %v1167 = vpop.f32.mrb[0].mxu0
      %v1168 = vadd.f32 0.0, %v1167
      %v1169 = vpop.f32.mrb[0].mxu0
      %v1170 = vpop.f32.mrb[0].mxu0
      %v1171 = vadd.f32 0.0, %v1170
      %v1172 = vpop.f32.mrb[0].mxu0
      %1173 = vmatprep.mubr.bf16.mxu0 0
      %1174 = vmatmul.mubr.bf16.gmra.mrb[0].mxu0 %v1035
      %v1175 = vpop.f32.mrb[0].mxu0
      %v1176 = vadd.f32 0.0, %v1175
      %v1177 = vpop.f32.mrb[0].mxu0
      %v1178 = vpop.f32.mrb[0].mxu0
      %v1179 = vadd.f32 0.0, %v1178
      %v1180 = vpop.f32.mrb[0].mxu0
      %1181 = vmatprep.mubr.bf16.mxu0 0
      %1182 = vmatmul.mubr.bf16.gmra.mrb[0].mxu0 %v1038
      %v1183 = vpop.f32.mrb[0].mxu0
      %v1184 = vadd.f32 0.0, %v1183
      %v1185 = vpop.f32.mrb[0].mxu0
      %v1186 = vpop.f32.mrb[0].mxu0
      %v1187 = vadd.f32 0.0, %v1186
      %v1188 = vpop.f32.mrb[0].mxu0
      %1189 = vmatprep.mubr.bf16.mxu0 0
      %1190 = vmatmul.mubr.bf16.gmra.mrb[0].mxu0 %v1041
      %v1191 = vpop.f32.mrb[0].mxu0
      %v1192 = vadd.f32 0.0, %v1191
      %v1193 = vpop.f32.mrb[0].mxu0
      %v1194 = vpop.f32.mrb[0].mxu0
      %v1195 = vadd.f32 0.0, %v1194
      %v1196 = vpop.f32.mrb[0].mxu0
      %1197 = vmatprep.mubr.bf16.mxu0 0
      %1198 = vmatmul.mubr.bf16.gmra.mrb[0].mxu0 %v1044
      %v1199 = vpop.f32.mrb[0].mxu0
      %v1200 = vadd.f32 0.0, %v1199
      %v1201 = vpop.f32.mrb[0].mxu0
      %v1202 = vpop.f32.mrb[0].mxu0
      %v1203 = vadd.f32 0.0, %v1202
      %v1204 = vpop.f32.mrb[0].mxu0
      %1205 = vmatprep.mubr.bf16.mxu0 0
      %1206 = vmatmul.mubr.bf16.gmra.mrb[0].mxu0 %v1047
      %v1207 = vpop.f32.mrb[0].mxu0
      %v1208 = vadd.f32 0.0, %v1207
      %v1209 = vpop.f32.mrb[0].mxu0
      %v1210 = vpop.f32.mrb[0].mxu0
      %v1211 = vadd.f32 0.0, %v1210
      %v1212 = vpop.f32.mrb[0].mxu0
      %1213 = vmatprep.mubr.bf16.mxu0 0
      %1214 = vmatmul.mubr.bf16.gmra.mrb[0].mxu0 %v1050
      %v1215 = vpop.f32.mrb[0].mxu0
      %v1216 = vadd.f32 0.0, %v1215
      %v1217 = vpop.f32.mrb[0].mxu0
      %v1218 = vpop.f32.mrb[0].mxu0
      %v1219 = vadd.f32 0.0, %v1218
      %v1220 = vpop.f32.mrb[0].mxu0
      %1221 = vmatprep.mubr.bf16.mxu0 0
      %1222 = vmatmul.mubr.bf16.gmra.mrb[0].mxu0 %v1053
      %v1223 = vpop.f32.mrb[0].mxu0
      %v1224 = vadd.f32 0.0, %v1223
      %v1225 = vpop.f32.mrb[0].mxu0
      %v1226 = vpop.f32.mrb[0].mxu0
      %v1227 = vadd.f32 0.0, %v1226
      %v1228 = vpop.f32.mrb[0].mxu0
      %1229 = vmatprep.mubr.bf16.mxu0 0
      %1230 = vmatmul.mubr.bf16.gmra.mrb[0].mxu0 %v1056
      %v1231 = vpop.f32.mrb[0].mxu0
      %v1232 = vadd.f32 0.0, %v1231
      %v1233 = vpop.f32.mrb[0].mxu0
      %v1234 = vpop.f32.mrb[0].mxu0
      %v1235 = vadd.f32 0.0, %v1234
      %v1236 = vpop.f32.mrb[0].mxu0
      %1237 = vdwg.mxu0
      %v1238 = vadd.f32 %v818, %v1096
      %v1239 = vadd.f32 %v821, %v1099
      %v1240 = vadd.f32 %v826, %v1104
      %v1241 = vadd.f32 %v829, %v1107
      %v1242 = vadd.f32 %v834, %v1112
      %v1243 = vadd.f32 %v837, %v1115
      %v1244 = vadd.f32 %v842, %v1120
      %v1245 = vadd.f32 %v845, %v1123
      %v1246 = vadd.f32 %v850, %v1128
      %v1247 = vadd.f32 %v853, %v1131
      %v1248 = vadd.f32 %v858, %v1136
      %v1249 = vadd.f32 %v861, %v1139
      %v1250 = vadd.f32 %v866, %v1144
      %v1251 = vadd.f32 %v869, %v1147
      %v1252 = vadd.f32 %v874, %v1152
      %v1253 = vadd.f32 %v877, %v1155
      %v1254 = vadd.f32 %v882, %v1160
      %v1255 = vadd.f32 %v885, %v1163
      %v1256 = vadd.f32 %v890, %v1168
      %v1257 = vadd.f32 %v893, %v1171
      %v1258 = vadd.f32 %v898, %v1176
      %v1259 = vadd.f32 %v901, %v1179
      %v1260 = vadd.f32 %v906, %v1184
      %v1261 = vadd.f32 %v909, %v1187
      %v1262 = vadd.f32 %v914, %v1192
      %v1263 = vadd.f32 %v917, %v1195
      %v1264 = vadd.f32 %v922, %v1200
      %v1265 = vadd.f32 %v925, %v1203
      %v1266 = vadd.f32 %v930, %v1208
      %v1267 = vadd.f32 %v933, %v1211
      %v1268 = vadd.f32 %v938, %v1216
      %v1269 = vadd.f32 %v941, %v1219
      %v1270 = vadd.f32 %v946, %v1224
      %v1271 = vadd.f32 %v949, %v1227
      %v1272 = vadd.f32 %v954, %v1232
      %v1273 = vadd.f32 %v957, %v1235
      %v1274 = vld [vmem:[%s219 + $0x8] sm:$0xe]
      %v1275 = vld [vmem:[%s219 + $0xc] sm:$0xf]
      %v1276 = vld [vmem:[%s219 + $0x10] sm:$0xf]
      %v1277 = vld [vmem:[%s219 + $0x14] sm:$0xf]
      %v1278 = vld [vmem:[%s219 + $0x18] sm:$0xf]
      %v1279 = vld [vmem:[%s219 + $0x1c] sm:$0xf]
      %v1280 = vld [vmem:[%s219 + $0x20] sm:$0xf]
      %v1281 = vld [vmem:[%s219 + $0x24] sm:$0xf]
      %v1282 = vld [vmem:[%s219 + $0x28] sm:$0xf]
      %v1283 = vld [vmem:[%s219 + $0x2c] sm:$0xf]
      %v1284 = vld [vmem:[%s219 + $0x30] sm:$0xf]
      %v1285 = vld [vmem:[%s219 + $0x34] sm:$0xf]
      %v1286 = vld [vmem:[%s219 + $0x38] sm:$0xf]
      %v1287 = vld [vmem:[%s219 + $0x3c] sm:$0xf]
      %v1288 = vld [vmem:[%s219 + $0x40] sm:$0xf]
      %v1289 = vld [vmem:[%s219 + $0x44] sm:$0xf]
      %v1290 = vld [vmem:[%s219 + $0x48] sm:$0xf]
      %v1291 = vld [vmem:[%s219 + $0x4c] sm:$0xf]
      %v1292 = vld [vmem:[%s219 + $0x50] sm:$0xf]
      %v1293 = vld [vmem:[%s219 + $0x54] sm:$0xf]
      %v1294 = vld [vmem:[%s219 + $0x58] sm:$0xf]
      %v1295 = vld [vmem:[%s219 + $0x5c] sm:$0xf]
      %v1296 = vld [vmem:[%s219 + $0x60] sm:$0xf]
      %v1297 = vld [vmem:[%s219 + $0x64] sm:$0xf]
      %v1298 = vld [vmem:[%s219 + $0x68] sm:$0xf]
      %v1299 = vld [vmem:[%s219 + $0x6c] sm:$0xf]
      %v1300 = vld [vmem:[%s219 + $0x70] sm:$0xf]
      %v1301 = vld [vmem:[%s219 + $0x74] sm:$0xf]
      %v1302 = vld [vmem:[%s219 + $0x78] sm:$0xf]
      %v1303 = vld [vmem:[%s219 + $0x7c] sm:$0xf]
      %v1304 = vld [vmem:[%s219 + $0x80] sm:$0xf]
      %v1305 = vld [vmem:[%s219 + $0x84] sm:$0xf]
      %v1306 = vld [vmem:[%s219 + $0x88] sm:$0xf]
      %v1307 = vld [vmem:[%s219 + $0x8c] sm:$0xf]
      %v1308 = vld [vmem:[%s219 + $0x90] sm:$0xf]
      %v1309 = vld [vmem:[%s219 + $0x94] sm:$0xf]
      %v1310 = vld [vmem:[%s219 + $0x98] sm:$0x1]
      %s1311 = scalar_lea.vmem %s1, 6
      %v1312 = vld [vmem:[%s1311] sm:$0x3]
      %v1350 = vunpack.c.l.b16 %v1274
      %v1351 = vunpack.c.l.b16 %v1275
      %v1352 = vunpack.c.l.b16 %v1276
      %v1353 = vunpack.c.l.b16 %v1277
      %v1354 = vunpack.c.l.b16 %v1278
      %v1355 = vunpack.c.l.b16 %v1279
      %v1356 = vunpack.c.l.b16 %v1280
      %v1357 = vunpack.c.l.b16 %v1281
      %v1358 = vunpack.c.l.b16 %v1282
      %v1359 = vunpack.c.l.b16 %v1283
      %v1360 = vunpack.c.l.b16 %v1284
      %v1361 = vunpack.c.l.b16 %v1285
      %v1362 = vunpack.c.l.b16 %v1286
      %v1363 = vunpack.c.l.b16 %v1287
      %v1364 = vunpack.c.l.b16 %v1288
      %v1365 = vunpack.c.l.b16 %v1289
      %v1366 = vunpack.c.l.b16 %v1290
      %v1367 = vunpack.c.l.b16 %v1291
      %v1368 = vunpack.c.l.b16 %v1292
      %v1369 = vunpack.c.l.b16 %v1293
      %v1370 = vunpack.c.l.b16 %v1294
      %v1371 = vunpack.c.l.b16 %v1295
      %v1372 = vunpack.c.l.b16 %v1296
      %v1373 = vunpack.c.l.b16 %v1297
      %v1374 = vunpack.c.l.b16 %v1298
      %v1375 = vunpack.c.l.b16 %v1299
      %v1376 = vunpack.c.l.b16 %v1300
      %v1377 = vunpack.c.l.b16 %v1301
      %v1378 = vunpack.c.l.b16 %v1302
      %v1379 = vunpack.c.l.b16 %v1303
      %v1380 = vunpack.c.l.b16 %v1304
      %v1381 = vunpack.c.l.b16 %v1305
      %v1382 = vunpack.c.l.b16 %v1306
      %v1383 = vunpack.c.l.b16 %v1307
      %v1384 = vunpack.c.l.b16 %v1308
      %v1385 = vunpack.c.l.b16 %v1309
      %v1386 = vunpack.c.l.b16 %v1310
      %v1387 = vpack.c.b16 %v1351, %v1350
      %v1388 = vpack.c.b16 %v1353, %v1352
      %v1389 = vpack.c.b16 %v1355, %v1354
      %v1390 = vpack.c.b16 %v1357, %v1356
      %v1391 = vpack.c.b16 %v1359, %v1358
      %v1392 = vpack.c.b16 %v1361, %v1360
      %v1393 = vpack.c.b16 %v1363, %v1362
      %v1394 = vpack.c.b16 %v1365, %v1364
      %v1395 = vpack.c.b16 %v1367, %v1366
      %v1396 = vpack.c.b16 %v1369, %v1368
      %v1397 = vpack.c.b16 %v1371, %v1370
      %v1398 = vpack.c.b16 %v1373, %v1372
      %v1399 = vpack.c.b16 %v1375, %v1374
      %v1400 = vpack.c.b16 %v1377, %v1376
      %v1401 = vpack.c.b16 %v1379, %v1378
      %v1402 = vpack.c.b16 %v1381, %v1380
      %v1403 = vpack.c.b16 %v1383, %v1382
      %v1404 = vpack.c.b16 %v1385, %v1384
      %v1405 = vpack.c.b16 %v1386, %v1386
      %v1406 = vrot.slane %v1387, 1
      %v1407 = vrot.slane %v1388, 1
      %v1408 = vsel %vm966, %v1406, %v1407
      %v1409 = vrot.slane %v1389, 1
      %v1410 = vsel %vm966, %v1407, %v1409
      %v1411 = vrot.slane %v1390, 1
      %v1412 = vsel %vm966, %v1409, %v1411
      %v1413 = vrot.slane %v1391, 1
      %v1414 = vsel %vm966, %v1411, %v1413
      %v1415 = vrot.slane %v1392, 1
      %v1416 = vsel %vm966, %v1413, %v1415
      %v1417 = vrot.slane %v1393, 1
      %v1418 = vsel %vm966, %v1415, %v1417
      %v1419 = vrot.slane %v1394, 1
      %v1420 = vsel %vm966, %v1417, %v1419
      %v1421 = vrot.slane %v1395, 1
      %v1422 = vsel %vm966, %v1419, %v1421
      %v1423 = vrot.slane %v1396, 1
      %v1424 = vsel %vm966, %v1421, %v1423
      %v1425 = vrot.slane %v1397, 1
      %v1426 = vsel %vm966, %v1423, %v1425
      %v1427 = vrot.slane %v1398, 1
      %v1428 = vsel %vm966, %v1425, %v1427
      %v1429 = vrot.slane %v1399, 1
      %v1430 = vsel %vm966, %v1427, %v1429
      %v1431 = vrot.slane %v1400, 1
      %v1432 = vsel %vm966, %v1429, %v1431
      %v1433 = vrot.slane %v1401, 1
      %v1434 = vsel %vm966, %v1431, %v1433
      %v1435 = vrot.slane %v1402, 1
      %v1436 = vsel %vm966, %v1433, %v1435
      %v1437 = vrot.slane %v1403, 1
      %v1438 = vsel %vm966, %v1435, %v1437
      %v1439 = vrot.slane %v1404, 1
      %v1440 = vsel %vm966, %v1437, %v1439
      %v1441 = vrot.slane %v1405, 1
      %v1442 = vsel %vm966, %v1439, %v1441
      %v1444 = vsel %vm508, %v1408, 0
      %v1447 = vsel %vm508, %v1410, 0
      %v1450 = vsel %vm508, %v1412, 0
      %v1453 = vsel %vm508, %v1414, 0
      %v1456 = vsel %vm508, %v1416, 0
      %v1459 = vsel %vm508, %v1418, 0
      %v1462 = vsel %vm508, %v1420, 0
      %v1465 = vsel %vm508, %v1422, 0
      %v1468 = vsel %vm508, %v1424, 0
      %v1471 = vsel %vm508, %v1426, 0
      %v1474 = vsel %vm508, %v1428, 0
      %v1477 = vsel %vm508, %v1430, 0
      %v1480 = vsel %vm508, %v1432, 0
      %v1483 = vsel %vm508, %v1434, 0
      %v1486 = vsel %vm508, %v1436, 0
      %v1489 = vsel %vm508, %v1438, 0
      %v1492 = vsel %vm508, %v1440, 0
      %v1495 = vsel %vm508, %v1442, 0
      %v1498 = vsel %vm563, %v1312, 0
      %1500 = vmatprep.subr.bf16.mxu0 0
      %1501 = vmatpush1.bf16.msra.mxu0 %v1498
      %1502 = vmatprep.subr.bf16.mxu0 0
      %1503 = vmatpush1.bf16.msra.mxu0 0
      %1504 = vmatprep.subr.bf16.mxu0 0
      %1505 = vmatpush1.bf16.msra.mxu0 0
      %1506 = vmatprep.subr.bf16.mxu0 0
      %1507 = vmatpush1.bf16.msra.mxu0 0
      %1508 = vmatprep.subr.bf16.mxu0 0
      %1509 = vmatpush1.bf16.msra.mxu0 0
      %1510 = vmatprep.subr.bf16.mxu0 0
      %1511 = vmatpush1.bf16.msra.mxu0 0
      %1512 = vmatprep.subr.bf16.mxu0 0
      %1513 = vmatpush1.bf16.msra.mxu0 0
      %1514 = vmatprep.subr.bf16.mxu0 0
      %1515 = vmatpush1.bf16.msra.mxu0 0
      %1516 = vmatprep.subr.bf16.mxu0 0
      %1517 = vmatpush1.bf16.msra.mxu0 0
      %1518 = vmatprep.subr.bf16.mxu0 0
      %1519 = vmatpush1.bf16.msra.mxu0 0
      %1520 = vmatprep.subr.bf16.mxu0 0
      %1521 = vmatpush1.bf16.msra.mxu0 0
      %1522 = vmatprep.subr.bf16.mxu0 0
      %1523 = vmatpush1.bf16.msra.mxu0 0
      %1524 = vmatprep.subr.bf16.mxu0 0
      %1525 = vmatpush1.bf16.msra.mxu0 0
      %1526 = vmatprep.subr.bf16.mxu0 0
      %1527 = vmatpush1.bf16.msra.mxu0 0
      %1528 = vmatprep.subr.bf16.mxu0 0
      %1529 = vmatpush1.bf16.msra.mxu0 0
      %1530 = vmatprep.subr.bf16.mxu0 0
      %1531 = vmatpush1.bf16.msra.mxu0 0
      %1532 = vmatprep.mubr.bf16.mxu0 0
      %1533 = vmatmul.mubr.bf16.gmra.mrb[0].mxu0 %v1444
      %v1534 = vpop.f32.mrb[0].mxu0
      %v1535 = vadd.f32 0.0, %v1534
      %v1536 = vpop.f32.mrb[0].mxu0
      %v1537 = vpop.f32.mrb[0].mxu0
      %v1538 = vadd.f32 0.0, %v1537
      %v1539 = vpop.f32.mrb[0].mxu0
      %1540 = vmatprep.mubr.bf16.mxu0 0
      %1541 = vmatmul.mubr.bf16.gmra.mrb[0].mxu0 %v1447
      %v1542 = vpop.f32.mrb[0].mxu0
      %v1543 = vadd.f32 0.0, %v1542
      %v1544 = vpop.f32.mrb[0].mxu0
      %v1545 = vpop.f32.mrb[0].mxu0
      %v1546 = vadd.f32 0.0, %v1545
      %v1547 = vpop.f32.mrb[0].mxu0
      %1548 = vmatprep.mubr.bf16.mxu0 0
      %1549 = vmatmul.mubr.bf16.gmra.mrb[0].mxu0 %v1450
      %v1550 = vpop.f32.mrb[0].mxu0
      %v1551 = vadd.f32 0.0, %v1550
      %v1552 = vpop.f32.mrb[0].mxu0
      %v1553 = vpop.f32.mrb[0].mxu0
      %v1554 = vadd.f32 0.0, %v1553
      %v1555 = vpop.f32.mrb[0].mxu0
      %1556 = vmatprep.mubr.bf16.mxu0 0
      %1557 = vmatmul.mubr.bf16.gmra.mrb[0].mxu0 %v1453
      %v1558 = vpop.f32.mrb[0].mxu0
      %v1559 = vadd.f32 0.0, %v1558
      %v1560 = vpop.f32.mrb[0].mxu0
      %v1561 = vpop.f32.mrb[0].mxu0
      %v1562 = vadd.f32 0.0, %v1561
      %v1563 = vpop.f32.mrb[0].mxu0
      %1564 = vmatprep.mubr.bf16.mxu0 0
      %1565 = vmatmul.mubr.bf16.gmra.mrb[0].mxu0 %v1456
      %v1566 = vpop.f32.mrb[0].mxu0
      %v1567 = vadd.f32 0.0, %v1566
      %v1568 = vpop.f32.mrb[0].mxu0
      %v1569 = vpop.f32.mrb[0].mxu0
      %v1570 = vadd.f32 0.0, %v1569
      %v1571 = vpop.f32.mrb[0].mxu0
      %1572 = vmatprep.mubr.bf16.mxu0 0
      %1573 = vmatmul.mubr.bf16.gmra.mrb[0].mxu0 %v1459
      %v1574 = vpop.f32.mrb[0].mxu0
      %v1575 = vadd.f32 0.0, %v1574
      %v1576 = vpop.f32.mrb[0].mxu0
      %v1577 = vpop.f32.mrb[0].mxu0
      %v1578 = vadd.f32 0.0, %v1577
      %v1579 = vpop.f32.mrb[0].mxu0
      %1580 = vmatprep.mubr.bf16.mxu0 0
      %1581 = vmatmul.mubr.bf16.gmra.mrb[0].mxu0 %v1462
      %v1582 = vpop.f32.mrb[0].mxu0
      %v1583 = vadd.f32 0.0, %v1582
      %v1584 = vpop.f32.mrb[0].mxu0
      %v1585 = vpop.f32.mrb[0].mxu0
      %v1586 = vadd.f32 0.0, %v1585
      %v1587 = vpop.f32.mrb[0].mxu0
      %1588 = vmatprep.mubr.bf16.mxu0 0
      %1589 = vmatmul.mubr.bf16.gmra.mrb[0].mxu0 %v1465
      %v1590 = vpop.f32.mrb[0].mxu0
      %v1591 = vadd.f32 0.0, %v1590
      %v1592 = vpop.f32.mrb[0].mxu0
      %v1593 = vpop.f32.mrb[0].mxu0
      %v1594 = vadd.f32 0.0, %v1593
      %v1595 = vpop.f32.mrb[0].mxu0
      %1596 = vmatprep.mubr.bf16.mxu0 0
      %1597 = vmatmul.mubr.bf16.gmra.mrb[0].mxu0 %v1468
      %v1598 = vpop.f32.mrb[0].mxu0
      %v1599 = vadd.f32 0.0, %v1598
      %v1600 = vpop.f32.mrb[0].mxu0
      %v1601 = vpop.f32.mrb[0].mxu0
      %v1602 = vadd.f32 0.0, %v1601
      %v1603 = vpop.f32.mrb[0].mxu0
      %1604 = vmatprep.mubr.bf16.mxu0 0
      %1605 = vmatmul.mubr.bf16.gmra.mrb[0].mxu0 %v1471
      %v1606 = vpop.f32.mrb[0].mxu0
      %v1607 = vadd.f32 0.0, %v1606
      %v1608 = vpop.f32.mrb[0].mxu0
      %v1609 = vpop.f32.mrb[0].mxu0
      %v1610 = vadd.f32 0.0, %v1609
      %v1611 = vpop.f32.mrb[0].mxu0
      %1612 = vmatprep.mubr.bf16.mxu0 0
      %1613 = vmatmul.mubr.bf16.gmra.mrb[0].mxu0 %v1474
      %v1614 = vpop.f32.mrb[0].mxu0
      %v1615 = vadd.f32 0.0, %v1614
      %v1616 = vpop.f32.mrb[0].mxu0
      %v1617 = vpop.f32.mrb[0].mxu0
      %v1618 = vadd.f32 0.0, %v1617
      %v1619 = vpop.f32.mrb[0].mxu0
      %1620 = vmatprep.mubr.bf16.mxu0 0
      %1621 = vmatmul.mubr.bf16.gmra.mrb[0].mxu0 %v1477
      %v1622 = vpop.f32.mrb[0].mxu0
      %v1623 = vadd.f32 0.0, %v1622
      %v1624 = vpop.f32.mrb[0].mxu0
      %v1625 = vpop.f32.mrb[0].mxu0
      %v1626 = vadd.f32 0.0, %v1625
      %v1627 = vpop.f32.mrb[0].mxu0
      %1628 = vmatprep.mubr.bf16.mxu0 0
      %1629 = vmatmul.mubr.bf16.gmra.mrb[0].mxu0 %v1480
      %v1630 = vpop.f32.mrb[0].mxu0
      %v1631 = vadd.f32 0.0, %v1630
      %v1632 = vpop.f32.mrb[0].mxu0
      %v1633 = vpop.f32.mrb[0].mxu0
      %v1634 = vadd.f32 0.0, %v1633
      %v1635 = vpop.f32.mrb[0].mxu0
      %1636 = vmatprep.mubr.bf16.mxu0 0
      %1637 = vmatmul.mubr.bf16.gmra.mrb[0].mxu0 %v1483
      %v1638 = vpop.f32.mrb[0].mxu0
      %v1639 = vadd.f32 0.0, %v1638
      %v1640 = vpop.f32.mrb[0].mxu0
      %v1641 = vpop.f32.mrb[0].mxu0
      %v1642 = vadd.f32 0.0, %v1641
      %v1643 = vpop.f32.mrb[0].mxu0
      %1644 = vmatprep.mubr.bf16.mxu0 0
      %1645 = vmatmul.mubr.bf16.gmra.mrb[0].mxu0 %v1486
      %v1646 = vpop.f32.mrb[0].mxu0
      %v1647 = vadd.f32 0.0, %v1646
      %v1648 = vpop.f32.mrb[0].mxu0
      %v1649 = vpop.f32.mrb[0].mxu0
      %v1650 = vadd.f32 0.0, %v1649
      %v1651 = vpop.f32.mrb[0].mxu0
      %1652 = vmatprep.mubr.bf16.mxu0 0
      %1653 = vmatmul.mubr.bf16.gmra.mrb[0].mxu0 %v1489
      %v1654 = vpop.f32.mrb[0].mxu0
      %v1655 = vadd.f32 0.0, %v1654
      %v1656 = vpop.f32.mrb[0].mxu0
      %v1657 = vpop.f32.mrb[0].mxu0
      %v1658 = vadd.f32 0.0, %v1657
      %v1659 = vpop.f32.mrb[0].mxu0
      %1660 = vmatprep.mubr.bf16.mxu0 0
      %1661 = vmatmul.mubr.bf16.gmra.mrb[0].mxu0 %v1492
      %v1662 = vpop.f32.mrb[0].mxu0
      %v1663 = vadd.f32 0.0, %v1662
      %v1664 = vpop.f32.mrb[0].mxu0
      %v1665 = vpop.f32.mrb[0].mxu0
      %v1666 = vadd.f32 0.0, %v1665
      %v1667 = vpop.f32.mrb[0].mxu0
      %1668 = vmatprep.mubr.bf16.mxu0 0
      %1669 = vmatmul.mubr.bf16.gmra.mrb[0].mxu0 %v1495
      %v1670 = vpop.f32.mrb[0].mxu0
      %v1671 = vadd.f32 0.0, %v1670
      %v1672 = vpop.f32.mrb[0].mxu0
      %v1673 = vpop.f32.mrb[0].mxu0
      %v1674 = vadd.f32 0.0, %v1673
      %v1675 = vpop.f32.mrb[0].mxu0
      %1676 = vdwg.mxu0
      %v1677 = vadd.f32 %v1238, %v1535
      %v1678 = vadd.f32 %v1239, %v1538
      %v1679 = vadd.f32 %v1240, %v1543
      %v1680 = vadd.f32 %v1241, %v1546
      %v1681 = vadd.f32 %v1242, %v1551
      %v1682 = vadd.f32 %v1243, %v1554
      %v1683 = vadd.f32 %v1244, %v1559
      %v1684 = vadd.f32 %v1245, %v1562
      %v1685 = vadd.f32 %v1246, %v1567
      %v1686 = vadd.f32 %v1247, %v1570
      %v1687 = vadd.f32 %v1248, %v1575
      %v1688 = vadd.f32 %v1249, %v1578
      %v1689 = vadd.f32 %v1250, %v1583
      %v1690 = vadd.f32 %v1251, %v1586
      %v1691 = vadd.f32 %v1252, %v1591
      %v1692 = vadd.f32 %v1253, %v1594
      %v1693 = vadd.f32 %v1254, %v1599
      %v1694 = vadd.f32 %v1255, %v1602
      %v1695 = vadd.f32 %v1256, %v1607
      %v1696 = vadd.f32 %v1257, %v1610
      %v1697 = vadd.f32 %v1258, %v1615
      %v1698 = vadd.f32 %v1259, %v1618
      %v1699 = vadd.f32 %v1260, %v1623
      %v1700 = vadd.f32 %v1261, %v1626
      %v1701 = vadd.f32 %v1262, %v1631
      %v1702 = vadd.f32 %v1263, %v1634
      %v1703 = vadd.f32 %v1264, %v1639
      %v1704 = vadd.f32 %v1265, %v1642
      %v1705 = vadd.f32 %v1266, %v1647
      %v1706 = vadd.f32 %v1267, %v1650
      %v1707 = vadd.f32 %v1268, %v1655
      %v1708 = vadd.f32 %v1269, %v1658
      %v1709 = vadd.f32 %v1270, %v1663
      %v1710 = vadd.f32 %v1271, %v1666
      %v1711 = vadd.f32 %v1272, %v1671
      %v1712 = vadd.f32 %v1273, %v1674
      %v1713 = vld [vmem:[%s219 + $0x98] sm:$0x3]
      %s1714 = scalar_lea.vmem %s1, 8
      %v1715 = vld [vmem:[%s1714] sm:$0x3]
      %v1717 = vunpack.c.l.b16 %v1713
      %v1718 = vpack.c.b16 %v1717, %v1717
      %vm1719 = vsmask.f32 6400
      %v1721 = vshrl.u32 %v1387, 16
      %v1723 = vrot.slane %v1721, 1
      %v1724 = vshll.u32 %v1387, 16
      %v1726 = vrot.slane %v1724, 2
      %v1727 = vor.u32 %v1723, %v1726
      %v1729 = vshrl.u32 %v1388, 16
      %v1731 = vrot.slane %v1729, 1
      %v1732 = vshll.u32 %v1388, 16
      %v1734 = vrot.slane %v1732, 2
      %v1735 = vor.u32 %v1731, %v1734
      %v1736 = vsel %vm1719, %v1727, %v1735
      %v1738 = vshrl.u32 %v1389, 16
      %v1740 = vrot.slane %v1738, 1
      %v1741 = vshll.u32 %v1389, 16
      %v1743 = vrot.slane %v1741, 2
      %v1744 = vor.u32 %v1740, %v1743
      %v1745 = vsel %vm1719, %v1735, %v1744
      %v1747 = vshrl.u32 %v1390, 16
      %v1749 = vrot.slane %v1747, 1
      %v1750 = vshll.u32 %v1390, 16
      %v1752 = vrot.slane %v1750, 2
      %v1753 = vor.u32 %v1749, %v1752
      %v1754 = vsel %vm1719, %v1744, %v1753
      %v1756 = vshrl.u32 %v1391, 16
      %v1758 = vrot.slane %v1756, 1
      %v1759 = vshll.u32 %v1391, 16
      %v1761 = vrot.slane %v1759, 2
      %v1762 = vor.u32 %v1758, %v1761
      %v1763 = vsel %vm1719, %v1753, %v1762
      %v1765 = vshrl.u32 %v1392, 16
      %v1767 = vrot.slane %v1765, 1
      %v1768 = vshll.u32 %v1392, 16
      %v1770 = vrot.slane %v1768, 2
      %v1771 = vor.u32 %v1767, %v1770
      %v1772 = vsel %vm1719, %v1762, %v1771
      %v1774 = vshrl.u32 %v1393, 16
      %v1776 = vrot.slane %v1774, 1
      %v1777 = vshll.u32 %v1393, 16
      %v1779 = vrot.slane %v1777, 2
      %v1780 = vor.u32 %v1776, %v1779
      %v1781 = vsel %vm1719, %v1771, %v1780
      %v1783 = vshrl.u32 %v1394, 16
      %v1785 = vrot.slane %v1783, 1
      %v1786 = vshll.u32 %v1394, 16
      %v1788 = vrot.slane %v1786, 2
      %v1789 = vor.u32 %v1785, %v1788
      %v1790 = vsel %vm1719, %v1780, %v1789
      %v1792 = vshrl.u32 %v1395, 16
      %v1794 = vrot.slane %v1792, 1
      %v1795 = vshll.u32 %v1395, 16
      %v1797 = vrot.slane %v1795, 2
      %v1798 = vor.u32 %v1794, %v1797
      %v1799 = vsel %vm1719, %v1789, %v1798
      %v1801 = vshrl.u32 %v1396, 16
      %v1803 = vrot.slane %v1801, 1
      %v1804 = vshll.u32 %v1396, 16
      %v1806 = vrot.slane %v1804, 2
      %v1807 = vor.u32 %v1803, %v1806
      %v1808 = vsel %vm1719, %v1798, %v1807
      %v1810 = vshrl.u32 %v1397, 16
      %v1812 = vrot.slane %v1810, 1
      %v1813 = vshll.u32 %v1397, 16
      %v1815 = vrot.slane %v1813, 2
      %v1816 = vor.u32 %v1812, %v1815
      %v1817 = vsel %vm1719, %v1807, %v1816
      %v1819 = vshrl.u32 %v1398, 16
      %v1821 = vrot.slane %v1819, 1
      %v1822 = vshll.u32 %v1398, 16
      %v1824 = vrot.slane %v1822, 2
      %v1825 = vor.u32 %v1821, %v1824
      %v1826 = vsel %vm1719, %v1816, %v1825
      %v1828 = vshrl.u32 %v1399, 16
      %v1830 = vrot.slane %v1828, 1
      %v1831 = vshll.u32 %v1399, 16
      %v1833 = vrot.slane %v1831, 2
      %v1834 = vor.u32 %v1830, %v1833
      %v1835 = vsel %vm1719, %v1825, %v1834
      %v1837 = vshrl.u32 %v1400, 16
      %v1839 = vrot.slane %v1837, 1
      %v1840 = vshll.u32 %v1400, 16
      %v1842 = vrot.slane %v1840, 2
      %v1843 = vor.u32 %v1839, %v1842
      %v1844 = vsel %vm1719, %v1834, %v1843
      %v1846 = vshrl.u32 %v1401, 16
      %v1848 = vrot.slane %v1846, 1
      %v1849 = vshll.u32 %v1401, 16
      %v1851 = vrot.slane %v1849, 2
      %v1852 = vor.u32 %v1848, %v1851
      %v1853 = vsel %vm1719, %v1843, %v1852
      %v1855 = vshrl.u32 %v1402, 16
      %v1857 = vrot.slane %v1855, 1
      %v1858 = vshll.u32 %v1402, 16
      %v1860 = vrot.slane %v1858, 2
      %v1861 = vor.u32 %v1857, %v1860
      %v1862 = vsel %vm1719, %v1852, %v1861
      %v1864 = vshrl.u32 %v1403, 16
      %v1866 = vrot.slane %v1864, 1
      %v1867 = vshll.u32 %v1403, 16
      %v1869 = vrot.slane %v1867, 2
      %v1870 = vor.u32 %v1866, %v1869
      %v1871 = vsel %vm1719, %v1861, %v1870
      %v1873 = vshrl.u32 %v1404, 16
      %v1875 = vrot.slane %v1873, 1
      %v1876 = vshll.u32 %v1404, 16
      %v1878 = vrot.slane %v1876, 2
      %v1879 = vor.u32 %v1875, %v1878
      %v1880 = vsel %vm1719, %v1870, %v1879
      %v1882 = vshrl.u32 %v1718, 16
      %v1884 = vrot.slane %v1882, 1
      %v1885 = vshll.u32 %v1718, 16
      %v1887 = vrot.slane %v1885, 2
      %v1888 = vor.u32 %v1884, %v1887
      %v1889 = vsel %vm1719, %v1879, %v1888
      %v1891 = vsel %vm508, %v1736, 0
      %v1894 = vsel %vm508, %v1745, 0
      %v1897 = vsel %vm508, %v1754, 0
      %v1900 = vsel %vm508, %v1763, 0
      %v1903 = vsel %vm508, %v1772, 0
      %v1906 = vsel %vm508, %v1781, 0
      %v1909 = vsel %vm508, %v1790, 0
      %v1912 = vsel %vm508, %v1799, 0
      %v1915 = vsel %vm508, %v1808, 0
      %v1918 = vsel %vm508, %v1817, 0
      %v1921 = vsel %vm508, %v1826, 0
      %v1924 = vsel %vm508, %v1835, 0
      %v1927 = vsel %vm508, %v1844, 0
      %v1930 = vsel %vm508, %v1853, 0
      %v1933 = vsel %vm508, %v1862, 0
      %v1936 = vsel %vm508, %v1871, 0
      %v1939 = vsel %vm508, %v1880, 0
      %v1942 = vsel %vm508, %v1889, 0
      %v1945 = vsel %vm563, %v1715, 0
      %1947 = vmatprep.subr.bf16.mxu0 0
      %1948 = vmatpush1.bf16.msra.mxu0 %v1945
      %1949 = vmatprep.subr.bf16.mxu0 0
      %1950 = vmatpush1.bf16.msra.mxu0 0
      %1951 = vmatprep.subr.bf16.mxu0 0
      %1952 = vmatpush1.bf16.msra.mxu0 0
      %1953 = vmatprep.subr.bf16.mxu0 0
      %1954 = vmatpush1.bf16.msra.mxu0 0
      %1955 = vmatprep.subr.bf16.mxu0 0
      %1956 = vmatpush1.bf16.msra.mxu0 0
      %1957 = vmatprep.subr.bf16.mxu0 0
      %1958 = vmatpush1.bf16.msra.mxu0 0
      %1959 = vmatprep.subr.bf16.mxu0 0
      %1960 = vmatpush1.bf16.msra.mxu0 0
      %1961 = vmatprep.subr.bf16.mxu0 0
      %1962 = vmatpush1.bf16.msra.mxu0 0
      %1963 = vmatprep.subr.bf16.mxu0 0
      %1964 = vmatpush1.bf16.msra.mxu0 0
      %1965 = vmatprep.subr.bf16.mxu0 0
      %1966 = vmatpush1.bf16.msra.mxu0 0
      %1967 = vmatprep.subr.bf16.mxu0 0
      %1968 = vmatpush1.bf16.msra.mxu0 0
      %1969 = vmatprep.subr.bf16.mxu0 0
      %1970 = vmatpush1.bf16.msra.mxu0 0
      %1971 = vmatprep.subr.bf16.mxu0 0
      %1972 = vmatpush1.bf16.msra.mxu0 0
      %1973 = vmatprep.subr.bf16.mxu0 0
      %1974 = vmatpush1.bf16.msra.mxu0 0
      %1975 = vmatprep.subr.bf16.mxu0 0
      %1976 = vmatpush1.bf16.msra.mxu0 0
      %1977 = vmatprep.subr.bf16.mxu0 0
      %1978 = vmatpush1.bf16.msra.mxu0 0
      %1979 = vmatprep.mubr.bf16.mxu0 0
      %1980 = vmatmul.mubr.bf16.gmra.mrb[0].mxu0 %v1891
      %v1981 = vpop.f32.mrb[0].mxu0
      %v1982 = vadd.f32 0.0, %v1981
      %v1983 = vpop.f32.mrb[0].mxu0
      %v1984 = vpop.f32.mrb[0].mxu0
      %v1985 = vadd.f32 0.0, %v1984
      %v1986 = vpop.f32.mrb[0].mxu0
      %1987 = vmatprep.mubr.bf16.mxu0 0
      %1988 = vmatmul.mubr.bf16.gmra.mrb[0].mxu0 %v1894
      %v1989 = vpop.f32.mrb[0].mxu0
      %v1990 = vadd.f32 0.0, %v1989
      %v1991 = vpop.f32.mrb[0].mxu0
      %v1992 = vpop.f32.mrb[0].mxu0
      %v1993 = vadd.f32 0.0, %v1992
      %v1994 = vpop.f32.mrb[0].mxu0
      %1995 = vmatprep.mubr.bf16.mxu0 0
      %1996 = vmatmul.mubr.bf16.gmra.mrb[0].mxu0 %v1897
      %v1997 = vpop.f32.mrb[0].mxu0
      %v1998 = vadd.f32 0.0, %v1997
      %v1999 = vpop.f32.mrb[0].mxu0
      %v2000 = vpop.f32.mrb[0].mxu0
      %v2001 = vadd.f32 0.0, %v2000
      %v2002 = vpop.f32.mrb[0].mxu0
      %2003 = vmatprep.mubr.bf16.mxu0 0
      %2004 = vmatmul.mubr.bf16.gmra.mrb[0].mxu0 %v1900
      %v2005 = vpop.f32.mrb[0].mxu0
      %v2006 = vadd.f32 0.0, %v2005
      %v2007 = vpop.f32.mrb[0].mxu0
      %v2008 = vpop.f32.mrb[0].mxu0
      %v2009 = vadd.f32 0.0, %v2008
      %v2010 = vpop.f32.mrb[0].mxu0
      %2011 = vmatprep.mubr.bf16.mxu0 0
      %2012 = vmatmul.mubr.bf16.gmra.mrb[0].mxu0 %v1903
      %v2013 = vpop.f32.mrb[0].mxu0
      %v2014 = vadd.f32 0.0, %v2013
      %v2015 = vpop.f32.mrb[0].mxu0
      %v2016 = vpop.f32.mrb[0].mxu0
      %v2017 = vadd.f32 0.0, %v2016
      %v2018 = vpop.f32.mrb[0].mxu0
      %2019 = vmatprep.mubr.bf16.mxu0 0
      %2020 = vmatmul.mubr.bf16.gmra.mrb[0].mxu0 %v1906
      %v2021 = vpop.f32.mrb[0].mxu0
      %v2022 = vadd.f32 0.0, %v2021
      %v2023 = vpop.f32.mrb[0].mxu0
      %v2024 = vpop.f32.mrb[0].mxu0
      %v2025 = vadd.f32 0.0, %v2024
      %v2026 = vpop.f32.mrb[0].mxu0
      %2027 = vmatprep.mubr.bf16.mxu0 0
      %2028 = vmatmul.mubr.bf16.gmra.mrb[0].mxu0 %v1909
      %v2029 = vpop.f32.mrb[0].mxu0
      %v2030 = vadd.f32 0.0, %v2029
      %v2031 = vpop.f32.mrb[0].mxu0
      %v2032 = vpop.f32.mrb[0].mxu0
      %v2033 = vadd.f32 0.0, %v2032
      %v2034 = vpop.f32.mrb[0].mxu0
      %2035 = vmatprep.mubr.bf16.mxu0 0
      %2036 = vmatmul.mubr.bf16.gmra.mrb[0].mxu0 %v1912
      %v2037 = vpop.f32.mrb[0].mxu0
      %v2038 = vadd.f32 0.0, %v2037
      %v2039 = vpop.f32.mrb[0].mxu0
      %v2040 = vpop.f32.mrb[0].mxu0
      %v2041 = vadd.f32 0.0, %v2040
      %v2042 = vpop.f32.mrb[0].mxu0
      %2043 = vmatprep.mubr.bf16.mxu0 0
      %2044 = vmatmul.mubr.bf16.gmra.mrb[0].mxu0 %v1915
      %v2045 = vpop.f32.mrb[0].mxu0
      %v2046 = vadd.f32 0.0, %v2045
      %v2047 = vpop.f32.mrb[0].mxu0
      %v2048 = vpop.f32.mrb[0].mxu0
      %v2049 = vadd.f32 0.0, %v2048
      %v2050 = vpop.f32.mrb[0].mxu0
      %2051 = vmatprep.mubr.bf16.mxu0 0
      %2052 = vmatmul.mubr.bf16.gmra.mrb[0].mxu0 %v1918
      %v2053 = vpop.f32.mrb[0].mxu0
      %v2054 = vadd.f32 0.0, %v2053
      %v2055 = vpop.f32.mrb[0].mxu0
      %v2056 = vpop.f32.mrb[0].mxu0
      %v2057 = vadd.f32 0.0, %v2056
      %v2058 = vpop.f32.mrb[0].mxu0
      %2059 = vmatprep.mubr.bf16.mxu0 0
      %2060 = vmatmul.mubr.bf16.gmra.mrb[0].mxu0 %v1921
      %v2061 = vpop.f32.mrb[0].mxu0
      %v2062 = vadd.f32 0.0, %v2061
      %v2063 = vpop.f32.mrb[0].mxu0
      %v2064 = vpop.f32.mrb[0].mxu0
      %v2065 = vadd.f32 0.0, %v2064
      %v2066 = vpop.f32.mrb[0].mxu0
      %2067 = vmatprep.mubr.bf16.mxu0 0
      %2068 = vmatmul.mubr.bf16.gmra.mrb[0].mxu0 %v1924
      %v2069 = vpop.f32.mrb[0].mxu0
      %v2070 = vadd.f32 0.0, %v2069
      %v2071 = vpop.f32.mrb[0].mxu0
      %v2072 = vpop.f32.mrb[0].mxu0
      %v2073 = vadd.f32 0.0, %v2072
      %v2074 = vpop.f32.mrb[0].mxu0
      %2075 = vmatprep.mubr.bf16.mxu0 0
      %2076 = vmatmul.mubr.bf16.gmra.mrb[0].mxu0 %v1927
      %v2077 = vpop.f32.mrb[0].mxu0
      %v2078 = vadd.f32 0.0, %v2077
      %v2079 = vpop.f32.mrb[0].mxu0
      %v2080 = vpop.f32.mrb[0].mxu0
      %v2081 = vadd.f32 0.0, %v2080
      %v2082 = vpop.f32.mrb[0].mxu0
      %2083 = vmatprep.mubr.bf16.mxu0 0
      %2084 = vmatmul.mubr.bf16.gmra.mrb[0].mxu0 %v1930
      %v2085 = vpop.f32.mrb[0].mxu0
      %v2086 = vadd.f32 0.0, %v2085
      %v2087 = vpop.f32.mrb[0].mxu0
      %v2088 = vpop.f32.mrb[0].mxu0
      %v2089 = vadd.f32 0.0, %v2088
      %v2090 = vpop.f32.mrb[0].mxu0
      %2091 = vmatprep.mubr.bf16.mxu0 0
      %2092 = vmatmul.mubr.bf16.gmra.mrb[0].mxu0 %v1933
      %v2093 = vpop.f32.mrb[0].mxu0
      %v2094 = vadd.f32 0.0, %v2093
      %v2095 = vpop.f32.mrb[0].mxu0
      %v2096 = vpop.f32.mrb[0].mxu0
      %v2097 = vadd.f32 0.0, %v2096
      %v2098 = vpop.f32.mrb[0].mxu0
      %2099 = vmatprep.mubr.bf16.mxu0 0
      %2100 = vmatmul.mubr.bf16.gmra.mrb[0].mxu0 %v1936
      %v2101 = vpop.f32.mrb[0].mxu0
      %v2102 = vadd.f32 0.0, %v2101
      %v2103 = vpop.f32.mrb[0].mxu0
      %v2104 = vpop.f32.mrb[0].mxu0
      %v2105 = vadd.f32 0.0, %v2104
      %v2106 = vpop.f32.mrb[0].mxu0
      %2107 = vmatprep.mubr.bf16.mxu0 0
      %2108 = vmatmul.mubr.bf16.gmra.mrb[0].mxu0 %v1939
      %v2109 = vpop.f32.mrb[0].mxu0
      %v2110 = vadd.f32 0.0, %v2109
      %v2111 = vpop.f32.mrb[0].mxu0
      %v2112 = vpop.f32.mrb[0].mxu0
      %v2113 = vadd.f32 0.0, %v2112
      %v2114 = vpop.f32.mrb[0].mxu0
      %2115 = vmatprep.mubr.bf16.mxu0 0
      %2116 = vmatmul.mubr.bf16.gmra.mrb[0].mxu0 %v1942
      %v2117 = vpop.f32.mrb[0].mxu0
      %v2118 = vadd.f32 0.0, %v2117
      %v2119 = vpop.f32.mrb[0].mxu0
      %v2120 = vpop.f32.mrb[0].mxu0
      %v2121 = vadd.f32 0.0, %v2120
      %v2122 = vpop.f32.mrb[0].mxu0
      %2123 = vdwg.mxu0
      %v2124 = vadd.f32 %v1677, %v1982
      %v2125 = vadd.f32 %v1678, %v1985
      %v2126 = vadd.f32 %v1679, %v1990
      %v2127 = vadd.f32 %v1680, %v1993
      %v2128 = vadd.f32 %v1681, %v1998
      %v2129 = vadd.f32 %v1682, %v2001
      %v2130 = vadd.f32 %v1683, %v2006
      %v2131 = vadd.f32 %v1684, %v2009
      %v2132 = vadd.f32 %v1685, %v2014
      %v2133 = vadd.f32 %v1686, %v2017
      %v2134 = vadd.f32 %v1687, %v2022
      %v2135 = vadd.f32 %v1688, %v2025
      %v2136 = vadd.f32 %v1689, %v2030
      %v2137 = vadd.f32 %v1690, %v2033
      %v2138 = vadd.f32 %v1691, %v2038
      %v2139 = vadd.f32 %v1692, %v2041
      %v2140 = vadd.f32 %v1693, %v2046
      %v2141 = vadd.f32 %v1694, %v2049
      %v2142 = vadd.f32 %v1695, %v2054
      %v2143 = vadd.f32 %v1696, %v2057
      %v2144 = vadd.f32 %v1697, %v2062
      %v2145 = vadd.f32 %v1698, %v2065
      %v2146 = vadd.f32 %v1699, %v2070
      %v2147 = vadd.f32 %v1700, %v2073
      %v2148 = vadd.f32 %v1701, %v2078
      %v2149 = vadd.f32 %v1702, %v2081
      %v2150 = vadd.f32 %v1703, %v2086
      %v2151 = vadd.f32 %v1704, %v2089
      %v2152 = vadd.f32 %v1705, %v2094
      %v2153 = vadd.f32 %v1706, %v2097
      %v2154 = vadd.f32 %v1707, %v2102
      %v2155 = vadd.f32 %v1708, %v2105
      %v2156 = vadd.f32 %v1709, %v2110
      %v2157 = vadd.f32 %v1710, %v2113
      %v2158 = vadd.f32 %v1711, %v2118
      %v2159 = vadd.f32 %v1712, %v2121
      %v2160 = vld [vmem:[%s219 + $0x8] sm:$0xc]
      %s2161 = scalar_lea.vmem %s1, 10
      %v2162 = vld [vmem:[%s2161] sm:$0x3]
      %v2164 = vunpack.c.l.b16 %v2160
      %v2165 = vpack.c.b16 %v1351, %v2164
      %vm2166 = vcmask 1045504
      %v2167 = vrot.slane %v2165, 2
      %v2168 = vrot.slane %v1388, 2
      %v2169 = vsel %vm2166, %v2167, %v2168
      %v2170 = vrot.slane %v1389, 2
      %v2171 = vsel %vm2166, %v2168, %v2170
      %v2172 = vrot.slane %v1390, 2
      %v2173 = vsel %vm2166, %v2170, %v2172
      %v2174 = vrot.slane %v1391, 2
      %v2175 = vsel %vm2166, %v2172, %v2174
      %v2176 = vrot.slane %v1392, 2
      %v2177 = vsel %vm2166, %v2174, %v2176
      %v2178 = vrot.slane %v1393, 2
      %v2179 = vsel %vm2166, %v2176, %v2178
      %v2180 = vrot.slane %v1394, 2
      %v2181 = vsel %vm2166, %v2178, %v2180
      %v2182 = vrot.slane %v1395, 2
      %v2183 = vsel %vm2166, %v2180, %v2182
      %v2184 = vrot.slane %v1396, 2
      %v2185 = vsel %vm2166, %v2182, %v2184
      %v2186 = vrot.slane %v1397, 2
      %v2187 = vsel %vm2166, %v2184, %v2186
      %v2188 = vrot.slane %v1398, 2
      %v2189 = vsel %vm2166, %v2186, %v2188
      %v2190 = vrot.slane %v1399, 2
      %v2191 = vsel %vm2166, %v2188, %v2190
      %v2192 = vrot.slane %v1400, 2
      %v2193 = vsel %vm2166, %v2190, %v2192
      %v2194 = vrot.slane %v1401, 2
      %v2195 = vsel %vm2166, %v2192, %v2194
      %v2196 = vrot.slane %v1402, 2
      %v2197 = vsel %vm2166, %v2194, %v2196
      %v2198 = vrot.slane %v1403, 2
      %v2199 = vsel %vm2166, %v2196, %v2198
      %v2200 = vrot.slane %v1404, 2
      %v2201 = vsel %vm2166, %v2198, %v2200
      %v2202 = vrot.slane %v1718, 2
      %v2203 = vsel %vm2166, %v2200, %v2202
      %v2205 = vsel %vm508, %v2169, 0
      %v2208 = vsel %vm508, %v2171, 0
      %v2211 = vsel %vm508, %v2173, 0
      %v2214 = vsel %vm508, %v2175, 0
      %v2217 = vsel %vm508, %v2177, 0
      %v2220 = vsel %vm508, %v2179, 0
      %v2223 = vsel %vm508, %v2181, 0
      %v2226 = vsel %vm508, %v2183, 0
      %v2229 = vsel %vm508, %v2185, 0
      %v2232 = vsel %vm508, %v2187, 0
      %v2235 = vsel %vm508, %v2189, 0
      %v2238 = vsel %vm508, %v2191, 0
      %v2241 = vsel %vm508, %v2193, 0
      %v2244 = vsel %vm508, %v2195, 0
      %v2247 = vsel %vm508, %v2197, 0
      %v2250 = vsel %vm508, %v2199, 0
      %v2253 = vsel %vm508, %v2201, 0
      %v2256 = vsel %vm508, %v2203, 0
      %v2259 = vsel %vm563, %v2162, 0
      %2261 = vmatprep.subr.bf16.mxu0 0
      %2262 = vmatpush1.bf16.msra.mxu0 %v2259
      %2263 = vmatprep.subr.bf16.mxu0 0
      %2264 = vmatpush1.bf16.msra.mxu0 0
      %2265 = vmatprep.subr.bf16.mxu0 0
      %2266 = vmatpush1.bf16.msra.mxu0 0
      %2267 = vmatprep.subr.bf16.mxu0 0
      %2268 = vmatpush1.bf16.msra.mxu0 0
      %2269 = vmatprep.subr.bf16.mxu0 0
      %2270 = vmatpush1.bf16.msra.mxu0 0
      %2271 = vmatprep.subr.bf16.mxu0 0
      %2272 = vmatpush1.bf16.msra.mxu0 0
      %2273 = vmatprep.subr.bf16.mxu0 0
      %2274 = vmatpush1.bf16.msra.mxu0 0
      %2275 = vmatprep.subr.bf16.mxu0 0
      %2276 = vmatpush1.bf16.msra.mxu0 0
      %2277 = vmatprep.subr.bf16.mxu0 0
      %2278 = vmatpush1.bf16.msra.mxu0 0
      %2279 = vmatprep.subr.bf16.mxu0 0
      %2280 = vmatpush1.bf16.msra.mxu0 0
      %2281 = vmatprep.subr.bf16.mxu0 0
      %2282 = vmatpush1.bf16.msra.mxu0 0
      %2283 = vmatprep.subr.bf16.mxu0 0
      %2284 = vmatpush1.bf16.msra.mxu0 0
      %2285 = vmatprep.subr.bf16.mxu0 0
      %2286 = vmatpush1.bf16.msra.mxu0 0
      %2287 = vmatprep.subr.bf16.mxu0 0
      %2288 = vmatpush1.bf16.msra.mxu0 0
      %2289 = vmatprep.subr.bf16.mxu0 0
      %2290 = vmatpush1.bf16.msra.mxu0 0
      %2291 = vmatprep.subr.bf16.mxu0 0
      %2292 = vmatpush1.bf16.msra.mxu0 0
      %2293 = vmatprep.mubr.bf16.mxu0 0
      %2294 = vmatmul.mubr.bf16.gmra.mrb[0].mxu0 %v2205
      %v2295 = vpop.f32.mrb[0].mxu0
      %v2296 = vadd.f32 0.0, %v2295
      %v2297 = vpop.f32.mrb[0].mxu0
      %v2298 = vpop.f32.mrb[0].mxu0
      %v2299 = vadd.f32 0.0, %v2298
      %v2300 = vpop.f32.mrb[0].mxu0
      %2301 = vmatprep.mubr.bf16.mxu0 0
      %2302 = vmatmul.mubr.bf16.gmra.mrb[0].mxu0 %v2208
      %v2303 = vpop.f32.mrb[0].mxu0
      %v2304 = vadd.f32 0.0, %v2303
      %v2305 = vpop.f32.mrb[0].mxu0
      %v2306 = vpop.f32.mrb[0].mxu0
      %v2307 = vadd.f32 0.0, %v2306
      %v2308 = vpop.f32.mrb[0].mxu0
      %2309 = vmatprep.mubr.bf16.mxu0 0
      %2310 = vmatmul.mubr.bf16.gmra.mrb[0].mxu0 %v2211
      %v2311 = vpop.f32.mrb[0].mxu0
      %v2312 = vadd.f32 0.0, %v2311
      %v2313 = vpop.f32.mrb[0].mxu0
      %v2314 = vpop.f32.mrb[0].mxu0
      %v2315 = vadd.f32 0.0, %v2314
      %v2316 = vpop.f32.mrb[0].mxu0
      %2317 = vmatprep.mubr.bf16.mxu0 0
      %2318 = vmatmul.mubr.bf16.gmra.mrb[0].mxu0 %v2214
      %v2319 = vpop.f32.mrb[0].mxu0
      %v2320 = vadd.f32 0.0, %v2319
      %v2321 = vpop.f32.mrb[0].mxu0
      %v2322 = vpop.f32.mrb[0].mxu0
      %v2323 = vadd.f32 0.0, %v2322
      %v2324 = vpop.f32.mrb[0].mxu0
      %2325 = vmatprep.mubr.bf16.mxu0 0
      %2326 = vmatmul.mubr.bf16.gmra.mrb[0].mxu0 %v2217
      %v2327 = vpop.f32.mrb[0].mxu0
      %v2328 = vadd.f32 0.0, %v2327
      %v2329 = vpop.f32.mrb[0].mxu0
      %v2330 = vpop.f32.mrb[0].mxu0
      %v2331 = vadd.f32 0.0, %v2330
      %v2332 = vpop.f32.mrb[0].mxu0
      %2333 = vmatprep.mubr.bf16.mxu0 0
      %2334 = vmatmul.mubr.bf16.gmra.mrb[0].mxu0 %v2220
      %v2335 = vpop.f32.mrb[0].mxu0
      %v2336 = vadd.f32 0.0, %v2335
      %v2337 = vpop.f32.mrb[0].mxu0
      %v2338 = vpop.f32.mrb[0].mxu0
      %v2339 = vadd.f32 0.0, %v2338
      %v2340 = vpop.f32.mrb[0].mxu0
      %2341 = vmatprep.mubr.bf16.mxu0 0
      %2342 = vmatmul.mubr.bf16.gmra.mrb[0].mxu0 %v2223
      %v2343 = vpop.f32.mrb[0].mxu0
      %v2344 = vadd.f32 0.0, %v2343
      %v2345 = vpop.f32.mrb[0].mxu0
      %v2346 = vpop.f32.mrb[0].mxu0
      %v2347 = vadd.f32 0.0, %v2346
      %v2348 = vpop.f32.mrb[0].mxu0
      %2349 = vmatprep.mubr.bf16.mxu0 0
      %2350 = vmatmul.mubr.bf16.gmra.mrb[0].mxu0 %v2226
      %v2351 = vpop.f32.mrb[0].mxu0
      %v2352 = vadd.f32 0.0, %v2351
      %v2353 = vpop.f32.mrb[0].mxu0
      %v2354 = vpop.f32.mrb[0].mxu0
      %v2355 = vadd.f32 0.0, %v2354
      %v2356 = vpop.f32.mrb[0].mxu0
      %2357 = vmatprep.mubr.bf16.mxu0 0
      %2358 = vmatmul.mubr.bf16.gmra.mrb[0].mxu0 %v2229
      %v2359 = vpop.f32.mrb[0].mxu0
      %v2360 = vadd.f32 0.0, %v2359
      %v2361 = vpop.f32.mrb[0].mxu0
      %v2362 = vpop.f32.mrb[0].mxu0
      %v2363 = vadd.f32 0.0, %v2362
      %v2364 = vpop.f32.mrb[0].mxu0
      %2365 = vmatprep.mubr.bf16.mxu0 0
      %2366 = vmatmul.mubr.bf16.gmra.mrb[0].mxu0 %v2232
      %v2367 = vpop.f32.mrb[0].mxu0
      %v2368 = vadd.f32 0.0, %v2367
      %v2369 = vpop.f32.mrb[0].mxu0
      %v2370 = vpop.f32.mrb[0].mxu0
      %v2371 = vadd.f32 0.0, %v2370
      %v2372 = vpop.f32.mrb[0].mxu0
      %2373 = vmatprep.mubr.bf16.mxu0 0
      %2374 = vmatmul.mubr.bf16.gmra.mrb[0].mxu0 %v2235
      %v2375 = vpop.f32.mrb[0].mxu0
      %v2376 = vadd.f32 0.0, %v2375
      %v2377 = vpop.f32.mrb[0].mxu0
      %v2378 = vpop.f32.mrb[0].mxu0
      %v2379 = vadd.f32 0.0, %v2378
      %v2380 = vpop.f32.mrb[0].mxu0
      %2381 = vmatprep.mubr.bf16.mxu0 0
      %2382 = vmatmul.mubr.bf16.gmra.mrb[0].mxu0 %v2238
      %v2383 = vpop.f32.mrb[0].mxu0
      %v2384 = vadd.f32 0.0, %v2383
      %v2385 = vpop.f32.mrb[0].mxu0
      %v2386 = vpop.f32.mrb[0].mxu0
      %v2387 = vadd.f32 0.0, %v2386
      %v2388 = vpop.f32.mrb[0].mxu0
      %2389 = vmatprep.mubr.bf16.mxu0 0
      %2390 = vmatmul.mubr.bf16.gmra.mrb[0].mxu0 %v2241
      %v2391 = vpop.f32.mrb[0].mxu0
      %v2392 = vadd.f32 0.0, %v2391
      %v2393 = vpop.f32.mrb[0].mxu0
      %v2394 = vpop.f32.mrb[0].mxu0
      %v2395 = vadd.f32 0.0, %v2394
      %v2396 = vpop.f32.mrb[0].mxu0
      %2397 = vmatprep.mubr.bf16.mxu0 0
      %2398 = vmatmul.mubr.bf16.gmra.mrb[0].mxu0 %v2244
      %v2399 = vpop.f32.mrb[0].mxu0
      %v2400 = vadd.f32 0.0, %v2399
      %v2401 = vpop.f32.mrb[0].mxu0
      %v2402 = vpop.f32.mrb[0].mxu0
      %v2403 = vadd.f32 0.0, %v2402
      %v2404 = vpop.f32.mrb[0].mxu0
      %2405 = vmatprep.mubr.bf16.mxu0 0
      %2406 = vmatmul.mubr.bf16.gmra.mrb[0].mxu0 %v2247
      %v2407 = vpop.f32.mrb[0].mxu0
      %v2408 = vadd.f32 0.0, %v2407
      %v2409 = vpop.f32.mrb[0].mxu0
      %v2410 = vpop.f32.mrb[0].mxu0
      %v2411 = vadd.f32 0.0, %v2410
      %v2412 = vpop.f32.mrb[0].mxu0
      %2413 = vmatprep.mubr.bf16.mxu0 0
      %2414 = vmatmul.mubr.bf16.gmra.mrb[0].mxu0 %v2250
      %v2415 = vpop.f32.mrb[0].mxu0
      %v2416 = vadd.f32 0.0, %v2415
      %v2417 = vpop.f32.mrb[0].mxu0
      %v2418 = vpop.f32.mrb[0].mxu0
      %v2419 = vadd.f32 0.0, %v2418
      %v2420 = vpop.f32.mrb[0].mxu0
      %2421 = vmatprep.mubr.bf16.mxu0 0
      %2422 = vmatmul.mubr.bf16.gmra.mrb[0].mxu0 %v2253
      %v2423 = vpop.f32.mrb[0].mxu0
      %v2424 = vadd.f32 0.0, %v2423
      %v2425 = vpop.f32.mrb[0].mxu0
      %v2426 = vpop.f32.mrb[0].mxu0
      %v2427 = vadd.f32 0.0, %v2426
      %v2428 = vpop.f32.mrb[0].mxu0
      %2429 = vmatprep.mubr.bf16.mxu0 0
      %2430 = vmatmul.mubr.bf16.gmra.mrb[0].mxu0 %v2256
      %v2431 = vpop.f32.mrb[0].mxu0
      %v2432 = vadd.f32 0.0, %v2431
      %v2433 = vpop.f32.mrb[0].mxu0
      %v2434 = vpop.f32.mrb[0].mxu0
      %v2435 = vadd.f32 0.0, %v2434
      %v2436 = vpop.f32.mrb[0].mxu0
      %2437 = vdwg.mxu0
      %v2438 = vadd.f32 %v2124, %v2296
      %v2439 = vadd.f32 %v2125, %v2299
      %v2440 = vadd.f32 %v2126, %v2304
      %v2441 = vadd.f32 %v2127, %v2307
      %v2442 = vadd.f32 %v2128, %v2312
      %v2443 = vadd.f32 %v2129, %v2315
      %v2444 = vadd.f32 %v2130, %v2320
      %v2445 = vadd.f32 %v2131, %v2323
      %v2446 = vadd.f32 %v2132, %v2328
      %v2447 = vadd.f32 %v2133, %v2331
      %v2448 = vadd.f32 %v2134, %v2336
      %v2449 = vadd.f32 %v2135, %v2339
      %v2450 = vadd.f32 %v2136, %v2344
      %v2451 = vadd.f32 %v2137, %v2347
      %v2452 = vadd.f32 %v2138, %v2352
      %v2453 = vadd.f32 %v2139, %v2355
      %v2454 = vadd.f32 %v2140, %v2360
      %v2455 = vadd.f32 %v2141, %v2363
      %v2456 = vadd.f32 %v2142, %v2368
      %v2457 = vadd.f32 %v2143, %v2371
      %v2458 = vadd.f32 %v2144, %v2376
      %v2459 = vadd.f32 %v2145, %v2379
      %v2460 = vadd.f32 %v2146, %v2384
      %v2461 = vadd.f32 %v2147, %v2387
      %v2462 = vadd.f32 %v2148, %v2392
      %v2463 = vadd.f32 %v2149, %v2395
      %v2464 = vadd.f32 %v2150, %v2400
      %v2465 = vadd.f32 %v2151, %v2403
      %v2466 = vadd.f32 %v2152, %v2408
      %v2467 = vadd.f32 %v2153, %v2411
      %v2468 = vadd.f32 %v2154, %v2416
      %v2469 = vadd.f32 %v2155, %v2419
      %v2470 = vadd.f32 %v2156, %v2424
      %v2471 = vadd.f32 %v2157, %v2427
      %v2472 = vadd.f32 %v2158, %v2432
      %v2473 = vadd.f32 %v2159, %v2435
      %v2474 = vld [vmem:[%s219 + $0x10] sm:$0xc]
      %v2475 = vld [vmem:[%s219 + $0x14] sm:$0xf]
      %v2476 = vld [vmem:[%s219 + $0x18] sm:$0xf]
      %v2477 = vld [vmem:[%s219 + $0x1c] sm:$0xf]
      %v2478 = vld [vmem:[%s219 + $0x20] sm:$0xf]
      %v2479 = vld [vmem:[%s219 + $0x24] sm:$0xf]
      %v2480 = vld [vmem:[%s219 + $0x28] sm:$0xf]
      %v2481 = vld [vmem:[%s219 + $0x2c] sm:$0xf]
      %v2482 = vld [vmem:[%s219 + $0x30] sm:$0xf]
      %v2483 = vld [vmem:[%s219 + $0x34] sm:$0xf]
      %v2484 = vld [vmem:[%s219 + $0x38] sm:$0xf]
      %v2485 = vld [vmem:[%s219 + $0x3c] sm:$0xf]
      %v2486 = vld [vmem:[%s219 + $0x40] sm:$0xf]
      %v2487 = vld [vmem:[%s219 + $0x44] sm:$0xf]
      %v2488 = vld [vmem:[%s219 + $0x48] sm:$0xf]
      %v2489 = vld [vmem:[%s219 + $0x4c] sm:$0xf]
      %v2490 = vld [vmem:[%s219 + $0x50] sm:$0xf]
      %v2491 = vld [vmem:[%s219 + $0x54] sm:$0xf]
      %v2492 = vld [vmem:[%s219 + $0x58] sm:$0xf]
      %v2493 = vld [vmem:[%s219 + $0x5c] sm:$0xf]
      %v2494 = vld [vmem:[%s219 + $0x60] sm:$0xf]
      %v2495 = vld [vmem:[%s219 + $0x64] sm:$0xf]
      %v2496 = vld [vmem:[%s219 + $0x68] sm:$0xf]
      %v2497 = vld [vmem:[%s219 + $0x6c] sm:$0xf]
      %v2498 = vld [vmem:[%s219 + $0x70] sm:$0xf]
      %v2499 = vld [vmem:[%s219 + $0x74] sm:$0xf]
      %v2500 = vld [vmem:[%s219 + $0x78] sm:$0xf]
      %v2501 = vld [vmem:[%s219 + $0x7c] sm:$0xf]
      %v2502 = vld [vmem:[%s219 + $0x80] sm:$0xf]
      %v2503 = vld [vmem:[%s219 + $0x84] sm:$0xf]
      %v2504 = vld [vmem:[%s219 + $0x88] sm:$0xf]
      %v2505 = vld [vmem:[%s219 + $0x8c] sm:$0xf]
      %v2506 = vld [vmem:[%s219 + $0x90] sm:$0xf]
      %v2507 = vld [vmem:[%s219 + $0x94] sm:$0xf]
      %v2508 = vld [vmem:[%s219 + $0x98] sm:$0xf]
      %v2509 = vld [vmem:[%s219 + $0x9c] sm:$0xf]
      %v2510 = vld [vmem:[%s219 + $0xa0] sm:$0x3]
      %s2511 = scalar_lea.vmem %s1, 12
      %v2512 = vld [vmem:[%s2511] sm:$0x3]
      %v2550 = vunpack.c.l.b16 %v2474
      %v2551 = vunpack.c.l.b16 %v2475
      %v2552 = vunpack.c.l.b16 %v2476
      %v2553 = vunpack.c.l.b16 %v2477
      %v2554 = vunpack.c.l.b16 %v2478
      %v2555 = vunpack.c.l.b16 %v2479
      %v2556 = vunpack.c.l.b16 %v2480
      %v2557 = vunpack.c.l.b16 %v2481
      %v2558 = vunpack.c.l.b16 %v2482
      %v2559 = vunpack.c.l.b16 %v2483
      %v2560 = vunpack.c.l.b16 %v2484
      %v2561 = vunpack.c.l.b16 %v2485
      %v2562 = vunpack.c.l.b16 %v2486
      %v2563 = vunpack.c.l.b16 %v2487
      %v2564 = vunpack.c.l.b16 %v2488
      %v2565 = vunpack.c.l.b16 %v2489
      %v2566 = vunpack.c.l.b16 %v2490
      %v2567 = vunpack.c.l.b16 %v2491
      %v2568 = vunpack.c.l.b16 %v2492
      %v2569 = vunpack.c.l.b16 %v2493
      %v2570 = vunpack.c.l.b16 %v2494
      %v2571 = vunpack.c.l.b16 %v2495
      %v2572 = vunpack.c.l.b16 %v2496
      %v2573 = vunpack.c.l.b16 %v2497
      %v2574 = vunpack.c.l.b16 %v2498
      %v2575 = vunpack.c.l.b16 %v2499
      %v2576 = vunpack.c.l.b16 %v2500
      %v2577 = vunpack.c.l.b16 %v2501
      %v2578 = vunpack.c.l.b16 %v2502
      %v2579 = vunpack.c.l.b16 %v2503
      %v2580 = vunpack.c.l.b16 %v2504
      %v2581 = vunpack.c.l.b16 %v2505
      %v2582 = vunpack.c.l.b16 %v2506
      %v2583 = vunpack.c.l.b16 %v2507
      %v2584 = vunpack.c.l.b16 %v2508
      %v2585 = vunpack.c.l.b16 %v2509
      %v2586 = vunpack.c.l.b16 %v2510
      %v2587 = vpack.c.b16 %v2551, %v2550
      %v2588 = vpack.c.b16 %v2553, %v2552
      %v2589 = vpack.c.b16 %v2555, %v2554
      %v2590 = vpack.c.b16 %v2557, %v2556
      %v2591 = vpack.c.b16 %v2559, %v2558
      %v2592 = vpack.c.b16 %v2561, %v2560
      %v2593 = vpack.c.b16 %v2563, %v2562
      %v2594 = vpack.c.b16 %v2565, %v2564
      %v2595 = vpack.c.b16 %v2567, %v2566
      %v2596 = vpack.c.b16 %v2569, %v2568
      %v2597 = vpack.c.b16 %v2571, %v2570
      %v2598 = vpack.c.b16 %v2573, %v2572
      %v2599 = vpack.c.b16 %v2575, %v2574
      %v2600 = vpack.c.b16 %v2577, %v2576
      %v2601 = vpack.c.b16 %v2579, %v2578
      %v2602 = vpack.c.b16 %v2581, %v2580
      %v2603 = vpack.c.b16 %v2583, %v2582
      %v2604 = vpack.c.b16 %v2585, %v2584
      %v2605 = vpack.c.b16 %v2586, %v2586
      %v2606 = vrot.slane %v2587, 2
      %v2607 = vrot.slane %v2588, 2
      %v2608 = vsel %vm2166, %v2606, %v2607
      %v2609 = vrot.slane %v2589, 2
      %v2610 = vsel %vm2166, %v2607, %v2609
      %v2611 = vrot.slane %v2590, 2
      %v2612 = vsel %vm2166, %v2609, %v2611
      %v2613 = vrot.slane %v2591, 2
      %v2614 = vsel %vm2166, %v2611, %v2613
      %v2615 = vrot.slane %v2592, 2
      %v2616 = vsel %vm2166, %v2613, %v2615
      %v2617 = vrot.slane %v2593, 2
      %v2618 = vsel %vm2166, %v2615, %v2617
      %v2619 = vrot.slane %v2594, 2
      %v2620 = vsel %vm2166, %v2617, %v2619
      %v2621 = vrot.slane %v2595, 2
      %v2622 = vsel %vm2166, %v2619, %v2621
      %v2623 = vrot.slane %v2596, 2
      %v2624 = vsel %vm2166, %v2621, %v2623
      %v2625 = vrot.slane %v2597, 2
      %v2626 = vsel %vm2166, %v2623, %v2625
      %v2627 = vrot.slane %v2598, 2
      %v2628 = vsel %vm2166, %v2625, %v2627
      %v2629 = vrot.slane %v2599, 2
      %v2630 = vsel %vm2166, %v2627, %v2629
      %v2631 = vrot.slane %v2600, 2
      %v2632 = vsel %vm2166, %v2629, %v2631
      %v2633 = vrot.slane %v2601, 2
      %v2634 = vsel %vm2166, %v2631, %v2633
      %v2635 = vrot.slane %v2602, 2
      %v2636 = vsel %vm2166, %v2633, %v2635
      %v2637 = vrot.slane %v2603, 2
      %v2638 = vsel %vm2166, %v2635, %v2637
      %v2639 = vrot.slane %v2604, 2
      %v2640 = vsel %vm2166, %v2637, %v2639
      %v2641 = vrot.slane %v2605, 2
      %v2642 = vsel %vm2166, %v2639, %v2641
      %v2644 = vsel %vm508, %v2608, 0
      %v2647 = vsel %vm508, %v2610, 0
      %v2650 = vsel %vm508, %v2612, 0
      %v2653 = vsel %vm508, %v2614, 0
      %v2656 = vsel %vm508, %v2616, 0
      %v2659 = vsel %vm508, %v2618, 0
      %v2662 = vsel %vm508, %v2620, 0
      %v2665 = vsel %vm508, %v2622, 0
      %v2668 = vsel %vm508, %v2624, 0
      %v2671 = vsel %vm508, %v2626, 0
      %v2674 = vsel %vm508, %v2628, 0
      %v2677 = vsel %vm508, %v2630, 0
      %v2680 = vsel %vm508, %v2632, 0
      %v2683 = vsel %vm508, %v2634, 0
      %v2686 = vsel %vm508, %v2636, 0
      %v2689 = vsel %vm508, %v2638, 0
      %v2692 = vsel %vm508, %v2640, 0
      %v2695 = vsel %vm508, %v2642, 0
      %v2698 = vsel %vm563, %v2512, 0
      %2700 = vmatprep.subr.bf16.mxu0 0
      %2701 = vmatpush1.bf16.msra.mxu0 %v2698
      %2702 = vmatprep.subr.bf16.mxu0 0
      %2703 = vmatpush1.bf16.msra.mxu0 0
      %2704 = vmatprep.subr.bf16.mxu0 0
      %2705 = vmatpush1.bf16.msra.mxu0 0
      %2706 = vmatprep.subr.bf16.mxu0 0
      %2707 = vmatpush1.bf16.msra.mxu0 0
      %2708 = vmatprep.subr.bf16.mxu0 0
      %2709 = vmatpush1.bf16.msra.mxu0 0
      %2710 = vmatprep.subr.bf16.mxu0 0
      %2711 = vmatpush1.bf16.msra.mxu0 0
      %2712 = vmatprep.subr.bf16.mxu0 0
      %2713 = vmatpush1.bf16.msra.mxu0 0
      %2714 = vmatprep.subr.bf16.mxu0 0
      %2715 = vmatpush1.bf16.msra.mxu0 0
      %2716 = vmatprep.subr.bf16.mxu0 0
      %2717 = vmatpush1.bf16.msra.mxu0 0
      %2718 = vmatprep.subr.bf16.mxu0 0
      %2719 = vmatpush1.bf16.msra.mxu0 0
      %2720 = vmatprep.subr.bf16.mxu0 0
      %2721 = vmatpush1.bf16.msra.mxu0 0
      %2722 = vmatprep.subr.bf16.mxu0 0
      %2723 = vmatpush1.bf16.msra.mxu0 0
      %2724 = vmatprep.subr.bf16.mxu0 0
      %2725 = vmatpush1.bf16.msra.mxu0 0
      %2726 = vmatprep.subr.bf16.mxu0 0
      %2727 = vmatpush1.bf16.msra.mxu0 0
      %2728 = vmatprep.subr.bf16.mxu0 0
      %2729 = vmatpush1.bf16.msra.mxu0 0
      %2730 = vmatprep.subr.bf16.mxu0 0
      %2731 = vmatpush1.bf16.msra.mxu0 0
      %2732 = vmatprep.mubr.bf16.mxu0 0
      %2733 = vmatmul.mubr.bf16.gmra.mrb[0].mxu0 %v2644
      %v2734 = vpop.f32.mrb[0].mxu0
      %v2735 = vadd.f32 0.0, %v2734
      %v2736 = vpop.f32.mrb[0].mxu0
      %v2737 = vpop.f32.mrb[0].mxu0
      %v2738 = vadd.f32 0.0, %v2737
      %v2739 = vpop.f32.mrb[0].mxu0
      %2740 = vmatprep.mubr.bf16.mxu0 0
      %2741 = vmatmul.mubr.bf16.gmra.mrb[0].mxu0 %v2647
      %v2742 = vpop.f32.mrb[0].mxu0
      %v2743 = vadd.f32 0.0, %v2742
      %v2744 = vpop.f32.mrb[0].mxu0
      %v2745 = vpop.f32.mrb[0].mxu0
      %v2746 = vadd.f32 0.0, %v2745
      %v2747 = vpop.f32.mrb[0].mxu0
      %2748 = vmatprep.mubr.bf16.mxu0 0
      %2749 = vmatmul.mubr.bf16.gmra.mrb[0].mxu0 %v2650
      %v2750 = vpop.f32.mrb[0].mxu0
      %v2751 = vadd.f32 0.0, %v2750
      %v2752 = vpop.f32.mrb[0].mxu0
      %v2753 = vpop.f32.mrb[0].mxu0
      %v2754 = vadd.f32 0.0, %v2753
      %v2755 = vpop.f32.mrb[0].mxu0
      %2756 = vmatprep.mubr.bf16.mxu0 0
      %2757 = vmatmul.mubr.bf16.gmra.mrb[0].mxu0 %v2653
      %v2758 = vpop.f32.mrb[0].mxu0
      %v2759 = vadd.f32 0.0, %v2758
      %v2760 = vpop.f32.mrb[0].mxu0
      %v2761 = vpop.f32.mrb[0].mxu0
      %v2762 = vadd.f32 0.0, %v2761
      %v2763 = vpop.f32.mrb[0].mxu0
      %2764 = vmatprep.mubr.bf16.mxu0 0
      %2765 = vmatmul.mubr.bf16.gmra.mrb[0].mxu0 %v2656
      %v2766 = vpop.f32.mrb[0].mxu0
      %v2767 = vadd.f32 0.0, %v2766
      %v2768 = vpop.f32.mrb[0].mxu0
      %v2769 = vpop.f32.mrb[0].mxu0
      %v2770 = vadd.f32 0.0, %v2769
      %v2771 = vpop.f32.mrb[0].mxu0
      %2772 = vmatprep.mubr.bf16.mxu0 0
      %2773 = vmatmul.mubr.bf16.gmra.mrb[0].mxu0 %v2659
      %v2774 = vpop.f32.mrb[0].mxu0
      %v2775 = vadd.f32 0.0, %v2774
      %v2776 = vpop.f32.mrb[0].mxu0
      %v2777 = vpop.f32.mrb[0].mxu0
      %v2778 = vadd.f32 0.0, %v2777
      %v2779 = vpop.f32.mrb[0].mxu0
      %2780 = vmatprep.mubr.bf16.mxu0 0
      %2781 = vmatmul.mubr.bf16.gmra.mrb[0].mxu0 %v2662
      %v2782 = vpop.f32.mrb[0].mxu0
      %v2783 = vadd.f32 0.0, %v2782
      %v2784 = vpop.f32.mrb[0].mxu0
      %v2785 = vpop.f32.mrb[0].mxu0
      %v2786 = vadd.f32 0.0, %v2785
      %v2787 = vpop.f32.mrb[0].mxu0
      %2788 = vmatprep.mubr.bf16.mxu0 0
      %2789 = vmatmul.mubr.bf16.gmra.mrb[0].mxu0 %v2665
      %v2790 = vpop.f32.mrb[0].mxu0
      %v2791 = vadd.f32 0.0, %v2790
      %v2792 = vpop.f32.mrb[0].mxu0
      %v2793 = vpop.f32.mrb[0].mxu0
      %v2794 = vadd.f32 0.0, %v2793
      %v2795 = vpop.f32.mrb[0].mxu0
      %2796 = vmatprep.mubr.bf16.mxu0 0
      %2797 = vmatmul.mubr.bf16.gmra.mrb[0].mxu0 %v2668
      %v2798 = vpop.f32.mrb[0].mxu0
      %v2799 = vadd.f32 0.0, %v2798
      %v2800 = vpop.f32.mrb[0].mxu0
      %v2801 = vpop.f32.mrb[0].mxu0
      %v2802 = vadd.f32 0.0, %v2801
      %v2803 = vpop.f32.mrb[0].mxu0
      %2804 = vmatprep.mubr.bf16.mxu0 0
      %2805 = vmatmul.mubr.bf16.gmra.mrb[0].mxu0 %v2671
      %v2806 = vpop.f32.mrb[0].mxu0
      %v2807 = vadd.f32 0.0, %v2806
      %v2808 = vpop.f32.mrb[0].mxu0
      %v2809 = vpop.f32.mrb[0].mxu0
      %v2810 = vadd.f32 0.0, %v2809
      %v2811 = vpop.f32.mrb[0].mxu0
      %2812 = vmatprep.mubr.bf16.mxu0 0
      %2813 = vmatmul.mubr.bf16.gmra.mrb[0].mxu0 %v2674
      %v2814 = vpop.f32.mrb[0].mxu0
      %v2815 = vadd.f32 0.0, %v2814
      %v2816 = vpop.f32.mrb[0].mxu0
      %v2817 = vpop.f32.mrb[0].mxu0
      %v2818 = vadd.f32 0.0, %v2817
      %v2819 = vpop.f32.mrb[0].mxu0
      %2820 = vmatprep.mubr.bf16.mxu0 0
      %2821 = vmatmul.mubr.bf16.gmra.mrb[0].mxu0 %v2677
      %v2822 = vpop.f32.mrb[0].mxu0
      %v2823 = vadd.f32 0.0, %v2822
      %v2824 = vpop.f32.mrb[0].mxu0
      %v2825 = vpop.f32.mrb[0].mxu0
      %v2826 = vadd.f32 0.0, %v2825
      %v2827 = vpop.f32.mrb[0].mxu0
      %2828 = vmatprep.mubr.bf16.mxu0 0
      %2829 = vmatmul.mubr.bf16.gmra.mrb[0].mxu0 %v2680
      %v2830 = vpop.f32.mrb[0].mxu0
      %v2831 = vadd.f32 0.0, %v2830
      %v2832 = vpop.f32.mrb[0].mxu0
      %v2833 = vpop.f32.mrb[0].mxu0
      %v2834 = vadd.f32 0.0, %v2833
      %v2835 = vpop.f32.mrb[0].mxu0
      %2836 = vmatprep.mubr.bf16.mxu0 0
      %2837 = vmatmul.mubr.bf16.gmra.mrb[0].mxu0 %v2683
      %v2838 = vpop.f32.mrb[0].mxu0
      %v2839 = vadd.f32 0.0, %v2838
      %v2840 = vpop.f32.mrb[0].mxu0
      %v2841 = vpop.f32.mrb[0].mxu0
      %v2842 = vadd.f32 0.0, %v2841
      %v2843 = vpop.f32.mrb[0].mxu0
      %2844 = vmatprep.mubr.bf16.mxu0 0
      %2845 = vmatmul.mubr.bf16.gmra.mrb[0].mxu0 %v2686
      %v2846 = vpop.f32.mrb[0].mxu0
      %v2847 = vadd.f32 0.0, %v2846
      %v2848 = vpop.f32.mrb[0].mxu0
      %v2849 = vpop.f32.mrb[0].mxu0
      %v2850 = vadd.f32 0.0, %v2849
      %v2851 = vpop.f32.mrb[0].mxu0
      %2852 = vmatprep.mubr.bf16.mxu0 0
      %2853 = vmatmul.mubr.bf16.gmra.mrb[0].mxu0 %v2689
      %v2854 = vpop.f32.mrb[0].mxu0
      %v2855 = vadd.f32 0.0, %v2854
      %v2856 = vpop.f32.mrb[0].mxu0
      %v2857 = vpop.f32.mrb[0].mxu0
      %v2858 = vadd.f32 0.0, %v2857
      %v2859 = vpop.f32.mrb[0].mxu0
      %2860 = vmatprep.mubr.bf16.mxu0 0
      %2861 = vmatmul.mubr.bf16.gmra.mrb[0].mxu0 %v2692
      %v2862 = vpop.f32.mrb[0].mxu0
      %v2863 = vadd.f32 0.0, %v2862
      %v2864 = vpop.f32.mrb[0].mxu0
      %v2865 = vpop.f32.mrb[0].mxu0
      %v2866 = vadd.f32 0.0, %v2865
      %v2867 = vpop.f32.mrb[0].mxu0
      %2868 = vmatprep.mubr.bf16.mxu0 0
      %2869 = vmatmul.mubr.bf16.gmra.mrb[0].mxu0 %v2695
      %v2870 = vpop.f32.mrb[0].mxu0
      %v2871 = vadd.f32 0.0, %v2870
      %v2872 = vpop.f32.mrb[0].mxu0
      %v2873 = vpop.f32.mrb[0].mxu0
      %v2874 = vadd.f32 0.0, %v2873
      %v2875 = vpop.f32.mrb[0].mxu0
      %2876 = vdwg.mxu0
      %v2877 = vadd.f32 %v2438, %v2735
      %v2878 = vadd.f32 %v2439, %v2738
      %v2879 = vadd.f32 %v2440, %v2743
      %v2880 = vadd.f32 %v2441, %v2746
      %v2881 = vadd.f32 %v2442, %v2751
      %v2882 = vadd.f32 %v2443, %v2754
      %v2883 = vadd.f32 %v2444, %v2759
      %v2884 = vadd.f32 %v2445, %v2762
      %v2885 = vadd.f32 %v2446, %v2767
      %v2886 = vadd.f32 %v2447, %v2770
      %v2887 = vadd.f32 %v2448, %v2775
      %v2888 = vadd.f32 %v2449, %v2778
      %v2889 = vadd.f32 %v2450, %v2783
      %v2890 = vadd.f32 %v2451, %v2786
      %v2891 = vadd.f32 %v2452, %v2791
      %v2892 = vadd.f32 %v2453, %v2794
      %v2893 = vadd.f32 %v2454, %v2799
      %v2894 = vadd.f32 %v2455, %v2802
      %v2895 = vadd.f32 %v2456, %v2807
      %v2896 = vadd.f32 %v2457, %v2810
      %v2897 = vadd.f32 %v2458, %v2815
      %v2898 = vadd.f32 %v2459, %v2818
      %v2899 = vadd.f32 %v2460, %v2823
      %v2900 = vadd.f32 %v2461, %v2826
      %v2901 = vadd.f32 %v2462, %v2831
      %v2902 = vadd.f32 %v2463, %v2834
      %v2903 = vadd.f32 %v2464, %v2839
      %v2904 = vadd.f32 %v2465, %v2842
      %v2905 = vadd.f32 %v2466, %v2847
      %v2906 = vadd.f32 %v2467, %v2850
      %v2907 = vadd.f32 %v2468, %v2855
      %v2908 = vadd.f32 %v2469, %v2858
      %v2909 = vadd.f32 %v2470, %v2863
      %v2910 = vadd.f32 %v2471, %v2866
      %v2911 = vadd.f32 %v2472, %v2871
      %v2912 = vadd.f32 %v2473, %v2874
      %v2913 = vld [vmem:[%s219 + $0xa0] sm:$0x7]
      %s2914 = scalar_lea.vmem %s1, 14
      %v2915 = vld [vmem:[%s2914] sm:$0x3]
      %v2917 = vunpack.c.l.b16 %v2913
      %v2918 = vpack.c.b16 %v2917, %v2917
      %vm2919 = vsmask.f32 5376
      %v2921 = vshrl.u32 %v2587, 16
      %v2923 = vrot.slane %v2921, 2
      %v2924 = vshll.u32 %v2587, 16
      %v2926 = vrot.slane %v2924, 3
      %v2927 = vor.u32 %v2923, %v2926
      %v2929 = vshrl.u32 %v2588, 16
      %v2931 = vrot.slane %v2929, 2
      %v2932 = vshll.u32 %v2588, 16
      %v2934 = vrot.slane %v2932, 3
      %v2935 = vor.u32 %v2931, %v2934
      %v2936 = vsel %vm2919, %v2927, %v2935
      %v2938 = vshrl.u32 %v2589, 16
      %v2940 = vrot.slane %v2938, 2
      %v2941 = vshll.u32 %v2589, 16
      %v2943 = vrot.slane %v2941, 3
      %v2944 = vor.u32 %v2940, %v2943
      %v2945 = vsel %vm2919, %v2935, %v2944
      %v2947 = vshrl.u32 %v2590, 16
      %v2949 = vrot.slane %v2947, 2
      %v2950 = vshll.u32 %v2590, 16
      %v2952 = vrot.slane %v2950, 3
      %v2953 = vor.u32 %v2949, %v2952
      %v2954 = vsel %vm2919, %v2944, %v2953
      %v2956 = vshrl.u32 %v2591, 16
      %v2958 = vrot.slane %v2956, 2
      %v2959 = vshll.u32 %v2591, 16
      %v2961 = vrot.slane %v2959, 3
      %v2962 = vor.u32 %v2958, %v2961
      %v2963 = vsel %vm2919, %v2953, %v2962
      %v2965 = vshrl.u32 %v2592, 16
      %v2967 = vrot.slane %v2965, 2
      %v2968 = vshll.u32 %v2592, 16
      %v2970 = vrot.slane %v2968, 3
      %v2971 = vor.u32 %v2967, %v2970
      %v2972 = vsel %vm2919, %v2962, %v2971
      %v2974 = vshrl.u32 %v2593, 16
      %v2976 = vrot.slane %v2974, 2
      %v2977 = vshll.u32 %v2593, 16
      %v2979 = vrot.slane %v2977, 3
      %v2980 = vor.u32 %v2976, %v2979
      %v2981 = vsel %vm2919, %v2971, %v2980
      %v2983 = vshrl.u32 %v2594, 16
      %v2985 = vrot.slane %v2983, 2
      %v2986 = vshll.u32 %v2594, 16
      %v2988 = vrot.slane %v2986, 3
      %v2989 = vor.u32 %v2985, %v2988
      %v2990 = vsel %vm2919, %v2980, %v2989
      %v2992 = vshrl.u32 %v2595, 16
      %v2994 = vrot.slane %v2992, 2
      %v2995 = vshll.u32 %v2595, 16
      %v2997 = vrot.slane %v2995, 3
      %v2998 = vor.u32 %v2994, %v2997
      %v2999 = vsel %vm2919, %v2989, %v2998
      %v3001 = vshrl.u32 %v2596, 16
      %v3003 = vrot.slane %v3001, 2
      %v3004 = vshll.u32 %v2596, 16
      %v3006 = vrot.slane %v3004, 3
      %v3007 = vor.u32 %v3003, %v3006
      %v3008 = vsel %vm2919, %v2998, %v3007
      %v3010 = vshrl.u32 %v2597, 16
      %v3012 = vrot.slane %v3010, 2
      %v3013 = vshll.u32 %v2597, 16
      %v3015 = vrot.slane %v3013, 3
      %v3016 = vor.u32 %v3012, %v3015
      %v3017 = vsel %vm2919, %v3007, %v3016
      %v3019 = vshrl.u32 %v2598, 16
      %v3021 = vrot.slane %v3019, 2
      %v3022 = vshll.u32 %v2598, 16
      %v3024 = vrot.slane %v3022, 3
      %v3025 = vor.u32 %v3021, %v3024
      %v3026 = vsel %vm2919, %v3016, %v3025
      %v3028 = vshrl.u32 %v2599, 16
      %v3030 = vrot.slane %v3028, 2
      %v3031 = vshll.u32 %v2599, 16
      %v3033 = vrot.slane %v3031, 3
      %v3034 = vor.u32 %v3030, %v3033
      %v3035 = vsel %vm2919, %v3025, %v3034
      %v3037 = vshrl.u32 %v2600, 16
      %v3039 = vrot.slane %v3037, 2
      %v3040 = vshll.u32 %v2600, 16
      %v3042 = vrot.slane %v3040, 3
      %v3043 = vor.u32 %v3039, %v3042
      %v3044 = vsel %vm2919, %v3034, %v3043
      %v3046 = vshrl.u32 %v2601, 16
      %v3048 = vrot.slane %v3046, 2
      %v3049 = vshll.u32 %v2601, 16
      %v3051 = vrot.slane %v3049, 3
      %v3052 = vor.u32 %v3048, %v3051
      %v3053 = vsel %vm2919, %v3043, %v3052
      %v3055 = vshrl.u32 %v2602, 16
      %v3057 = vrot.slane %v3055, 2
      %v3058 = vshll.u32 %v2602, 16
      %v3060 = vrot.slane %v3058, 3
      %v3061 = vor.u32 %v3057, %v3060
      %v3062 = vsel %vm2919, %v3052, %v3061
      %v3064 = vshrl.u32 %v2603, 16
      %v3066 = vrot.slane %v3064, 2
      %v3067 = vshll.u32 %v2603, 16
      %v3069 = vrot.slane %v3067, 3
      %v3070 = vor.u32 %v3066, %v3069
      %v3071 = vsel %vm2919, %v3061, %v3070
      %v3073 = vshrl.u32 %v2604, 16
      %v3075 = vrot.slane %v3073, 2
      %v3076 = vshll.u32 %v2604, 16
      %v3078 = vrot.slane %v3076, 3
      %v3079 = vor.u32 %v3075, %v3078
      %v3080 = vsel %vm2919, %v3070, %v3079
      %v3082 = vshrl.u32 %v2918, 16
      %v3084 = vrot.slane %v3082, 2
      %v3085 = vshll.u32 %v2918, 16
      %v3087 = vrot.slane %v3085, 3
      %v3088 = vor.u32 %v3084, %v3087
      %v3089 = vsel %vm2919, %v3079, %v3088
      %v3091 = vsel %vm508, %v2936, 0
      %v3094 = vsel %vm508, %v2945, 0
      %v3097 = vsel %vm508, %v2954, 0
      %v3100 = vsel %vm508, %v2963, 0
      %v3103 = vsel %vm508, %v2972, 0
      %v3106 = vsel %vm508, %v2981, 0
      %v3109 = vsel %vm508, %v2990, 0
      %v3112 = vsel %vm508, %v2999, 0
      %v3115 = vsel %vm508, %v3008, 0
      %v3118 = vsel %vm508, %v3017, 0
      %v3121 = vsel %vm508, %v3026, 0
      %v3124 = vsel %vm508, %v3035, 0
      %v3127 = vsel %vm508, %v3044, 0
      %v3130 = vsel %vm508, %v3053, 0
      %v3133 = vsel %vm508, %v3062, 0
      %v3136 = vsel %vm508, %v3071, 0
      %v3139 = vsel %vm508, %v3080, 0
      %v3142 = vsel %vm508, %v3089, 0
      %v3145 = vsel %vm563, %v2915, 0
      %3147 = vmatprep.subr.bf16.mxu0 0
      %3148 = vmatpush1.bf16.msra.mxu0 %v3145
      %3149 = vmatprep.subr.bf16.mxu0 0
      %3150 = vmatpush1.bf16.msra.mxu0 0
      %3151 = vmatprep.subr.bf16.mxu0 0
      %3152 = vmatpush1.bf16.msra.mxu0 0
      %3153 = vmatprep.subr.bf16.mxu0 0
      %3154 = vmatpush1.bf16.msra.mxu0 0
      %3155 = vmatprep.subr.bf16.mxu0 0
      %3156 = vmatpush1.bf16.msra.mxu0 0
      %3157 = vmatprep.subr.bf16.mxu0 0
      %3158 = vmatpush1.bf16.msra.mxu0 0
      %3159 = vmatprep.subr.bf16.mxu0 0
      %3160 = vmatpush1.bf16.msra.mxu0 0
      %3161 = vmatprep.subr.bf16.mxu0 0
      %3162 = vmatpush1.bf16.msra.mxu0 0
      %3163 = vmatprep.subr.bf16.mxu0 0
      %3164 = vmatpush1.bf16.msra.mxu0 0
      %3165 = vmatprep.subr.bf16.mxu0 0
      %3166 = vmatpush1.bf16.msra.mxu0 0
      %3167 = vmatprep.subr.bf16.mxu0 0
      %3168 = vmatpush1.bf16.msra.mxu0 0
      %3169 = vmatprep.subr.bf16.mxu0 0
      %3170 = vmatpush1.bf16.msra.mxu0 0
      %3171 = vmatprep.subr.bf16.mxu0 0
      %3172 = vmatpush1.bf16.msra.mxu0 0
      %3173 = vmatprep.subr.bf16.mxu0 0
      %3174 = vmatpush1.bf16.msra.mxu0 0
      %3175 = vmatprep.subr.bf16.mxu0 0
      %3176 = vmatpush1.bf16.msra.mxu0 0
      %3177 = vmatprep.subr.bf16.mxu0 0
      %3178 = vmatpush1.bf16.msra.mxu0 0
      %3179 = vmatprep.mubr.bf16.mxu0 0
      %3180 = vmatmul.mubr.bf16.gmra.mrb[0].mxu0 %v3091
      %v3181 = vpop.f32.mrb[0].mxu0
      %v3182 = vadd.f32 0.0, %v3181
      %v3183 = vpop.f32.mrb[0].mxu0
      %v3184 = vpop.f32.mrb[0].mxu0
      %v3185 = vadd.f32 0.0, %v3184
      %v3186 = vpop.f32.mrb[0].mxu0
      %3187 = vmatprep.mubr.bf16.mxu0 0
      %3188 = vmatmul.mubr.bf16.gmra.mrb[0].mxu0 %v3094
      %v3189 = vpop.f32.mrb[0].mxu0
      %v3190 = vadd.f32 0.0, %v3189
      %v3191 = vpop.f32.mrb[0].mxu0
      %v3192 = vpop.f32.mrb[0].mxu0
      %v3193 = vadd.f32 0.0, %v3192
      %v3194 = vpop.f32.mrb[0].mxu0
      %3195 = vmatprep.mubr.bf16.mxu0 0
      %3196 = vmatmul.mubr.bf16.gmra.mrb[0].mxu0 %v3097
      %v3197 = vpop.f32.mrb[0].mxu0
      %v3198 = vadd.f32 0.0, %v3197
      %v3199 = vpop.f32.mrb[0].mxu0
      %v3200 = vpop.f32.mrb[0].mxu0
      %v3201 = vadd.f32 0.0, %v3200
      %v3202 = vpop.f32.mrb[0].mxu0
      %3203 = vmatprep.mubr.bf16.mxu0 0
      %3204 = vmatmul.mubr.bf16.gmra.mrb[0].mxu0 %v3100
      %v3205 = vpop.f32.mrb[0].mxu0
      %v3206 = vadd.f32 0.0, %v3205
      %v3207 = vpop.f32.mrb[0].mxu0
      %v3208 = vpop.f32.mrb[0].mxu0
      %v3209 = vadd.f32 0.0, %v3208
      %v3210 = vpop.f32.mrb[0].mxu0
      %3211 = vmatprep.mubr.bf16.mxu0 0
      %3212 = vmatmul.mubr.bf16.gmra.mrb[0].mxu0 %v3103
      %v3213 = vpop.f32.mrb[0].mxu0
      %v3214 = vadd.f32 0.0, %v3213
      %v3215 = vpop.f32.mrb[0].mxu0
      %v3216 = vpop.f32.mrb[0].mxu0
      %v3217 = vadd.f32 0.0, %v3216
      %v3218 = vpop.f32.mrb[0].mxu0
      %3219 = vmatprep.mubr.bf16.mxu0 0
      %3220 = vmatmul.mubr.bf16.gmra.mrb[0].mxu0 %v3106
      %v3221 = vpop.f32.mrb[0].mxu0
      %v3222 = vadd.f32 0.0, %v3221
      %v3223 = vpop.f32.mrb[0].mxu0
      %v3224 = vpop.f32.mrb[0].mxu0
      %v3225 = vadd.f32 0.0, %v3224
      %v3226 = vpop.f32.mrb[0].mxu0
      %3227 = vmatprep.mubr.bf16.mxu0 0
      %3228 = vmatmul.mubr.bf16.gmra.mrb[0].mxu0 %v3109
      %v3229 = vpop.f32.mrb[0].mxu0
      %v3230 = vadd.f32 0.0, %v3229
      %v3231 = vpop.f32.mrb[0].mxu0
      %v3232 = vpop.f32.mrb[0].mxu0
      %v3233 = vadd.f32 0.0, %v3232
      %v3234 = vpop.f32.mrb[0].mxu0
      %3235 = vmatprep.mubr.bf16.mxu0 0
      %3236 = vmatmul.mubr.bf16.gmra.mrb[0].mxu0 %v3112
      %v3237 = vpop.f32.mrb[0].mxu0
      %v3238 = vadd.f32 0.0, %v3237
      %v3239 = vpop.f32.mrb[0].mxu0
      %v3240 = vpop.f32.mrb[0].mxu0
      %v3241 = vadd.f32 0.0, %v3240
      %v3242 = vpop.f32.mrb[0].mxu0
      %3243 = vmatprep.mubr.bf16.mxu0 0
      %3244 = vmatmul.mubr.bf16.gmra.mrb[0].mxu0 %v3115
      %v3245 = vpop.f32.mrb[0].mxu0
      %v3246 = vadd.f32 0.0, %v3245
      %v3247 = vpop.f32.mrb[0].mxu0
      %v3248 = vpop.f32.mrb[0].mxu0
      %v3249 = vadd.f32 0.0, %v3248
      %v3250 = vpop.f32.mrb[0].mxu0
      %3251 = vmatprep.mubr.bf16.mxu0 0
      %3252 = vmatmul.mubr.bf16.gmra.mrb[0].mxu0 %v3118
      %v3253 = vpop.f32.mrb[0].mxu0
      %v3254 = vadd.f32 0.0, %v3253
      %v3255 = vpop.f32.mrb[0].mxu0
      %v3256 = vpop.f32.mrb[0].mxu0
      %v3257 = vadd.f32 0.0, %v3256
      %v3258 = vpop.f32.mrb[0].mxu0
      %3259 = vmatprep.mubr.bf16.mxu0 0
      %3260 = vmatmul.mubr.bf16.gmra.mrb[0].mxu0 %v3121
      %v3261 = vpop.f32.mrb[0].mxu0
      %v3262 = vadd.f32 0.0, %v3261
      %v3263 = vpop.f32.mrb[0].mxu0
      %v3264 = vpop.f32.mrb[0].mxu0
      %v3265 = vadd.f32 0.0, %v3264
      %v3266 = vpop.f32.mrb[0].mxu0
      %3267 = vmatprep.mubr.bf16.mxu0 0
      %3268 = vmatmul.mubr.bf16.gmra.mrb[0].mxu0 %v3124
      %v3269 = vpop.f32.mrb[0].mxu0
      %v3270 = vadd.f32 0.0, %v3269
      %v3271 = vpop.f32.mrb[0].mxu0
      %v3272 = vpop.f32.mrb[0].mxu0
      %v3273 = vadd.f32 0.0, %v3272
      %v3274 = vpop.f32.mrb[0].mxu0
      %3275 = vmatprep.mubr.bf16.mxu0 0
      %3276 = vmatmul.mubr.bf16.gmra.mrb[0].mxu0 %v3127
      %v3277 = vpop.f32.mrb[0].mxu0
      %v3278 = vadd.f32 0.0, %v3277
      %v3279 = vpop.f32.mrb[0].mxu0
      %v3280 = vpop.f32.mrb[0].mxu0
      %v3281 = vadd.f32 0.0, %v3280
      %v3282 = vpop.f32.mrb[0].mxu0
      %3283 = vmatprep.mubr.bf16.mxu0 0
      %3284 = vmatmul.mubr.bf16.gmra.mrb[0].mxu0 %v3130
      %v3285 = vpop.f32.mrb[0].mxu0
      %v3286 = vadd.f32 0.0, %v3285
      %v3287 = vpop.f32.mrb[0].mxu0
      %v3288 = vpop.f32.mrb[0].mxu0
      %v3289 = vadd.f32 0.0, %v3288
      %v3290 = vpop.f32.mrb[0].mxu0
      %3291 = vmatprep.mubr.bf16.mxu0 0
      %3292 = vmatmul.mubr.bf16.gmra.mrb[0].mxu0 %v3133
      %v3293 = vpop.f32.mrb[0].mxu0
      %v3294 = vadd.f32 0.0, %v3293
      %v3295 = vpop.f32.mrb[0].mxu0
      %v3296 = vpop.f32.mrb[0].mxu0
      %v3297 = vadd.f32 0.0, %v3296
      %v3298 = vpop.f32.mrb[0].mxu0
      %3299 = vmatprep.mubr.bf16.mxu0 0
      %3300 = vmatmul.mubr.bf16.gmra.mrb[0].mxu0 %v3136
      %v3301 = vpop.f32.mrb[0].mxu0
      %v3302 = vadd.f32 0.0, %v3301
      %v3303 = vpop.f32.mrb[0].mxu0
      %v3304 = vpop.f32.mrb[0].mxu0
      %v3305 = vadd.f32 0.0, %v3304
      %v3306 = vpop.f32.mrb[0].mxu0
      %3307 = vmatprep.mubr.bf16.mxu0 0
      %3308 = vmatmul.mubr.bf16.gmra.mrb[0].mxu0 %v3139
      %v3309 = vpop.f32.mrb[0].mxu0
      %v3310 = vadd.f32 0.0, %v3309
      %v3311 = vpop.f32.mrb[0].mxu0
      %v3312 = vpop.f32.mrb[0].mxu0
      %v3313 = vadd.f32 0.0, %v3312
      %v3314 = vpop.f32.mrb[0].mxu0
      %3315 = vmatprep.mubr.bf16.mxu0 0
      %3316 = vmatmul.mubr.bf16.gmra.mrb[0].mxu0 %v3142
      %v3317 = vpop.f32.mrb[0].mxu0
      %v3318 = vadd.f32 0.0, %v3317
      %v3319 = vpop.f32.mrb[0].mxu0
      %v3320 = vpop.f32.mrb[0].mxu0
      %v3321 = vadd.f32 0.0, %v3320
      %v3322 = vpop.f32.mrb[0].mxu0
      %3323 = vdwg.mxu0
      %v3324 = vadd.f32 %v2877, %v3182
      %v3325 = vadd.f32 %v2878, %v3185
      %v3326 = vadd.f32 %v2879, %v3190
      %v3327 = vadd.f32 %v2880, %v3193
      %v3328 = vadd.f32 %v2881, %v3198
      %v3329 = vadd.f32 %v2882, %v3201
      %v3330 = vadd.f32 %v2883, %v3206
      %v3331 = vadd.f32 %v2884, %v3209
      %v3332 = vadd.f32 %v2885, %v3214
      %v3333 = vadd.f32 %v2886, %v3217
      %v3334 = vadd.f32 %v2887, %v3222
      %v3335 = vadd.f32 %v2888, %v3225
      %v3336 = vadd.f32 %v2889, %v3230
      %v3337 = vadd.f32 %v2890, %v3233
      %v3338 = vadd.f32 %v2891, %v3238
      %v3339 = vadd.f32 %v2892, %v3241
      %v3340 = vadd.f32 %v2893, %v3246
      %v3341 = vadd.f32 %v2894, %v3249
      %v3342 = vadd.f32 %v2895, %v3254
      %v3343 = vadd.f32 %v2896, %v3257
      %v3344 = vadd.f32 %v2897, %v3262
      %v3345 = vadd.f32 %v2898, %v3265
      %v3346 = vadd.f32 %v2899, %v3270
      %v3347 = vadd.f32 %v2900, %v3273
      %v3348 = vadd.f32 %v2901, %v3278
      %v3349 = vadd.f32 %v2902, %v3281
      %v3350 = vadd.f32 %v2903, %v3286
      %v3351 = vadd.f32 %v2904, %v3289
      %v3352 = vadd.f32 %v2905, %v3294
      %v3353 = vadd.f32 %v2906, %v3297
      %v3354 = vadd.f32 %v2907, %v3302
      %v3355 = vadd.f32 %v2908, %v3305
      %v3356 = vadd.f32 %v2909, %v3310
      %v3357 = vadd.f32 %v2910, %v3313
      %v3358 = vadd.f32 %v2911, %v3318
      %v3359 = vadd.f32 %v2912, %v3321
      %v3360 = vld [vmem:[%s219 + $0x10] sm:$0x8]
      %s3361 = scalar_lea.vmem %s1, 16
      %v3362 = vld [vmem:[%s3361] sm:$0x3]
      %v3364 = vunpack.c.l.b16 %v3360
      %v3365 = vpack.c.b16 %v2551, %v3364
      %vm3366 = vcmask 1044480
      %v3367 = vrot.slane %v3365, 3
      %v3368 = vrot.slane %v2588, 3
      %v3369 = vsel %vm3366, %v3367, %v3368
      %v3370 = vrot.slane %v2589, 3
      %v3371 = vsel %vm3366, %v3368, %v3370
      %v3372 = vrot.slane %v2590, 3
      %v3373 = vsel %vm3366, %v3370, %v3372
      %v3374 = vrot.slane %v2591, 3
      %v3375 = vsel %vm3366, %v3372, %v3374
      %v3376 = vrot.slane %v2592, 3
      %v3377 = vsel %vm3366, %v3374, %v3376
      %v3378 = vrot.slane %v2593, 3
      %v3379 = vsel %vm3366, %v3376, %v3378
      %v3380 = vrot.slane %v2594, 3
      %v3381 = vsel %vm3366, %v3378, %v3380
      %v3382 = vrot.slane %v2595, 3
      %v3383 = vsel %vm3366, %v3380, %v3382
      %v3384 = vrot.slane %v2596, 3
      %v3385 = vsel %vm3366, %v3382, %v3384
      %v3386 = vrot.slane %v2597, 3
      %v3387 = vsel %vm3366, %v3384, %v3386
      %v3388 = vrot.slane %v2598, 3
      %v3389 = vsel %vm3366, %v3386, %v3388
      %v3390 = vrot.slane %v2599, 3
      %v3391 = vsel %vm3366, %v3388, %v3390
      %v3392 = vrot.slane %v2600, 3
      %v3393 = vsel %vm3366, %v3390, %v3392
      %v3394 = vrot.slane %v2601, 3
      %v3395 = vsel %vm3366, %v3392, %v3394
      %v3396 = vrot.slane %v2602, 3
      %v3397 = vsel %vm3366, %v3394, %v3396
      %v3398 = vrot.slane %v2603, 3
      %v3399 = vsel %vm3366, %v3396, %v3398
      %v3400 = vrot.slane %v2604, 3
      %v3401 = vsel %vm3366, %v3398, %v3400
      %v3402 = vrot.slane %v2918, 3
      %v3403 = vsel %vm3366, %v3400, %v3402
      %v3405 = vsel %vm508, %v3369, 0
      %v3408 = vsel %vm508, %v3371, 0
      %v3411 = vsel %vm508, %v3373, 0
      %v3414 = vsel %vm508, %v3375, 0
      %v3417 = vsel %vm508, %v3377, 0
      %v3420 = vsel %vm508, %v3379, 0
      %v3423 = vsel %vm508, %v3381, 0
      %v3426 = vsel %vm508, %v3383, 0
      %v3429 = vsel %vm508, %v3385, 0
      %v3432 = vsel %vm508, %v3387, 0
      %v3435 = vsel %vm508, %v3389, 0
      %v3438 = vsel %vm508, %v3391, 0
      %v3441 = vsel %vm508, %v3393, 0
      %v3444 = vsel %vm508, %v3395, 0
      %v3447 = vsel %vm508, %v3397, 0
      %v3450 = vsel %vm508, %v3399, 0
      %v3453 = vsel %vm508, %v3401, 0
      %v3456 = vsel %vm508, %v3403, 0
      %v3459 = vsel %vm563, %v3362, 0
      %3461 = vmatprep.subr.bf16.mxu0 0
      %3462 = vmatpush1.bf16.msra.mxu0 %v3459
      %3463 = vmatprep.subr.bf16.mxu0 0
      %3464 = vmatpush1.bf16.msra.mxu0 0
      %3465 = vmatprep.subr.bf16.mxu0 0
      %3466 = vmatpush1.bf16.msra.mxu0 0
      %3467 = vmatprep.subr.bf16.mxu0 0
      %3468 = vmatpush1.bf16.msra.mxu0 0
      %3469 = vmatprep.subr.bf16.mxu0 0
      %3470 = vmatpush1.bf16.msra.mxu0 0
      %3471 = vmatprep.subr.bf16.mxu0 0
      %3472 = vmatpush1.bf16.msra.mxu0 0
      %3473 = vmatprep.subr.bf16.mxu0 0
      %3474 = vmatpush1.bf16.msra.mxu0 0
      %3475 = vmatprep.subr.bf16.mxu0 0
      %3476 = vmatpush1.bf16.msra.mxu0 0
      %3477 = vmatprep.subr.bf16.mxu0 0
      %3478 = vmatpush1.bf16.msra.mxu0 0
      %3479 = vmatprep.subr.bf16.mxu0 0
      %3480 = vmatpush1.bf16.msra.mxu0 0
      %3481 = vmatprep.subr.bf16.mxu0 0
      %3482 = vmatpush1.bf16.msra.mxu0 0
      %3483 = vmatprep.subr.bf16.mxu0 0
      %3484 = vmatpush1.bf16.msra.mxu0 0
      %3485 = vmatprep.subr.bf16.mxu0 0
      %3486 = vmatpush1.bf16.msra.mxu0 0
      %3487 = vmatprep.subr.bf16.mxu0 0
      %3488 = vmatpush1.bf16.msra.mxu0 0
      %3489 = vmatprep.subr.bf16.mxu0 0
      %3490 = vmatpush1.bf16.msra.mxu0 0
      %3491 = vmatprep.subr.bf16.mxu0 0
      %3492 = vmatpush1.bf16.msra.mxu0 0
      %3493 = vmatprep.mubr.bf16.mxu0 0
      %3494 = vmatmul.mubr.bf16.gmra.mrb[0].mxu0 %v3405
      %v3495 = vpop.f32.mrb[0].mxu0
      %v3496 = vadd.f32 0.0, %v3495
      %v3497 = vpop.f32.mrb[0].mxu0
      %v3498 = vpop.f32.mrb[0].mxu0
      %v3499 = vadd.f32 0.0, %v3498
      %v3500 = vpop.f32.mrb[0].mxu0
      %3501 = vmatprep.mubr.bf16.mxu0 0
      %3502 = vmatmul.mubr.bf16.gmra.mrb[0].mxu0 %v3408
      %v3503 = vpop.f32.mrb[0].mxu0
      %v3504 = vadd.f32 0.0, %v3503
      %v3505 = vpop.f32.mrb[0].mxu0
      %v3506 = vpop.f32.mrb[0].mxu0
      %v3507 = vadd.f32 0.0, %v3506
      %v3508 = vpop.f32.mrb[0].mxu0
      %3509 = vmatprep.mubr.bf16.mxu0 0
      %3510 = vmatmul.mubr.bf16.gmra.mrb[0].mxu0 %v3411
      %v3511 = vpop.f32.mrb[0].mxu0
      %v3512 = vadd.f32 0.0, %v3511
      %v3513 = vpop.f32.mrb[0].mxu0
      %v3514 = vpop.f32.mrb[0].mxu0
      %v3515 = vadd.f32 0.0, %v3514
      %v3516 = vpop.f32.mrb[0].mxu0
      %3517 = vmatprep.mubr.bf16.mxu0 0
      %3518 = vmatmul.mubr.bf16.gmra.mrb[0].mxu0 %v3414
      %v3519 = vpop.f32.mrb[0].mxu0
      %v3520 = vadd.f32 0.0, %v3519
      %v3521 = vpop.f32.mrb[0].mxu0
      %v3522 = vpop.f32.mrb[0].mxu0
      %v3523 = vadd.f32 0.0, %v3522
      %v3524 = vpop.f32.mrb[0].mxu0
      %3525 = vmatprep.mubr.bf16.mxu0 0
      %3526 = vmatmul.mubr.bf16.gmra.mrb[0].mxu0 %v3417
      %v3527 = vpop.f32.mrb[0].mxu0
      %v3528 = vadd.f32 0.0, %v3527
      %v3529 = vpop.f32.mrb[0].mxu0
      %v3530 = vpop.f32.mrb[0].mxu0
      %v3531 = vadd.f32 0.0, %v3530
      %v3532 = vpop.f32.mrb[0].mxu0
      %3533 = vmatprep.mubr.bf16.mxu0 0
      %3534 = vmatmul.mubr.bf16.gmra.mrb[0].mxu0 %v3420
      %v3535 = vpop.f32.mrb[0].mxu0
      %v3536 = vadd.f32 0.0, %v3535
      %v3537 = vpop.f32.mrb[0].mxu0
      %v3538 = vpop.f32.mrb[0].mxu0
      %v3539 = vadd.f32 0.0, %v3538
      %v3540 = vpop.f32.mrb[0].mxu0
      %3541 = vmatprep.mubr.bf16.mxu0 0
      %3542 = vmatmul.mubr.bf16.gmra.mrb[0].mxu0 %v3423
      %v3543 = vpop.f32.mrb[0].mxu0
      %v3544 = vadd.f32 0.0, %v3543
      %v3545 = vpop.f32.mrb[0].mxu0
      %v3546 = vpop.f32.mrb[0].mxu0
      %v3547 = vadd.f32 0.0, %v3546
      %v3548 = vpop.f32.mrb[0].mxu0
      %3549 = vmatprep.mubr.bf16.mxu0 0
      %3550 = vmatmul.mubr.bf16.gmra.mrb[0].mxu0 %v3426
      %v3551 = vpop.f32.mrb[0].mxu0
      %v3552 = vadd.f32 0.0, %v3551
      %v3553 = vpop.f32.mrb[0].mxu0
      %v3554 = vpop.f32.mrb[0].mxu0
      %v3555 = vadd.f32 0.0, %v3554
      %v3556 = vpop.f32.mrb[0].mxu0
      %3557 = vmatprep.mubr.bf16.mxu0 0
      %3558 = vmatmul.mubr.bf16.gmra.mrb[0].mxu0 %v3429
      %v3559 = vpop.f32.mrb[0].mxu0
      %v3560 = vadd.f32 0.0, %v3559
      %v3561 = vpop.f32.mrb[0].mxu0
      %v3562 = vpop.f32.mrb[0].mxu0
      %v3563 = vadd.f32 0.0, %v3562
      %v3564 = vpop.f32.mrb[0].mxu0
      %3565 = vmatprep.mubr.bf16.mxu0 0
      %3566 = vmatmul.mubr.bf16.gmra.mrb[0].mxu0 %v3432
      %v3567 = vpop.f32.mrb[0].mxu0
      %v3568 = vadd.f32 0.0, %v3567
      %v3569 = vpop.f32.mrb[0].mxu0
      %v3570 = vpop.f32.mrb[0].mxu0
      %v3571 = vadd.f32 0.0, %v3570
      %v3572 = vpop.f32.mrb[0].mxu0
      %3573 = vmatprep.mubr.bf16.mxu0 0
      %3574 = vmatmul.mubr.bf16.gmra.mrb[0].mxu0 %v3435
      %v3575 = vpop.f32.mrb[0].mxu0
      %v3576 = vadd.f32 0.0, %v3575
      %v3577 = vpop.f32.mrb[0].mxu0
      %v3578 = vpop.f32.mrb[0].mxu0
      %v3579 = vadd.f32 0.0, %v3578
      %v3580 = vpop.f32.mrb[0].mxu0
      %3581 = vmatprep.mubr.bf16.mxu0 0
      %3582 = vmatmul.mubr.bf16.gmra.mrb[0].mxu0 %v3438
      %v3583 = vpop.f32.mrb[0].mxu0
      %v3584 = vadd.f32 0.0, %v3583
      %v3585 = vpop.f32.mrb[0].mxu0
      %v3586 = vpop.f32.mrb[0].mxu0
      %v3587 = vadd.f32 0.0, %v3586
      %v3588 = vpop.f32.mrb[0].mxu0
      %3589 = vmatprep.mubr.bf16.mxu0 0
      %3590 = vmatmul.mubr.bf16.gmra.mrb[0].mxu0 %v3441
      %v3591 = vpop.f32.mrb[0].mxu0
      %v3592 = vadd.f32 0.0, %v3591
      %v3593 = vpop.f32.mrb[0].mxu0
      %v3594 = vpop.f32.mrb[0].mxu0
      %v3595 = vadd.f32 0.0, %v3594
      %v3596 = vpop.f32.mrb[0].mxu0
      %3597 = vmatprep.mubr.bf16.mxu0 0
      %3598 = vmatmul.mubr.bf16.gmra.mrb[0].mxu0 %v3444
      %v3599 = vpop.f32.mrb[0].mxu0
      %v3600 = vadd.f32 0.0, %v3599
      %v3601 = vpop.f32.mrb[0].mxu0
      %v3602 = vpop.f32.mrb[0].mxu0
      %v3603 = vadd.f32 0.0, %v3602
      %v3604 = vpop.f32.mrb[0].mxu0
      %3605 = vmatprep.mubr.bf16.mxu0 0
      %3606 = vmatmul.mubr.bf16.gmra.mrb[0].mxu0 %v3447
      %v3607 = vpop.f32.mrb[0].mxu0
      %v3608 = vadd.f32 0.0, %v3607
      %v3609 = vpop.f32.mrb[0].mxu0
      %v3610 = vpop.f32.mrb[0].mxu0
      %v3611 = vadd.f32 0.0, %v3610
      %v3612 = vpop.f32.mrb[0].mxu0
      %3613 = vmatprep.mubr.bf16.mxu0 0
      %3614 = vmatmul.mubr.bf16.gmra.mrb[0].mxu0 %v3450
      %v3615 = vpop.f32.mrb[0].mxu0
      %v3616 = vadd.f32 0.0, %v3615
      %v3617 = vpop.f32.mrb[0].mxu0
      %v3618 = vpop.f32.mrb[0].mxu0
      %v3619 = vadd.f32 0.0, %v3618
      %v3620 = vpop.f32.mrb[0].mxu0
      %3621 = vmatprep.mubr.bf16.mxu0 0
      %3622 = vmatmul.mubr.bf16.gmra.mrb[0].mxu0 %v3453
      %v3623 = vpop.f32.mrb[0].mxu0
      %v3624 = vadd.f32 0.0, %v3623
      %v3625 = vpop.f32.mrb[0].mxu0
      %v3626 = vpop.f32.mrb[0].mxu0
      %v3627 = vadd.f32 0.0, %v3626
      %v3628 = vpop.f32.mrb[0].mxu0
      %3629 = vmatprep.mubr.bf16.mxu0 0
      %3630 = vmatmul.mubr.bf16.gmra.mrb[0].mxu0 %v3456
      %v3631 = vpop.f32.mrb[0].mxu0
      %v3632 = vadd.f32 0.0, %v3631
      %v3633 = vpop.f32.mrb[0].mxu0
      %v3634 = vpop.f32.mrb[0].mxu0
      %v3635 = vadd.f32 0.0, %v3634
      %v3636 = vpop.f32.mrb[0].mxu0
      %3637 = vdwg.mxu0
      %v3638 = vadd.f32 %v3324, %v3496
      %v3639 = vadd.f32 %v3325, %v3499
      %v3640 = vadd.f32 %v3326, %v3504
      %v3641 = vadd.f32 %v3327, %v3507
      %v3642 = vadd.f32 %v3328, %v3512
      %v3643 = vadd.f32 %v3329, %v3515
      %v3644 = vadd.f32 %v3330, %v3520
      %v3645 = vadd.f32 %v3331, %v3523
      %v3646 = vadd.f32 %v3332, %v3528
      %v3647 = vadd.f32 %v3333, %v3531
      %v3648 = vadd.f32 %v3334, %v3536
      %v3649 = vadd.f32 %v3335, %v3539
      %v3650 = vadd.f32 %v3336, %v3544
      %v3651 = vadd.f32 %v3337, %v3547
      %v3652 = vadd.f32 %v3338, %v3552
      %v3653 = vadd.f32 %v3339, %v3555
      %v3654 = vadd.f32 %v3340, %v3560
      %v3655 = vadd.f32 %v3341, %v3563
      %v3656 = vadd.f32 %v3342, %v3568
      %v3657 = vadd.f32 %v3343, %v3571
      %v3658 = vadd.f32 %v3344, %v3576
      %v3659 = vadd.f32 %v3345, %v3579
      %v3660 = vadd.f32 %v3346, %v3584
      %v3661 = vadd.f32 %v3347, %v3587
      %v3662 = vadd.f32 %v3348, %v3592
      %v3663 = vadd.f32 %v3349, %v3595
      %v3664 = vadd.f32 %v3350, %v3600
      %v3665 = vadd.f32 %v3351, %v3603
      %v3666 = vadd.f32 %v3352, %v3608
      %v3667 = vadd.f32 %v3353, %v3611
      %v3668 = vadd.f32 %v3354, %v3616
      %v3669 = vadd.f32 %v3355, %v3619
      %v3670 = vadd.f32 %v3356, %v3624
      %v3671 = vadd.f32 %v3357, %v3627
      %v3672 = vadd.f32 %v3358, %v3632
      %v3673 = vadd.f32 %v3359, %v3635
      %v3674 = vld [vmem:[%s2] sm:$0x1]
      %v3676 = vlaneseq
      %v3677 = vshrl.u32 %v3676, 7
      %v3678 = vsub.s32 0, %v3677
      %v3679 = vrot.slane %v3674, %v3678
      %v3681 = vadd.f32 %v3638, %v3679
      %v3682 = vadd.f32 %v3639, %v3679
      %v3683 = vadd.f32 %v3640, %v3679
      %v3684 = vadd.f32 %v3641, %v3679
      %v3685 = vadd.f32 %v3642, %v3679
      %v3686 = vadd.f32 %v3643, %v3679
      %v3687 = vadd.f32 %v3644, %v3679
      %v3688 = vadd.f32 %v3645, %v3679
      %v3689 = vadd.f32 %v3646, %v3679
      %v3690 = vadd.f32 %v3647, %v3679
      %v3691 = vadd.f32 %v3648, %v3679
      %v3692 = vadd.f32 %v3649, %v3679
      %v3693 = vadd.f32 %v3650, %v3679
      %v3694 = vadd.f32 %v3651, %v3679
      %v3695 = vadd.f32 %v3652, %v3679
      %v3696 = vadd.f32 %v3653, %v3679
      %v3697 = vadd.f32 %v3654, %v3679
      %v3698 = vadd.f32 %v3655, %v3679
      %v3699 = vadd.f32 %v3656, %v3679
      %v3700 = vadd.f32 %v3657, %v3679
      %v3701 = vadd.f32 %v3658, %v3679
      %v3702 = vadd.f32 %v3659, %v3679
      %v3703 = vadd.f32 %v3660, %v3679
      %v3704 = vadd.f32 %v3661, %v3679
      %v3705 = vadd.f32 %v3662, %v3679
      %v3706 = vadd.f32 %v3663, %v3679
      %v3707 = vadd.f32 %v3664, %v3679
      %v3708 = vadd.f32 %v3665, %v3679
      %v3709 = vadd.f32 %v3666, %v3679
      %v3710 = vadd.f32 %v3667, %v3679
      %v3711 = vadd.f32 %v3668, %v3679
      %v3712 = vadd.f32 %v3669, %v3679
      %v3713 = vadd.f32 %v3670, %v3679
      %v3714 = vadd.f32 %v3671, %v3679
      %v3715 = vadd.f32 %v3672, %v3679
      %v3716 = vadd.f32 %v3673, %v3679
      %v3717 = vxor.u32 %v3681, 2147483648
      %v3718 = vxor.u32 %v3682, 2147483648
      %v3719 = vxor.u32 %v3683, 2147483648
      %v3720 = vxor.u32 %v3684, 2147483648
      %v3721 = vxor.u32 %v3685, 2147483648
      %v3722 = vxor.u32 %v3686, 2147483648
      %v3723 = vxor.u32 %v3687, 2147483648
      %v3724 = vxor.u32 %v3688, 2147483648
      %v3725 = vxor.u32 %v3689, 2147483648
      %v3726 = vxor.u32 %v3690, 2147483648
      %v3727 = vxor.u32 %v3691, 2147483648
      %v3728 = vxor.u32 %v3692, 2147483648
      %v3729 = vxor.u32 %v3693, 2147483648
      %v3730 = vxor.u32 %v3694, 2147483648
      %v3731 = vxor.u32 %v3695, 2147483648
      %v3732 = vxor.u32 %v3696, 2147483648
      %v3733 = vxor.u32 %v3697, 2147483648
      %v3734 = vxor.u32 %v3698, 2147483648
      %v3735 = vxor.u32 %v3699, 2147483648
      %v3736 = vxor.u32 %v3700, 2147483648
      %v3737 = vxor.u32 %v3701, 2147483648
      %v3738 = vxor.u32 %v3702, 2147483648
      %v3739 = vxor.u32 %v3703, 2147483648
      %v3740 = vxor.u32 %v3704, 2147483648
      %v3741 = vxor.u32 %v3705, 2147483648
      %v3742 = vxor.u32 %v3706, 2147483648
      %v3743 = vxor.u32 %v3707, 2147483648
      %v3744 = vxor.u32 %v3708, 2147483648
      %v3745 = vxor.u32 %v3709, 2147483648
      %v3746 = vxor.u32 %v3710, 2147483648
      %v3747 = vxor.u32 %v3711, 2147483648
      %v3748 = vxor.u32 %v3712, 2147483648
      %v3749 = vxor.u32 %v3713, 2147483648
      %v3750 = vxor.u32 %v3714, 2147483648
      %v3751 = vxor.u32 %v3715, 2147483648
      %v3752 = vxor.u32 %v3716, 2147483648
      %v3753 = vmul.f32 %v3717, 1.442695
      %v3754 = vpow.pop %v3753
      %v3755 = vmul.f32 %v3718, 1.442695
      %v3756 = vpow.pop %v3755
      %v3757 = vmul.f32 %v3719, 1.442695
      %v3758 = vpow.pop %v3757
      %v3759 = vmul.f32 %v3720, 1.442695
      %v3760 = vpow.pop %v3759
      %v3761 = vmul.f32 %v3721, 1.442695
      %v3762 = vpow.pop %v3761
      %v3763 = vmul.f32 %v3722, 1.442695
      %v3764 = vpow.pop %v3763
      %v3765 = vmul.f32 %v3723, 1.442695
      %v3766 = vpow.pop %v3765
      %v3767 = vmul.f32 %v3724, 1.442695
      %v3768 = vpow.pop %v3767
      %v3769 = vmul.f32 %v3725, 1.442695
      %v3770 = vpow.pop %v3769
      %v3771 = vmul.f32 %v3726, 1.442695
      %v3772 = vpow.pop %v3771
      %v3773 = vmul.f32 %v3727, 1.442695
      %v3774 = vpow.pop %v3773
      %v3775 = vmul.f32 %v3728, 1.442695
      %v3776 = vpow.pop %v3775
      %v3777 = vmul.f32 %v3729, 1.442695
      %v3778 = vpow.pop %v3777
      %v3779 = vmul.f32 %v3730, 1.442695
      %v3780 = vpow.pop %v3779
      %v3781 = vmul.f32 %v3731, 1.442695
      %v3782 = vpow.pop %v3781
      %v3783 = vmul.f32 %v3732, 1.442695
      %v3784 = vpow.pop %v3783
      %v3785 = vmul.f32 %v3733, 1.442695
      %v3786 = vpow.pop %v3785
      %v3787 = vmul.f32 %v3734, 1.442695
      %v3788 = vpow.pop %v3787
      %v3789 = vmul.f32 %v3735, 1.442695
      %v3790 = vpow.pop %v3789
      %v3791 = vmul.f32 %v3736, 1.442695
      %v3792 = vpow.pop %v3791
      %v3793 = vmul.f32 %v3737, 1.442695
      %v3794 = vpow.pop %v3793
      %v3795 = vmul.f32 %v3738, 1.442695
      %v3796 = vpow.pop %v3795
      %v3797 = vmul.f32 %v3739, 1.442695
      %v3798 = vpow.pop %v3797
      %v3799 = vmul.f32 %v3740, 1.442695
      %v3800 = vpow.pop %v3799
      %v3801 = vmul.f32 %v3741, 1.442695
      %v3802 = vpow.pop %v3801
      %v3803 = vmul.f32 %v3742, 1.442695
      %v3804 = vpow.pop %v3803
      %v3805 = vmul.f32 %v3743, 1.442695
      %v3806 = vpow.pop %v3805
      %v3807 = vmul.f32 %v3744, 1.442695
      %v3808 = vpow.pop %v3807
      %v3809 = vmul.f32 %v3745, 1.442695
      %v3810 = vpow.pop %v3809
      %v3811 = vmul.f32 %v3746, 1.442695
      %v3812 = vpow.pop %v3811
      %v3813 = vmul.f32 %v3747, 1.442695
      %v3814 = vpow.pop %v3813
      %v3815 = vmul.f32 %v3748, 1.442695
      %v3816 = vpow.pop %v3815
      %v3817 = vmul.f32 %v3749, 1.442695
      %v3818 = vpow.pop %v3817
      %v3819 = vmul.f32 %v3750, 1.442695
      %v3820 = vpow.pop %v3819
      %v3821 = vmul.f32 %v3751, 1.442695
      %v3822 = vpow.pop %v3821
      %v3823 = vmul.f32 %v3752, 1.442695
      %v3824 = vpow.pop %v3823
      %v3825 = vadd.f32 %v3754, 1.0
      %v3826 = vadd.f32 %v3756, 1.0
      %v3827 = vadd.f32 %v3758, 1.0
      %v3828 = vadd.f32 %v3760, 1.0
      %v3829 = vadd.f32 %v3762, 1.0
      %v3830 = vadd.f32 %v3764, 1.0
      %v3831 = vadd.f32 %v3766, 1.0
      %v3832 = vadd.f32 %v3768, 1.0
      %v3833 = vadd.f32 %v3770, 1.0
      %v3834 = vadd.f32 %v3772, 1.0
      %v3835 = vadd.f32 %v3774, 1.0
      %v3836 = vadd.f32 %v3776, 1.0
      %v3837 = vadd.f32 %v3778, 1.0
      %v3838 = vadd.f32 %v3780, 1.0
      %v3839 = vadd.f32 %v3782, 1.0
      %v3840 = vadd.f32 %v3784, 1.0
      %v3841 = vadd.f32 %v3786, 1.0
      %v3842 = vadd.f32 %v3788, 1.0
      %v3843 = vadd.f32 %v3790, 1.0
      %v3844 = vadd.f32 %v3792, 1.0
      %v3845 = vadd.f32 %v3794, 1.0
      %v3846 = vadd.f32 %v3796, 1.0
      %v3847 = vadd.f32 %v3798, 1.0
      %v3848 = vadd.f32 %v3800, 1.0
      %v3849 = vadd.f32 %v3802, 1.0
      %v3850 = vadd.f32 %v3804, 1.0
      %v3851 = vadd.f32 %v3806, 1.0
      %v3852 = vadd.f32 %v3808, 1.0
      %v3853 = vadd.f32 %v3810, 1.0
      %v3854 = vadd.f32 %v3812, 1.0
      %v3855 = vadd.f32 %v3814, 1.0
      %v3856 = vadd.f32 %v3816, 1.0
      %v3857 = vadd.f32 %v3818, 1.0
      %v3858 = vadd.f32 %v3820, 1.0
      %v3859 = vadd.f32 %v3822, 1.0
      %v3860 = vadd.f32 %v3824, 1.0
      %v3861 = vrcp.pop %v3825
      %v3862 = vmul.f32 1.0, %v3861
      %v3863 = vrcp.pop %v3826
      %v3864 = vmul.f32 1.0, %v3863
      %v3865 = vrcp.pop %v3827
      %v3866 = vmul.f32 1.0, %v3865
      %v3867 = vrcp.pop %v3828
      %v3868 = vmul.f32 1.0, %v3867
      %v3869 = vrcp.pop %v3829
      %v3870 = vmul.f32 1.0, %v3869
      %v3871 = vrcp.pop %v3830
      %v3872 = vmul.f32 1.0, %v3871
      %v3873 = vrcp.pop %v3831
      %v3874 = vmul.f32 1.0, %v3873
      %v3875 = vrcp.pop %v3832
      %v3876 = vmul.f32 1.0, %v3875
      %v3877 = vrcp.pop %v3833
      %v3878 = vmul.f32 1.0, %v3877
      %v3879 = vrcp.pop %v3834
      %v3880 = vmul.f32 1.0, %v3879
      %v3881 = vrcp.pop %v3835
      %v3882 = vmul.f32 1.0, %v3881
      %v3883 = vrcp.pop %v3836
      %v3884 = vmul.f32 1.0, %v3883
      %v3885 = vrcp.pop %v3837
      %v3886 = vmul.f32 1.0, %v3885
      %v3887 = vrcp.pop %v3838
      %v3888 = vmul.f32 1.0, %v3887
      %v3889 = vrcp.pop %v3839
      %v3890 = vmul.f32 1.0, %v3889
      %v3891 = vrcp.pop %v3840
      %v3892 = vmul.f32 1.0, %v3891
      %v3893 = vrcp.pop %v3841
      %v3894 = vmul.f32 1.0, %v3893
      %v3895 = vrcp.pop %v3842
      %v3896 = vmul.f32 1.0, %v3895
      %v3897 = vrcp.pop %v3843
      %v3898 = vmul.f32 1.0, %v3897
      %v3899 = vrcp.pop %v3844
      %v3900 = vmul.f32 1.0, %v3899
      %v3901 = vrcp.pop %v3845
      %v3902 = vmul.f32 1.0, %v3901
      %v3903 = vrcp.pop %v3846
      %v3904 = vmul.f32 1.0, %v3903
      %v3905 = vrcp.pop %v3847
      %v3906 = vmul.f32 1.0, %v3905
      %v3907 = vrcp.pop %v3848
      %v3908 = vmul.f32 1.0, %v3907
      %v3909 = vrcp.pop %v3849
      %v3910 = vmul.f32 1.0, %v3909
      %v3911 = vrcp.pop %v3850
      %v3912 = vmul.f32 1.0, %v3911
      %v3913 = vrcp.pop %v3851
      %v3914 = vmul.f32 1.0, %v3913
      %v3915 = vrcp.pop %v3852
      %v3916 = vmul.f32 1.0, %v3915
      %v3917 = vrcp.pop %v3853
      %v3918 = vmul.f32 1.0, %v3917
      %v3919 = vrcp.pop %v3854
      %v3920 = vmul.f32 1.0, %v3919
      %v3921 = vrcp.pop %v3855
      %v3922 = vmul.f32 1.0, %v3921
      %v3923 = vrcp.pop %v3856
      %v3924 = vmul.f32 1.0, %v3923
      %v3925 = vrcp.pop %v3857
      %v3926 = vmul.f32 1.0, %v3925
      %v3927 = vrcp.pop %v3858
      %v3928 = vmul.f32 1.0, %v3927
      %v3929 = vrcp.pop %v3859
      %v3930 = vmul.f32 1.0, %v3929
      %v3931 = vrcp.pop %v3860
      %v3932 = vmul.f32 1.0, %v3931
      %v3933 = vmul.f32 %v3681, %v3862
      %v3934 = vmul.f32 %v3682, %v3864
      %v3935 = vmul.f32 %v3683, %v3866
      %v3936 = vmul.f32 %v3684, %v3868
      %v3937 = vmul.f32 %v3685, %v3870
      %v3938 = vmul.f32 %v3686, %v3872
      %v3939 = vmul.f32 %v3687, %v3874
      %v3940 = vmul.f32 %v3688, %v3876
      %v3941 = vmul.f32 %v3689, %v3878
      %v3942 = vmul.f32 %v3690, %v3880
      %v3943 = vmul.f32 %v3691, %v3882
      %v3944 = vmul.f32 %v3692, %v3884
      %v3945 = vmul.f32 %v3693, %v3886
      %v3946 = vmul.f32 %v3694, %v3888
      %v3947 = vmul.f32 %v3695, %v3890
      %v3948 = vmul.f32 %v3696, %v3892
      %v3949 = vmul.f32 %v3697, %v3894
      %v3950 = vmul.f32 %v3698, %v3896
      %v3951 = vmul.f32 %v3699, %v3898
      %v3952 = vmul.f32 %v3700, %v3900
      %v3953 = vmul.f32 %v3701, %v3902
      %v3954 = vmul.f32 %v3702, %v3904
      %v3955 = vmul.f32 %v3703, %v3906
      %v3956 = vmul.f32 %v3704, %v3908
      %v3957 = vmul.f32 %v3705, %v3910
      %v3958 = vmul.f32 %v3706, %v3912
      %v3959 = vmul.f32 %v3707, %v3914
      %v3960 = vmul.f32 %v3708, %v3916
      %v3961 = vmul.f32 %v3709, %v3918
      %v3962 = vmul.f32 %v3710, %v3920
      %v3963 = vmul.f32 %v3711, %v3922
      %v3964 = vmul.f32 %v3712, %v3924
      %v3965 = vmul.f32 %v3713, %v3926
      %v3966 = vmul.f32 %v3714, %v3928
      %v3967 = vmul.f32 %v3715, %v3930
      %v3968 = vmul.f32 %v3716, %v3932
      %vm3969 = vcmask 261120
      %3970 = vst.msk [vmem:[#allocation2] sm:$0xff] %vm3969, %v3933
      %3971 = vst.msk [vmem:[#allocation2 + $0x8] sm:$0xff] %vm3969, %v3934
      %3972 = vst.msk [vmem:[#allocation2 + $0x10] sm:$0xff] %vm3969, %v3935
      %3973 = vst.msk [vmem:[#allocation2 + $0x18] sm:$0xff] %vm3969, %v3936
      %3974 = vst.msk [vmem:[#allocation2 + $0x20] sm:$0xff] %vm3969, %v3937
      %3975 = vst.msk [vmem:[#allocation2 + $0x28] sm:$0xff] %vm3969, %v3938
      %3976 = vst.msk [vmem:[#allocation2 + $0x30] sm:$0xff] %vm3969, %v3939
      %3977 = vst.msk [vmem:[#allocation2 + $0x38] sm:$0xff] %vm3969, %v3940
      %3978 = vst.msk [vmem:[#allocation2 + $0x40] sm:$0xff] %vm3969, %v3941
      %3979 = vst.msk [vmem:[#allocation2 + $0x48] sm:$0xff] %vm3969, %v3942
      %3980 = vst.msk [vmem:[#allocation2 + $0x50] sm:$0xff] %vm3969, %v3943
      %3981 = vst.msk [vmem:[#allocation2 + $0x58] sm:$0xff] %vm3969, %v3944
      %3982 = vst.msk [vmem:[#allocation2 + $0x60] sm:$0xff] %vm3969, %v3945
      %3983 = vst.msk [vmem:[#allocation2 + $0x68] sm:$0xff] %vm3969, %v3946
      %3984 = vst.msk [vmem:[#allocation2 + $0x70] sm:$0xff] %vm3969, %v3947
      %3985 = vst.msk [vmem:[#allocation2 + $0x78] sm:$0xff] %vm3969, %v3948
      %3986 = vst.msk [vmem:[#allocation2 + $0x80] sm:$0xff] %vm3969, %v3949
      %3987 = vst.msk [vmem:[#allocation2 + $0x88] sm:$0xff] %vm3969, %v3950
      %3988 = vst.msk [vmem:[#allocation2 + $0x90] sm:$0xff] %vm3969, %v3951
      %3989 = vst.msk [vmem:[#allocation2 + $0x98] sm:$0xff] %vm3969, %v3952
      %3990 = vst.msk [vmem:[#allocation2 + $0xa0] sm:$0xff] %vm3969, %v3953
      %3991 = vst.msk [vmem:[#allocation2 + $0xa8] sm:$0xff] %vm3969, %v3954
      %3992 = vst.msk [vmem:[#allocation2 + $0xb0] sm:$0xff] %vm3969, %v3955
      %3993 = vst.msk [vmem:[#allocation2 + $0xb8] sm:$0xff] %vm3969, %v3956
      %3994 = vst.msk [vmem:[#allocation2 + $0xc0] sm:$0xff] %vm3969, %v3957
      %3995 = vst.msk [vmem:[#allocation2 + $0xc8] sm:$0xff] %vm3969, %v3958
      %3996 = vst.msk [vmem:[#allocation2 + $0xd0] sm:$0xff] %vm3969, %v3959
      %3997 = vst.msk [vmem:[#allocation2 + $0xd8] sm:$0xff] %vm3969, %v3960
      %3998 = vst.msk [vmem:[#allocation2 + $0xe0] sm:$0xff] %vm3969, %v3961
      %3999 = vst.msk [vmem:[#allocation2 + $0xe8] sm:$0xff] %vm3969, %v3962
      %4000 = vst.msk [vmem:[#allocation2 + $0xf0] sm:$0xff] %vm3969, %v3963
      %4001 = vst.msk [vmem:[#allocation2 + $0xf8] sm:$0xff] %vm3969, %v3964
      %4002 = vst.msk [vmem:[#allocation2 + $0x100] sm:$0xff] %vm3969, %v3965
      %4003 = vst.msk [vmem:[#allocation2 + $0x108] sm:$0xff] %vm3969, %v3966
      %4004 = vst.msk [vmem:[#allocation2 + $0x110] sm:$0xff] %vm3969, %v3967
      %4005 = vst.msk [vmem:[#allocation2 + $0x118] sm:$0xff] %vm3969, %v3968
      %v4006 = vld [vmem:[#allocation2] sm:$0xff]
      %v4007 = vld [vmem:[#allocation2 + $0x8] sm:$0xff]
      %4008 = vst.msk [vmem:[#allocation3] sm:$0xff] %vm3969, %v4006
      %4009 = vst.msk [vmem:[#allocation3 + $0x8] sm:$0xff] %vm3969, %v4007
      %v4010 = vld [vmem:[#allocation2 + $0x12] sm:$0xff]
      %v4011 = vld [vmem:[#allocation2 + $0x1a] sm:$0xff]
      %4012 = vst.msk [vmem:[#allocation3 + $0x10] sm:$0xff] %vm3969, %v4010
      %4013 = vst.msk [vmem:[#allocation3 + $0x18] sm:$0xff] %vm3969, %v4011
      %v4014 = vld [vmem:[#allocation2 + $0x24] sm:$0xff]
      %v4015 = vld [vmem:[#allocation2 + $0x2c] sm:$0xff]
      %4016 = vst.msk [vmem:[#allocation3 + $0x20] sm:$0xff] %vm3969, %v4014
      %4017 = vst.msk [vmem:[#allocation3 + $0x28] sm:$0xff] %vm3969, %v4015
      %v4018 = vld [vmem:[#allocation2 + $0x36] sm:$0xff]
      %v4019 = vld [vmem:[#allocation2 + $0x3e] sm:$0xff]
      %4020 = vst.msk [vmem:[#allocation3 + $0x30] sm:$0xff] %vm3969, %v4018
      %4021 = vst.msk [vmem:[#allocation3 + $0x38] sm:$0xff] %vm3969, %v4019
      %v4022 = vld [vmem:[#allocation2 + $0x48] sm:$0xff]
      %v4023 = vld [vmem:[#allocation2 + $0x50] sm:$0xff]
      %4024 = vst.msk [vmem:[#allocation3 + $0x40] sm:$0xff] %vm3969, %v4022
      %4025 = vst.msk [vmem:[#allocation3 + $0x48] sm:$0xff] %vm3969, %v4023
      %v4026 = vld [vmem:[#allocation2 + $0x5a] sm:$0xff]
      %v4027 = vld [vmem:[#allocation2 + $0x62] sm:$0xff]
      %4028 = vst.msk [vmem:[#allocation3 + $0x50] sm:$0xff] %vm3969, %v4026
      %4029 = vst.msk [vmem:[#allocation3 + $0x58] sm:$0xff] %vm3969, %v4027
      %v4030 = vld [vmem:[#allocation2 + $0x6c] sm:$0xff]
      %v4031 = vld [vmem:[#allocation2 + $0x74] sm:$0xff]
      %4032 = vst.msk [vmem:[#allocation3 + $0x60] sm:$0xff] %vm3969, %v4030
      %4033 = vst.msk [vmem:[#allocation3 + $0x68] sm:$0xff] %vm3969, %v4031
      %v4034 = vld [vmem:[#allocation2 + $0x7e] sm:$0xff]
      %v4035 = vld [vmem:[#allocation2 + $0x86] sm:$0xff]
      %4036 = vst.msk [vmem:[#allocation3 + $0x70] sm:$0xff] %vm3969, %v4034
      %4037 = vst.msk [vmem:[#allocation3 + $0x78] sm:$0xff] %vm3969, %v4035
      %v4038 = vld [vmem:[#allocation2 + $0x90] sm:$0xff]
      %v4039 = vld [vmem:[#allocation2 + $0x98] sm:$0xff]
      %4040 = vst.msk [vmem:[#allocation3 + $0x80] sm:$0xff] %vm3969, %v4038
      %4041 = vst.msk [vmem:[#allocation3 + $0x88] sm:$0xff] %vm3969, %v4039
      %v4042 = vld [vmem:[#allocation2 + $0xa2] sm:$0xff]
      %v4043 = vld [vmem:[#allocation2 + $0xaa] sm:$0xff]
      %4044 = vst.msk [vmem:[#allocation3 + $0x90] sm:$0xff] %vm3969, %v4042
      %4045 = vst.msk [vmem:[#allocation3 + $0x98] sm:$0xff] %vm3969, %v4043
      %v4046 = vld [vmem:[#allocation2 + $0xb4] sm:$0xff]
      %v4047 = vld [vmem:[#allocation2 + $0xbc] sm:$0xff]
      %4048 = vst.msk [vmem:[#allocation3 + $0xa0] sm:$0xff] %vm3969, %v4046
      %4049 = vst.msk [vmem:[#allocation3 + $0xa8] sm:$0xff] %vm3969, %v4047
      %v4050 = vld [vmem:[#allocation2 + $0xc6] sm:$0xff]
      %v4051 = vld [vmem:[#allocation2 + $0xce] sm:$0xff]
      %4052 = vst.msk [vmem:[#allocation3 + $0xb0] sm:$0xff] %vm3969, %v4050
      %4053 = vst.msk [vmem:[#allocation3 + $0xb8] sm:$0xff] %vm3969, %v4051
      %v4054 = vld [vmem:[#allocation2 + $0xd8] sm:$0xff]
      %v4055 = vld [vmem:[#allocation2 + $0xe0] sm:$0xff]
      %4056 = vst.msk [vmem:[#allocation3 + $0xc0] sm:$0xff] %vm3969, %v4054
      %4057 = vst.msk [vmem:[#allocation3 + $0xc8] sm:$0xff] %vm3969, %v4055
      %v4058 = vld [vmem:[#allocation2 + $0xea] sm:$0xff]
      %v4059 = vld [vmem:[#allocation2 + $0xf2] sm:$0xff]
      %4060 = vst.msk [vmem:[#allocation3 + $0xd0] sm:$0xff] %vm3969, %v4058
      %4061 = vst.msk [vmem:[#allocation3 + $0xd8] sm:$0xff] %vm3969, %v4059
      %v4062 = vld [vmem:[#allocation2 + $0xfc] sm:$0xff]
      %v4063 = vld [vmem:[#allocation2 + $0x104] sm:$0xff]
      %4064 = vst.msk [vmem:[#allocation3 + $0xe0] sm:$0xff] %vm3969, %v4062
      %4065 = vst.msk [vmem:[#allocation3 + $0xe8] sm:$0xff] %vm3969, %v4063
      %v4066 = vld [vmem:[#allocation2 + $0x10e] sm:$0xff]
      %v4067 = vld [vmem:[#allocation2 + $0x116] sm:$0xff]
      %4068 = vst.msk [vmem:[#allocation3 + $0xf0] sm:$0xff] %vm3969, %v4066
      %4069 = vst.msk [vmem:[#allocation3 + $0xf8] sm:$0xff] %vm3969, %v4067
      %v4070 = vld [vmem:[#allocation3] sm:$0xff]
      %v4071 = vld [vmem:[#allocation3 + $0x8] sm:$0xff]
      %v4072 = vld [vmem:[#allocation3 + $0x10] sm:$0xff]
      %v4073 = vld [vmem:[#allocation3 + $0x18] sm:$0xff]
      %v4074 = vld [vmem:[#allocation3 + $0x20] sm:$0xff]
      %v4075 = vld [vmem:[#allocation3 + $0x28] sm:$0xff]
      %v4076 = vld [vmem:[#allocation3 + $0x30] sm:$0xff]
      %v4077 = vld [vmem:[#allocation3 + $0x38] sm:$0xff]
      %v4078 = vld [vmem:[#allocation3 + $0x40] sm:$0xff]
      %v4079 = vld [vmem:[#allocation3 + $0x48] sm:$0xff]
      %v4080 = vld [vmem:[#allocation3 + $0x50] sm:$0xff]
      %v4081 = vld [vmem:[#allocation3 + $0x58] sm:$0xff]
      %v4082 = vld [vmem:[#allocation3 + $0x60] sm:$0xff]
      %v4083 = vld [vmem:[#allocation3 + $0x68] sm:$0xff]
      %v4084 = vld [vmem:[#allocation3 + $0x70] sm:$0xff]
      %v4085 = vld [vmem:[#allocation3 + $0x78] sm:$0xff]
      %v4086 = vld [vmem:[#allocation3 + $0x80] sm:$0xff]
      %v4087 = vld [vmem:[#allocation3 + $0x88] sm:$0xff]
      %v4088 = vld [vmem:[#allocation3 + $0x90] sm:$0xff]
      %v4089 = vld [vmem:[#allocation3 + $0x98] sm:$0xff]
      %v4090 = vld [vmem:[#allocation3 + $0xa0] sm:$0xff]
      %v4091 = vld [vmem:[#allocation3 + $0xa8] sm:$0xff]
      %v4092 = vld [vmem:[#allocation3 + $0xb0] sm:$0xff]
      %v4093 = vld [vmem:[#allocation3 + $0xb8] sm:$0xff]
      %v4094 = vld [vmem:[#allocation3 + $0xc0] sm:$0xff]
      %v4095 = vld [vmem:[#allocation3 + $0xc8] sm:$0xff]
      %v4096 = vld [vmem:[#allocation3 + $0xd0] sm:$0xff]
      %v4097 = vld [vmem:[#allocation3 + $0xd8] sm:$0xff]
      %v4098 = vld [vmem:[#allocation3 + $0xe0] sm:$0xff]
      %v4099 = vld [vmem:[#allocation3 + $0xe8] sm:$0xff]
      %v4100 = vld [vmem:[#allocation3 + $0xf0] sm:$0xff]
      %v4101 = vld [vmem:[#allocation3 + $0xf8] sm:$0xff]
      %v4102 = vpack.c.bf16 %v4071, %v4070
      %v4103 = vpack.c.bf16 %v4073, %v4072
      %v4104 = vpack.c.bf16 %v4075, %v4074
      %v4105 = vpack.c.bf16 %v4077, %v4076
      %v4106 = vpack.c.bf16 %v4079, %v4078
      %v4107 = vpack.c.bf16 %v4081, %v4080
      %v4108 = vpack.c.bf16 %v4083, %v4082
      %v4109 = vpack.c.bf16 %v4085, %v4084
      %v4110 = vpack.c.bf16 %v4087, %v4086
      %v4111 = vpack.c.bf16 %v4089, %v4088
      %v4112 = vpack.c.bf16 %v4091, %v4090
      %v4113 = vpack.c.bf16 %v4093, %v4092
      %v4114 = vpack.c.bf16 %v4095, %v4094
      %v4115 = vpack.c.bf16 %v4097, %v4096
      %v4116 = vpack.c.bf16 %v4099, %v4098
      %v4117 = vpack.c.bf16 %v4101, %v4100
      %v4118 = vld [vmem:[%s3] sm:$0xf]
      %v4119 = vld [vmem:[%s3 + $0x4] sm:$0xf]
      %v4120 = vld [vmem:[%s3 + $0x8] sm:$0xf]
      %v4121 = vld [vmem:[%s3 + $0xc] sm:$0xf]
      %v4122 = vld [vmem:[%s4] sm:$0x1]
      %v4124 = vlaneseq
      %v4125 = vshrl.u32 %v4124, 7
      %v4126 = vsub.s32 0, %v4125
      %v4127 = vrot.slane %v4122, %v4126
      %v4133 = vunpack.c.l.b16 %v4118
      %v4134 = vunpack.c.l.b16 %v4119
      %v4135 = vunpack.c.l.b16 %v4120
      %v4136 = vunpack.c.l.b16 %v4121
      %v4137 = vpack.c.b16 %v4134, %v4133
      %v4138 = vpack.c.b16 %v4136, %v4135
      %v4142 = vsel %vm3969, %v4102, 0
      %v4145 = vsel %vm3969, %v4103, 0
      %v4148 = vsel %vm3969, %v4104, 0
      %v4151 = vsel %vm3969, %v4105, 0
      %v4154 = vsel %vm3969, %v4106, 0
      %v4157 = vsel %vm3969, %v4107, 0
      %v4160 = vsel %vm3969, %v4108, 0
      %v4163 = vsel %vm3969, %v4109, 0
      %v4166 = vsel %vm3969, %v4110, 0
      %v4169 = vsel %vm3969, %v4111, 0
      %v4172 = vsel %vm3969, %v4112, 0
      %v4175 = vsel %vm3969, %v4113, 0
      %v4178 = vsel %vm3969, %v4114, 0
      %v4181 = vsel %vm3969, %v4115, 0
      %v4184 = vsel %vm3969, %v4116, 0
      %v4187 = vsel %vm3969, %v4117, 0
      %4189 = vmatprep.subr.bf16.mxu0 0
      %4190 = vmatpush1.bf16.msra.mxu0 %v4137
      %4191 = vmatprep.subr.bf16.mxu0 0
      %4192 = vmatpush1.bf16.msra.mxu0 %v4138
      %4193 = vmatprep.subr.bf16.mxu0 0
      %4194 = vmatpush1.bf16.msra.mxu0 0
      %4195 = vmatprep.subr.bf16.mxu0 0
      %4196 = vmatpush1.bf16.msra.mxu0 0
      %4197 = vmatprep.subr.bf16.mxu0 0
      %4198 = vmatpush1.bf16.msra.mxu0 0
      %4199 = vmatprep.subr.bf16.mxu0 0
      %4200 = vmatpush1.bf16.msra.mxu0 0
      %4201 = vmatprep.subr.bf16.mxu0 0
      %4202 = vmatpush1.bf16.msra.mxu0 0
      %4203 = vmatprep.subr.bf16.mxu0 0
      %4204 = vmatpush1.bf16.msra.mxu0 0
      %4205 = vmatprep.subr.bf16.mxu0 0
      %4206 = vmatpush1.bf16.msra.mxu0 0
      %4207 = vmatprep.subr.bf16.mxu0 0
      %4208 = vmatpush1.bf16.msra.mxu0 0
      %4209 = vmatprep.subr.bf16.mxu0 0
      %4210 = vmatpush1.bf16.msra.mxu0 0
      %4211 = vmatprep.subr.bf16.mxu0 0
      %4212 = vmatpush1.bf16.msra.mxu0 0
      %4213 = vmatprep.subr.bf16.mxu0 0
      %4214 = vmatpush1.bf16.msra.mxu0 0
      %4215 = vmatprep.subr.bf16.mxu0 0
      %4216 = vmatpush1.bf16.msra.mxu0 0
      %4217 = vmatprep.subr.bf16.mxu0 0
      %4218 = vmatpush1.bf16.msra.mxu0 0
      %4219 = vmatprep.subr.bf16.mxu0 0
      %4220 = vmatpush1.bf16.msra.mxu0 0
      %4221 = vmatprep.mubr.bf16.mxu0 0
      %4222 = vmatmul.mubr.bf16.gmra.mrb[0].mxu0 %v4142
      %v4223 = vpop.f32.mrb[0].mxu0
      %v4224 = vadd.f32 %v4127, %v4223
      %v4225 = vpop.f32.mrb[0].mxu0
      %v4226 = vpop.f32.mrb[0].mxu0
      %v4227 = vadd.f32 %v4127, %v4226
      %v4228 = vpop.f32.mrb[0].mxu0
      %4229 = vmatprep.mubr.bf16.mxu0 0
      %4230 = vmatmul.mubr.bf16.gmra.mrb[0].mxu0 %v4145
      %v4231 = vpop.f32.mrb[0].mxu0
      %v4232 = vadd.f32 %v4127, %v4231
      %v4233 = vpop.f32.mrb[0].mxu0
      %v4234 = vpop.f32.mrb[0].mxu0
      %v4235 = vadd.f32 %v4127, %v4234
      %v4236 = vpop.f32.mrb[0].mxu0
      %4237 = vmatprep.mubr.bf16.mxu0 0
      %4238 = vmatmul.mubr.bf16.gmra.mrb[0].mxu0 %v4148
      %v4239 = vpop.f32.mrb[0].mxu0
      %v4240 = vadd.f32 %v4127, %v4239
      %v4241 = vpop.f32.mrb[0].mxu0
      %v4242 = vpop.f32.mrb[0].mxu0
      %v4243 = vadd.f32 %v4127, %v4242
      %v4244 = vpop.f32.mrb[0].mxu0
      %4245 = vmatprep.mubr.bf16.mxu0 0
      %4246 = vmatmul.mubr.bf16.gmra.mrb[0].mxu0 %v4151
      %v4247 = vpop.f32.mrb[0].mxu0
      %v4248 = vadd.f32 %v4127, %v4247
      %v4249 = vpop.f32.mrb[0].mxu0
      %v4250 = vpop.f32.mrb[0].mxu0
      %v4251 = vadd.f32 %v4127, %v4250
      %v4252 = vpop.f32.mrb[0].mxu0
      %4253 = vmatprep.mubr.bf16.mxu0 0
      %4254 = vmatmul.mubr.bf16.gmra.mrb[0].mxu0 %v4154
      %v4255 = vpop.f32.mrb[0].mxu0
      %v4256 = vadd.f32 %v4127, %v4255
      %v4257 = vpop.f32.mrb[0].mxu0
      %v4258 = vpop.f32.mrb[0].mxu0
      %v4259 = vadd.f32 %v4127, %v4258
      %v4260 = vpop.f32.mrb[0].mxu0
      %4261 = vmatprep.mubr.bf16.mxu0 0
      %4262 = vmatmul.mubr.bf16.gmra.mrb[0].mxu0 %v4157
      %v4263 = vpop.f32.mrb[0].mxu0
      %v4264 = vadd.f32 %v4127, %v4263
      %v4265 = vpop.f32.mrb[0].mxu0
      %v4266 = vpop.f32.mrb[0].mxu0
      %v4267 = vadd.f32 %v4127, %v4266
      %v4268 = vpop.f32.mrb[0].mxu0
      %4269 = vmatprep.mubr.bf16.mxu0 0
      %4270 = vmatmul.mubr.bf16.gmra.mrb[0].mxu0 %v4160
      %v4271 = vpop.f32.mrb[0].mxu0
      %v4272 = vadd.f32 %v4127, %v4271
      %v4273 = vpop.f32.mrb[0].mxu0
      %v4274 = vpop.f32.mrb[0].mxu0
      %v4275 = vadd.f32 %v4127, %v4274
      %v4276 = vpop.f32.mrb[0].mxu0
      %4277 = vmatprep.mubr.bf16.mxu0 0
      %4278 = vmatmul.mubr.bf16.gmra.mrb[0].mxu0 %v4163
      %v4279 = vpop.f32.mrb[0].mxu0
      %v4280 = vadd.f32 %v4127, %v4279
      %v4281 = vpop.f32.mrb[0].mxu0
      %v4282 = vpop.f32.mrb[0].mxu0
      %v4283 = vadd.f32 %v4127, %v4282
      %v4284 = vpop.f32.mrb[0].mxu0
      %4285 = vmatprep.mubr.bf16.mxu0 0
      %4286 = vmatmul.mubr.bf16.gmra.mrb[0].mxu0 %v4166
      %v4287 = vpop.f32.mrb[0].mxu0
      %v4288 = vadd.f32 %v4127, %v4287
      %v4289 = vpop.f32.mrb[0].mxu0
      %v4290 = vpop.f32.mrb[0].mxu0
      %v4291 = vadd.f32 %v4127, %v4290
      %v4292 = vpop.f32.mrb[0].mxu0
      %4293 = vmatprep.mubr.bf16.mxu0 0
      %4294 = vmatmul.mubr.bf16.gmra.mrb[0].mxu0 %v4169
      %v4295 = vpop.f32.mrb[0].mxu0
      %v4296 = vadd.f32 %v4127, %v4295
      %v4297 = vpop.f32.mrb[0].mxu0
      %v4298 = vpop.f32.mrb[0].mxu0
      %v4299 = vadd.f32 %v4127, %v4298
      %v4300 = vpop.f32.mrb[0].mxu0
      %4301 = vmatprep.mubr.bf16.mxu0 0
      %4302 = vmatmul.mubr.bf16.gmra.mrb[0].mxu0 %v4172
      %v4303 = vpop.f32.mrb[0].mxu0
      %v4304 = vadd.f32 %v4127, %v4303
      %v4305 = vpop.f32.mrb[0].mxu0
      %v4306 = vpop.f32.mrb[0].mxu0
      %v4307 = vadd.f32 %v4127, %v4306
      %v4308 = vpop.f32.mrb[0].mxu0
      %4309 = vmatprep.mubr.bf16.mxu0 0
      %4310 = vmatmul.mubr.bf16.gmra.mrb[0].mxu0 %v4175
      %v4311 = vpop.f32.mrb[0].mxu0
      %v4312 = vadd.f32 %v4127, %v4311
      %v4313 = vpop.f32.mrb[0].mxu0
      %v4314 = vpop.f32.mrb[0].mxu0
      %v4315 = vadd.f32 %v4127, %v4314
      %v4316 = vpop.f32.mrb[0].mxu0
      %4317 = vmatprep.mubr.bf16.mxu0 0
      %4318 = vmatmul.mubr.bf16.gmra.mrb[0].mxu0 %v4178
      %v4319 = vpop.f32.mrb[0].mxu0
      %v4320 = vadd.f32 %v4127, %v4319
      %v4321 = vpop.f32.mrb[0].mxu0
      %v4322 = vpop.f32.mrb[0].mxu0
      %v4323 = vadd.f32 %v4127, %v4322
      %v4324 = vpop.f32.mrb[0].mxu0
      %4325 = vmatprep.mubr.bf16.mxu0 0
      %4326 = vmatmul.mubr.bf16.gmra.mrb[0].mxu0 %v4181
      %v4327 = vpop.f32.mrb[0].mxu0
      %v4328 = vadd.f32 %v4127, %v4327
      %v4329 = vpop.f32.mrb[0].mxu0
      %v4330 = vpop.f32.mrb[0].mxu0
      %v4331 = vadd.f32 %v4127, %v4330
      %v4332 = vpop.f32.mrb[0].mxu0
      %4333 = vmatprep.mubr.bf16.mxu0 0
      %4334 = vmatmul.mubr.bf16.gmra.mrb[0].mxu0 %v4184
      %v4335 = vpop.f32.mrb[0].mxu0
      %v4336 = vadd.f32 %v4127, %v4335
      %v4337 = vpop.f32.mrb[0].mxu0
      %v4338 = vpop.f32.mrb[0].mxu0
      %v4339 = vadd.f32 %v4127, %v4338
      %v4340 = vpop.f32.mrb[0].mxu0
      %4341 = vmatprep.mubr.bf16.mxu0 0
      %4342 = vmatmul.mubr.bf16.gmra.mrb[0].mxu0 %v4187
      %v4343 = vpop.f32.mrb[0].mxu0
      %v4344 = vadd.f32 %v4127, %v4343
      %v4345 = vpop.f32.mrb[0].mxu0
      %v4346 = vpop.f32.mrb[0].mxu0
      %v4347 = vadd.f32 %v4127, %v4346
      %v4348 = vpop.f32.mrb[0].mxu0
      %4349 = vdwg.mxu0
      %v4350 = vxor.u32 %v4224, 2147483648
      %v4351 = vxor.u32 %v4227, 2147483648
      %v4352 = vxor.u32 %v4232, 2147483648
      %v4353 = vxor.u32 %v4235, 2147483648
      %v4354 = vxor.u32 %v4240, 2147483648
      %v4355 = vxor.u32 %v4243, 2147483648
      %v4356 = vxor.u32 %v4248, 2147483648
      %v4357 = vxor.u32 %v4251, 2147483648
      %v4358 = vxor.u32 %v4256, 2147483648
      %v4359 = vxor.u32 %v4259, 2147483648
      %v4360 = vxor.u32 %v4264, 2147483648
      %v4361 = vxor.u32 %v4267, 2147483648
      %v4362 = vxor.u32 %v4272, 2147483648
      %v4363 = vxor.u32 %v4275, 2147483648
      %v4364 = vxor.u32 %v4280, 2147483648
      %v4365 = vxor.u32 %v4283, 2147483648
      %v4366 = vxor.u32 %v4288, 2147483648
      %v4367 = vxor.u32 %v4291, 2147483648
      %v4368 = vxor.u32 %v4296, 2147483648
      %v4369 = vxor.u32 %v4299, 2147483648
      %v4370 = vxor.u32 %v4304, 2147483648
      %v4371 = vxor.u32 %v4307, 2147483648
      %v4372 = vxor.u32 %v4312, 2147483648
      %v4373 = vxor.u32 %v4315, 2147483648
      %v4374 = vxor.u32 %v4320, 2147483648
      %v4375 = vxor.u32 %v4323, 2147483648
      %v4376 = vxor.u32 %v4328, 2147483648
      %v4377 = vxor.u32 %v4331, 2147483648
      %v4378 = vxor.u32 %v4336, 2147483648
      %v4379 = vxor.u32 %v4339, 2147483648
      %v4380 = vxor.u32 %v4344, 2147483648
      %v4381 = vxor.u32 %v4347, 2147483648
      %v4382 = vmul.f32 %v4350, 1.442695
      %v4383 = vpow.pop %v4382
      %v4384 = vmul.f32 %v4351, 1.442695
      %v4385 = vpow.pop %v4384
      %v4386 = vmul.f32 %v4352, 1.442695
      %v4387 = vpow.pop %v4386
      %v4388 = vmul.f32 %v4353, 1.442695
      %v4389 = vpow.pop %v4388
      %v4390 = vmul.f32 %v4354, 1.442695
      %v4391 = vpow.pop %v4390
      %v4392 = vmul.f32 %v4355, 1.442695
      %v4393 = vpow.pop %v4392
      %v4394 = vmul.f32 %v4356, 1.442695
      %v4395 = vpow.pop %v4394
      %v4396 = vmul.f32 %v4357, 1.442695
      %v4397 = vpow.pop %v4396
      %v4398 = vmul.f32 %v4358, 1.442695
      %v4399 = vpow.pop %v4398
      %v4400 = vmul.f32 %v4359, 1.442695
      %v4401 = vpow.pop %v4400
      %v4402 = vmul.f32 %v4360, 1.442695
      %v4403 = vpow.pop %v4402
      %v4404 = vmul.f32 %v4361, 1.442695
      %v4405 = vpow.pop %v4404
      %v4406 = vmul.f32 %v4362, 1.442695
      %v4407 = vpow.pop %v4406
      %v4408 = vmul.f32 %v4363, 1.442695
      %v4409 = vpow.pop %v4408
      %v4410 = vmul.f32 %v4364, 1.442695
      %v4411 = vpow.pop %v4410
      %v4412 = vmul.f32 %v4365, 1.442695
      %v4413 = vpow.pop %v4412
      %v4414 = vmul.f32 %v4366, 1.442695
      %v4415 = vpow.pop %v4414
      %v4416 = vmul.f32 %v4367, 1.442695
      %v4417 = vpow.pop %v4416
      %v4418 = vmul.f32 %v4368, 1.442695
      %v4419 = vpow.pop %v4418
      %v4420 = vmul.f32 %v4369, 1.442695
      %v4421 = vpow.pop %v4420
      %v4422 = vmul.f32 %v4370, 1.442695
      %v4423 = vpow.pop %v4422
      %v4424 = vmul.f32 %v4371, 1.442695
      %v4425 = vpow.pop %v4424
      %v4426 = vmul.f32 %v4372, 1.442695
      %v4427 = vpow.pop %v4426
      %v4428 = vmul.f32 %v4373, 1.442695
      %v4429 = vpow.pop %v4428
      %v4430 = vmul.f32 %v4374, 1.442695
      %v4431 = vpow.pop %v4430
      %v4432 = vmul.f32 %v4375, 1.442695
      %v4433 = vpow.pop %v4432
      %v4434 = vmul.f32 %v4376, 1.442695
      %v4435 = vpow.pop %v4434
      %v4436 = vmul.f32 %v4377, 1.442695
      %v4437 = vpow.pop %v4436
      %v4438 = vmul.f32 %v4378, 1.442695
      %v4439 = vpow.pop %v4438
      %v4440 = vmul.f32 %v4379, 1.442695
      %v4441 = vpow.pop %v4440
      %v4442 = vmul.f32 %v4380, 1.442695
      %v4443 = vpow.pop %v4442
      %v4444 = vmul.f32 %v4381, 1.442695
      %v4445 = vpow.pop %v4444
      %v4446 = vadd.f32 %v4383, 1.0
      %v4447 = vadd.f32 %v4385, 1.0
      %v4448 = vadd.f32 %v4387, 1.0
      %v4449 = vadd.f32 %v4389, 1.0
      %v4450 = vadd.f32 %v4391, 1.0
      %v4451 = vadd.f32 %v4393, 1.0
      %v4452 = vadd.f32 %v4395, 1.0
      %v4453 = vadd.f32 %v4397, 1.0
      %v4454 = vadd.f32 %v4399, 1.0
      %v4455 = vadd.f32 %v4401, 1.0
      %v4456 = vadd.f32 %v4403, 1.0
      %v4457 = vadd.f32 %v4405, 1.0
      %v4458 = vadd.f32 %v4407, 1.0
      %v4459 = vadd.f32 %v4409, 1.0
      %v4460 = vadd.f32 %v4411, 1.0
      %v4461 = vadd.f32 %v4413, 1.0
      %v4462 = vadd.f32 %v4415, 1.0
      %v4463 = vadd.f32 %v4417, 1.0
      %v4464 = vadd.f32 %v4419, 1.0
      %v4465 = vadd.f32 %v4421, 1.0
      %v4466 = vadd.f32 %v4423, 1.0
      %v4467 = vadd.f32 %v4425, 1.0
      %v4468 = vadd.f32 %v4427, 1.0
      %v4469 = vadd.f32 %v4429, 1.0
      %v4470 = vadd.f32 %v4431, 1.0
      %v4471 = vadd.f32 %v4433, 1.0
      %v4472 = vadd.f32 %v4435, 1.0
      %v4473 = vadd.f32 %v4437, 1.0
      %v4474 = vadd.f32 %v4439, 1.0
      %v4475 = vadd.f32 %v4441, 1.0
      %v4476 = vadd.f32 %v4443, 1.0
      %v4477 = vadd.f32 %v4445, 1.0
      %v4478 = vrcp.pop %v4446
      %v4479 = vmul.f32 1.0, %v4478
      %v4480 = vrcp.pop %v4447
      %v4481 = vmul.f32 1.0, %v4480
      %v4482 = vrcp.pop %v4448
      %v4483 = vmul.f32 1.0, %v4482
      %v4484 = vrcp.pop %v4449
      %v4485 = vmul.f32 1.0, %v4484
      %v4486 = vrcp.pop %v4450
      %v4487 = vmul.f32 1.0, %v4486
      %v4488 = vrcp.pop %v4451
      %v4489 = vmul.f32 1.0, %v4488
      %v4490 = vrcp.pop %v4452
      %v4491 = vmul.f32 1.0, %v4490
      %v4492 = vrcp.pop %v4453
      %v4493 = vmul.f32 1.0, %v4492
      %v4494 = vrcp.pop %v4454
      %v4495 = vmul.f32 1.0, %v4494
      %v4496 = vrcp.pop %v4455
      %v4497 = vmul.f32 1.0, %v4496
      %v4498 = vrcp.pop %v4456
      %v4499 = vmul.f32 1.0, %v4498
      %v4500 = vrcp.pop %v4457
      %v4501 = vmul.f32 1.0, %v4500
      %v4502 = vrcp.pop %v4458
      %v4503 = vmul.f32 1.0, %v4502
      %v4504 = vrcp.pop %v4459
      %v4505 = vmul.f32 1.0, %v4504
      %v4506 = vrcp.pop %v4460
      %v4507 = vmul.f32 1.0, %v4506
      %v4508 = vrcp.pop %v4461
      %v4509 = vmul.f32 1.0, %v4508
      %v4510 = vrcp.pop %v4462
      %v4511 = vmul.f32 1.0, %v4510
      %v4512 = vrcp.pop %v4463
      %v4513 = vmul.f32 1.0, %v4512
      %v4514 = vrcp.pop %v4464
      %v4515 = vmul.f32 1.0, %v4514
      %v4516 = vrcp.pop %v4465
      %v4517 = vmul.f32 1.0, %v4516
      %v4518 = vrcp.pop %v4466
      %v4519 = vmul.f32 1.0, %v4518
      %v4520 = vrcp.pop %v4467
      %v4521 = vmul.f32 1.0, %v4520
      %v4522 = vrcp.pop %v4468
      %v4523 = vmul.f32 1.0, %v4522
      %v4524 = vrcp.pop %v4469
      %v4525 = vmul.f32 1.0, %v4524
      %v4526 = vrcp.pop %v4470
      %v4527 = vmul.f32 1.0, %v4526
      %v4528 = vrcp.pop %v4471
      %v4529 = vmul.f32 1.0, %v4528
      %v4530 = vrcp.pop %v4472
      %v4531 = vmul.f32 1.0, %v4530
      %v4532 = vrcp.pop %v4473
      %v4533 = vmul.f32 1.0, %v4532
      %v4534 = vrcp.pop %v4474
      %v4535 = vmul.f32 1.0, %v4534
      %v4536 = vrcp.pop %v4475
      %v4537 = vmul.f32 1.0, %v4536
      %v4538 = vrcp.pop %v4476
      %v4539 = vmul.f32 1.0, %v4538
      %v4540 = vrcp.pop %v4477
      %v4541 = vmul.f32 1.0, %v4540
      %v4542 = vmul.f32 %v4224, %v4479
      %v4543 = vmul.f32 %v4227, %v4481
      %v4544 = vmul.f32 %v4232, %v4483
      %v4545 = vmul.f32 %v4235, %v4485
      %v4546 = vmul.f32 %v4240, %v4487
      %v4547 = vmul.f32 %v4243, %v4489
      %v4548 = vmul.f32 %v4248, %v4491
      %v4549 = vmul.f32 %v4251, %v4493
      %v4550 = vmul.f32 %v4256, %v4495
      %v4551 = vmul.f32 %v4259, %v4497
      %v4552 = vmul.f32 %v4264, %v4499
      %v4553 = vmul.f32 %v4267, %v4501
      %v4554 = vmul.f32 %v4272, %v4503
      %v4555 = vmul.f32 %v4275, %v4505
      %v4556 = vmul.f32 %v4280, %v4507
      %v4557 = vmul.f32 %v4283, %v4509
      %v4558 = vmul.f32 %v4288, %v4511
      %v4559 = vmul.f32 %v4291, %v4513
      %v4560 = vmul.f32 %v4296, %v4515
      %v4561 = vmul.f32 %v4299, %v4517
      %v4562 = vmul.f32 %v4304, %v4519
      %v4563 = vmul.f32 %v4307, %v4521
      %v4564 = vmul.f32 %v4312, %v4523
      %v4565 = vmul.f32 %v4315, %v4525
      %v4566 = vmul.f32 %v4320, %v4527
      %v4567 = vmul.f32 %v4323, %v4529
      %v4568 = vmul.f32 %v4328, %v4531
      %v4569 = vmul.f32 %v4331, %v4533
      %v4570 = vmul.f32 %v4336, %v4535
      %v4571 = vmul.f32 %v4339, %v4537
      %v4572 = vmul.f32 %v4344, %v4539
      %v4573 = vmul.f32 %v4347, %v4541
      %vm4574 = vcmask 523264
      %4575 = vst.msk [vmem:[%s224] sm:$0xff] %vm4574, %v4542
      %4576 = vst.msk [vmem:[%s224 + $0x8] sm:$0xff] %vm4574, %v4543
      %4577 = vst.msk [vmem:[%s224 + $0x10] sm:$0xff] %vm4574, %v4544
      %4578 = vst.msk [vmem:[%s224 + $0x18] sm:$0xff] %vm4574, %v4545
      %4579 = vst.msk [vmem:[%s224 + $0x20] sm:$0xff] %vm4574, %v4546
      %4580 = vst.msk [vmem:[%s224 + $0x28] sm:$0xff] %vm4574, %v4547
      %4581 = vst.msk [vmem:[%s224 + $0x30] sm:$0xff] %vm4574, %v4548
      %4582 = vst.msk [vmem:[%s224 + $0x38] sm:$0xff] %vm4574, %v4549
      %4583 = vst.msk [vmem:[%s224 + $0x40] sm:$0xff] %vm4574, %v4550
      %4584 = vst.msk [vmem:[%s224 + $0x48] sm:$0xff] %vm4574, %v4551
      %4585 = vst.msk [vmem:[%s224 + $0x50] sm:$0xff] %vm4574, %v4552
      %4586 = vst.msk [vmem:[%s224 + $0x58] sm:$0xff] %vm4574, %v4553
      %4587 = vst.msk [vmem:[%s224 + $0x60] sm:$0xff] %vm4574, %v4554
      %4588 = vst.msk [vmem:[%s224 + $0x68] sm:$0xff] %vm4574, %v4555
      %4589 = vst.msk [vmem:[%s224 + $0x70] sm:$0xff] %vm4574, %v4556
      %4590 = vst.msk [vmem:[%s224 + $0x78] sm:$0xff] %vm4574, %v4557
      %4591 = vst.msk [vmem:[%s224 + $0x80] sm:$0xff] %vm4574, %v4558
      %4592 = vst.msk [vmem:[%s224 + $0x88] sm:$0xff] %vm4574, %v4559
      %4593 = vst.msk [vmem:[%s224 + $0x90] sm:$0xff] %vm4574, %v4560
      %4594 = vst.msk [vmem:[%s224 + $0x98] sm:$0xff] %vm4574, %v4561
      %4595 = vst.msk [vmem:[%s224 + $0xa0] sm:$0xff] %vm4574, %v4562
      %4596 = vst.msk [vmem:[%s224 + $0xa8] sm:$0xff] %vm4574, %v4563
      %4597 = vst.msk [vmem:[%s224 + $0xb0] sm:$0xff] %vm4574, %v4564
      %4598 = vst.msk [vmem:[%s224 + $0xb8] sm:$0xff] %vm4574, %v4565
      %4599 = vst.msk [vmem:[%s224 + $0xc0] sm:$0xff] %vm4574, %v4566
      %4600 = vst.msk [vmem:[%s224 + $0xc8] sm:$0xff] %vm4574, %v4567
      %4601 = vst.msk [vmem:[%s224 + $0xd0] sm:$0xff] %vm4574, %v4568
      %4602 = vst.msk [vmem:[%s224 + $0xd8] sm:$0xff] %vm4574, %v4569
      %4603 = vst.msk [vmem:[%s224 + $0xe0] sm:$0xff] %vm4574, %v4570
      %4604 = vst.msk [vmem:[%s224 + $0xe8] sm:$0xff] %vm4574, %v4571
      %4605 = vst.msk [vmem:[%s224 + $0xf0] sm:$0xff] %vm4574, %v4572
      %4606 = vst.msk [vmem:[%s224 + $0xf8] sm:$0xff] %vm4574, %v4573
      %p4607 = scmp.lt.s32.totalorder %s16, 1
      %s4608 = scalar_select %p4607, %s16, 1
      %s4609 = smul.addr %s4608, 32
      %s4610 = smul.addr %s4609, 8
      %s4611 = scalar_lea.vmem %s5, %s4610
      // Predicated region
      $region41: #{_lambda_.1} parent=39 // pred_check
        %p4612 = pneg %p144
      $region42: #{_lambda_.1} parent=39 // pred_check_branch
        %4614 = sbr.rel (%p4612) target = $region44
      $region43: #{_lambda_.1} parent=39 // pred_region
        _
      $region44: #{_lambda_.1} parent=39 // pred_fallthru
        _
    $region40: #{_lambda_.1} parent=5 // pred_fallthru
      _
    %p4615 = scmp.le.s32.totalorder 2, %s11
    // Predicated region
    $region45: #{_lambda_.1} parent=5 // pred_check
      %p4616 = pneg %p4615
    $region46: #{_lambda_.1} parent=5 // pred_check_branch
      %4618 = sbr.rel (%p4616) target = $region48
    $region47: #{_lambda_.1} parent=5 // pred_region
      %s4619 = ssub.s32 %s11, 2
      // Predicated region
      $region49: #{_lambda_.1} parent=47 // pred_check
        %p4620 = pneg %p150
      $region50: #{_lambda_.1} parent=47 // pred_check_branch
        %4622 = sbr.rel (%p4620) target = $region52
      $region51: #{_lambda_.1} parent=47 // pred_region
        %p4623 = scmp.lt.s32.totalorder %s17, 1
        %s4624 = scalar_select %p4623, %s17, 1
        %s4625 = smul.addr %s4624, 32
        %s4626 = smul.addr %s4625, 8
        %s4627 = scalar_lea.vmem %s5, %s4626
      $region52: #{_lambda_.1} parent=47 // pred_fallthru
        _
    $region48: #{_lambda_.1} parent=5 // pred_fallthru
      _
  $region6: #{_lambda_.1} parent=0 // loop_footer
    %s15 = sadd.s32 1, %s11
  $region7: #{_lambda_.1} parent=0 // loop_footer_branch
    %10 = sbr.rel target = $region3
  $region8: #{_lambda_.1} parent=0 // loop_exit
    _

</llo_original>
